<compile_context>
chip_gen: v7x
topology: tpu7x:2x2x1
jax: 0.10.0
libtpu: 0.0.40
codegen_flags: <defaults>
</compile_context>

<pallas_src>
import functools

import jax
import jax.numpy as jnp
from jax.experimental import pallas as pl
from jax.experimental.pallas import tpu as pltpu


C_IN, C_STEM, C_EXP, C_SE, C_HEAD, N_OUT = 3, 16, 64, 4, 64, 5


def _full_spec(shape):
    """Whole-array block (block dims == array dims) for a grid=(1,) call."""
    n = len(shape)
    return pl.BlockSpec(shape, lambda *_, _n=n: (0,) * _n)


# ---------------------------------------------------------------------------
# Kernel 1: stem 3x3 stride-2 conv + SiLU (taps accumulated in-kernel)
# ---------------------------------------------------------------------------
def _stem_kernel(N, Ho, Wo, xs_ref, w_ref, b_ref, o_ref):
    """xs_ref: (4, N, Ho+1, Wo+1, C_IN) stride-2 parity phases of the padded
    input.  w_ref: (9, C_IN, C_STEM).  o_ref: (N*Ho*Wo, C_STEM)."""
    M, Cst = o_ref.shape
    w = w_ref[...]                                    # hoisted weight load
    acc = jnp.zeros((M, Cst), jnp.float32)
    for kh in range(3):
        ph, qh = kh % 2, kh // 2
        for kw in range(3):
            pw, qw = kw % 2, kw // 2
            # tap (kh, kw) == phase (ph, pw) shifted by (qh, qw): plain slice.
            tap = xs_ref[2 * ph + pw, :, qh:qh + Ho, qw:qw + Wo, :]
            tap2 = tap.reshape(M, tap.shape[-1])
            acc = acc + jnp.dot(tap2, w[3 * kh + kw],
                                preferred_element_type=jnp.float32)
    acc = acc + b_ref[...].astype(jnp.float32)        # BN folded into bias
    acc = acc * jax.nn.sigmoid(acc)                   # SiLU
    o_ref[...] = acc.astype(o_ref.dtype)


def pallas_stem(xs, w, b, N, Ho, Wo, out_dtype):
    _, _, Hp2, Wp2, Cin = xs.shape
    Cst = w.shape[-1]
    M = N * Ho * Wo
    return pl.pallas_call(
        functools.partial(_stem_kernel, N, Ho, Wo),
        out_shape=jax.ShapeDtypeStruct((M, Cst), out_dtype),
        grid=(1,),
        in_specs=[
            _full_spec((4, N, Hp2, Wp2, Cin)),
            _full_spec((9, Cin, Cst)),
            _full_spec((1, Cst)),
        ],
        out_specs=_full_spec((M, Cst)),
        compiler_params=pltpu.CompilerParams(dimension_semantics=("arbitrary",)),
    )(xs, w, b.reshape(1, Cst))


# ---------------------------------------------------------------------------
# Kernel 2: fused MBConv (expand 1x1 -> dw 3x3 -> SE -> project + residual)
# ---------------------------------------------------------------------------
def _mbconv_kernel(N, Ho, Wo,
                   x_ref, we_ref, be_ref, wd_ref, bd_ref,
                   w1_ref, b1_ref, w2_ref, b2_ref, wp_ref, bp_ref,
                   o_ref, pad_ref):
    M, Cst = x_ref.shape
    Cexp = we_ref.shape[-1]

    xm = x_ref[...]                                            # (M, Cst) bf16

    # -- expand 1x1 + SiLU (MXU, f32 accumulation) --
    e = jnp.dot(xm, we_ref[...], preferred_element_type=jnp.float32)
    e = e + be_ref[...].astype(jnp.float32)
    e = e * jax.nn.sigmoid(e)                                  # (M, Cexp) f32

    # -- depthwise 3x3 + SiLU; halo kept in a zero-padded VMEM scratch,
    #    no HBM round trip, no jnp.pad outside the kernel --
    pad_ref[...] = jnp.zeros(pad_ref.shape, pad_ref.dtype)
    pad_ref[:, 1:1 + Ho, 1:1 + Wo, :] = e.reshape(N, Ho, Wo, Cexp)

    wd = wd_ref[...].astype(jnp.float32)                       # (9, Cexp) hoisted
    bd = bd_ref[...].astype(jnp.float32)                       # (1, Cexp) hoisted
    acc = jnp.zeros((N, Ho, Wo, Cexp), jnp.float32)
    for kh in range(3):
        for kw in range(3):
            tap = pad_ref[:, kh:kh + Ho, kw:kw + Wo, :]
            acc = acc + tap * wd[3 * kh + kw]
    acc = acc + bd
    d = acc * jax.nn.sigmoid(acc)                              # (N, Ho, Wo, Cexp)

    # -- Squeeze-and-Excite (GAP -> FC+SiLU -> FC+Sigmoid -> channel scale) --
    pooled = jnp.mean(d.reshape(N, Ho * Wo, Cexp), axis=1)     # (N, Cexp) f32
    h1 = jnp.dot(pooled.astype(w1_ref.dtype), w1_ref[...],
                 preferred_element_type=jnp.float32)
    h1 = h1 + b1_ref[...].astype(jnp.float32)
    h1 = h1 * jax.nn.sigmoid(h1)                               # (N, Cse)
    g = jnp.dot(h1.astype(w2_ref.dtype), w2_ref[...],
                preferred_element_type=jnp.float32)
    g = jax.nn.sigmoid(g + b2_ref[...].astype(jnp.float32))    # (N, Cexp)
    s = d * g.reshape(N, 1, 1, Cexp)

    # -- project 1x1 (linear), residual added to the linear output --
    p = jnp.dot(s.reshape(M, Cexp).astype(wp_ref.dtype), wp_ref[...],
                preferred_element_type=jnp.float32)
    p = p + bp_ref[...].astype(jnp.float32) + xm.astype(jnp.float32)
    o_ref[...] = p.astype(o_ref.dtype)


def pallas_mbconv(x2d, params, N, Ho, Wo, cdt):
    M, Cst = x2d.shape
    Cexp = params["exp_w"].shape[1]
    Cse = params["se_w1"].shape[1]
    return pl.pallas_call(
        functools.partial(_mbconv_kernel, N, Ho, Wo),
        out_shape=jax.ShapeDtypeStruct((M, Cst), cdt),
        grid=(1,),
        in_specs=[
            _full_spec((M, Cst)),
            _full_spec((Cst, Cexp)), _full_spec((1, Cexp)),     # expand
            _full_spec((9, Cexp)), _full_spec((1, Cexp)),       # depthwise
            _full_spec((Cexp, Cse)), _full_spec((1, Cse)),      # SE reduce
            _full_spec((Cse, Cexp)), _full_spec((1, Cexp)),     # SE expand
            _full_spec((Cexp, Cst)), _full_spec((1, Cst)),      # project
        ],
        out_specs=_full_spec((M, Cst)),
        scratch_shapes=[pltpu.VMEM((N, Ho + 2, Wo + 2, Cexp), jnp.float32)],
        compiler_params=pltpu.CompilerParams(dimension_semantics=("arbitrary",)),
    )(x2d,
      params["exp_w"].astype(cdt), params["exp_b"].reshape(1, Cexp),
      params["dw_w"], params["dw_b"].reshape(1, Cexp),
      params["se_w1"].astype(cdt), params["se_b1"].reshape(1, Cse),
      params["se_w2"].astype(cdt), params["se_b2"].reshape(1, Cexp),
      params["proj_w"].astype(cdt), params["proj_b"].reshape(1, Cst))


# ---------------------------------------------------------------------------
# Kernel 3: fused tail (head 1x1 + SiLU -> GAP -> classifier -> sigmoid)
# ---------------------------------------------------------------------------
def _tail_kernel(N, HW, apply_sigmoid,
                 x_ref, wh_ref, bh_ref, wc_ref, bc_ref, o_ref):
    h = jnp.dot(x_ref[...], wh_ref[...], preferred_element_type=jnp.float32)
    h = h + bh_ref[...].astype(jnp.float32)
    h = h * jax.nn.sigmoid(h)                                  # (M, Chead) f32
    Chead = h.shape[-1]
    pooled = jnp.mean(h.reshape(N, HW, Chead), axis=1)         # (N, Chead)
    logits = jnp.dot(pooled.astype(wc_ref.dtype), wc_ref[...],
                     preferred_element_type=jnp.float32)
    logits = logits + bc_ref[...].astype(jnp.float32)
    if apply_sigmoid:
        logits = jax.nn.sigmoid(logits)
    o_ref[...] = logits.astype(o_ref.dtype)


def pallas_tail(x2d, params, N, HW, is_sigmoid, cdt):
    M, Cst = x2d.shape
    Chead = params["head_w"].shape[1]
    n_out = params["cls_w"].shape[1]
    return pl.pallas_call(
        functools.partial(_tail_kernel, N, HW, bool(is_sigmoid)),
        out_shape=jax.ShapeDtypeStruct((N, n_out), jnp.float32),
        grid=(1,),
        in_specs=[
            _full_spec((M, Cst)),
            _full_spec((Cst, Chead)), _full_spec((1, Chead)),
            _full_spec((Chead, n_out)), _full_spec((1, n_out)),
        ],
        out_specs=_full_spec((N, n_out)),
        compiler_params=pltpu.CompilerParams(dimension_semantics=("arbitrary",)),
    )(x2d,
      params["head_w"].astype(cdt), params["head_b"].reshape(1, Chead),
      params["cls_w"].astype(cdt), params["cls_b"].reshape(1, n_out))


# ---------------------------------------------------------------------------
# Model: parameters + forward
# ---------------------------------------------------------------------------
def init_params(key):
    ks = jax.random.split(key, 8)

    def w(k, shape, fan_in):
        return jax.random.normal(k, shape, jnp.float32) / jnp.sqrt(fan_in)

    return {
        # stem: 3x3 s2 conv, 3 -> 16 (BN folded into bias), SiLU
        "stem_w": w(ks[0], (9, C_IN, C_STEM), 9 * C_IN),
        "stem_b": jnp.zeros((C_STEM,), jnp.float32),
        # MBConv expand 1x1: 16 -> 64, SiLU
        "exp_w": w(ks[1], (C_STEM, C_EXP), C_STEM),
        "exp_b": jnp.zeros((C_EXP,), jnp.float32),
        # depthwise 3x3, SiLU
        "dw_w": jax.random.normal(ks[2], (9, C_EXP), jnp.float32) / 3.0,
        "dw_b": jnp.zeros((C_EXP,), jnp.float32),
        # SE
        "se_w1": w(ks[3], (C_EXP, C_SE), C_EXP),
        "se_b1": jnp.zeros((C_SE,), jnp.float32),
        "se_w2": w(ks[4], (C_SE, C_EXP), C_SE),
        "se_b2": jnp.zeros((C_EXP,), jnp.float32),
        # project 1x1: 64 -> 16, linear + residual
        "proj_w": w(ks[5], (C_EXP, C_STEM), C_EXP),
        "proj_b": jnp.zeros((C_STEM,), jnp.float32),
        # head 1x1: 16 -> 64, SiLU
        "head_w": w(ks[6], (C_STEM, C_HEAD), C_STEM),
        "head_b": jnp.zeros((C_HEAD,), jnp.float32),
        # classifier (the nn.LazyLinear(n_out))
        "cls_w": w(ks[7], (C_HEAD, N_OUT), C_HEAD),
        "cls_b": jnp.zeros((N_OUT,), jnp.float32),
    }


def effnet_forward(params, x_nchw, is_sigmoid=True, compute_dtype=jnp.bfloat16):
    N, Cin, H, W = x_nchw.shape
    assert H % 2 == 0 and W % 2 == 0
    Ho, Wo = H // 2, W // 2

    # PyTorch is NCHW; convert once to NHWC (channels on the lane dim), pad by
    # 1, and split into the 4 stride-2 parity phases so the stem kernel only
    # ever takes contiguous (unstrided) slices.  This is a pure permutation of
    # the (tiny) input -- no 9x im2col blow-up in HBM.
    x = jnp.transpose(x_nchw, (0, 2, 3, 1)).astype(jnp.float32)
    xp = jnp.pad(x, ((0, 0), (1, 1), (1, 1), (0, 0)))           # (N, H+2, W+2, C)
    Hp2, Wp2 = Ho + 1, Wo + 1
    xs = xp.reshape(N, Hp2, 2, Wp2, 2, Cin).transpose(2, 4, 0, 1, 3, 5)
    xs = xs.reshape(4, N, Hp2, Wp2, Cin)

    # kernel 1: stem conv + SiLU                       -> (N*Ho*Wo, C_STEM) bf16
    h = pallas_stem(xs, params["stem_w"], params["stem_b"], N, Ho, Wo,
                    out_dtype=compute_dtype)
    # kernel 2: fused MBConv block                     -> (N*Ho*Wo, C_STEM) bf16
    h = pallas_mbconv(h, params, N, Ho, Wo, compute_dtype)
    # kernel 3: head conv + GAP + classifier (+sigmoid) -> (N, N_OUT) f32
    out = pallas_tail(h, params, N, Ho * Wo, is_sigmoid, compute_dtype)
    return out


# ---------------------------------------------------------------------------
if __name__ == "__main__":
    key = jax.random.PRNGKey(0)
    pkey, xkey = jax.random.split(key)
    params = init_params(pkey)

    x = jax.random.normal(xkey, (2, 3, 16, 16), jnp.float32)    # NCHW like PyTorch

    fwd = jax.jit(functools.partial(effnet_forward, is_sigmoid=True))
    out = fwd(params, x)
    out = jax.block_until_ready(out)

    assert out.shape == (2, N_OUT), out.shape
    assert bool(jnp.all(jnp.isfinite(out)))
    assert bool(jnp.all((out >= 0.0) & (out <= 1.0)))           # sigmoid range
    print("KERNEL_OK")
</pallas_src>

<mosaic_0001>
module attributes {stable_mosaic.version = 11 : i64} {
  func.func @_stem_kernel(%arg0: i32, %arg1: memref<4x2x9x9x3xf32, #tpu.memory_space<vmem>>, %arg2: memref<9x3x16xf32, #tpu.memory_space<vmem>>, %arg3: memref<1x16xf32, #tpu.memory_space<vmem>>, %arg4: memref<128x16xbf16, #tpu.memory_space<vmem>>) attributes {dimension_semantics = [#tpu.dimension_semantics<arbitrary>], iteration_bounds = array<i64: 1>, scalar_prefetch = 0 : i64, scratch_operands = 0 : i64, tpu.core_type = #tpu.core_type<tc>, window_params = [{pipeline_mode = #tpu.pipeline_mode<synchronous>, transform_indices = @transform_0, window_bounds = array<i64: 4, 2, 9, 9, 3>}, {pipeline_mode = #tpu.pipeline_mode<synchronous>, transform_indices = @transform_1, window_bounds = array<i64: 9, 3, 16>}, {pipeline_mode = #tpu.pipeline_mode<synchronous>, transform_indices = @transform_2, window_bounds = array<i64: 1, 16>}, {pipeline_mode = #tpu.pipeline_mode<synchronous>, transform_indices = @transform_3, window_bounds = array<i64: 128, 16>}]} {
    %c0 = arith.constant 0 : index
    %c0_0 = arith.constant 0 : index
    %c0_1 = arith.constant 0 : index
    %0 = vector.load %arg2[%c0, %c0_0, %c0_1] : memref<9x3x16xf32, #tpu.memory_space<vmem>>, vector<9x3x16xf32>
    %cst = arith.constant 0.000000e+00 : f32
    %1 = vector.broadcast %cst : f32 to vector<128x16xf32>
    %c0_2 = arith.constant 0 : index
    %c0_3 = arith.constant 0 : index
    %c0_4 = arith.constant 0 : index
    %c0_5 = arith.constant 0 : index
    %c0_6 = arith.constant 0 : index
    %2 = vector.load %arg1[%c0_2, %c0_3, %c0_4, %c0_5, %c0_6] : memref<4x2x9x9x3xf32, #tpu.memory_space<vmem>>, vector<1x2x8x8x3xf32>
    %3 = vector.shape_cast %2 : vector<1x2x8x8x3xf32> to vector<2x8x8x3xf32>
    %4 = vector.shape_cast %3 : vector<2x8x8x3xf32> to vector<128x3xf32>
    %5 = vector.extract_strided_slice %0 {offsets = [0, 0, 0], sizes = [1, 3, 16], strides = [1, 1, 1]} : vector<9x3x16xf32> to vector<1x3x16xf32>
    %6 = vector.shape_cast %5 : vector<1x3x16xf32> to vector<3x16xf32>
    %cst_7 = arith.constant dense<0.000000e+00> : vector<128x16xf32>
    %7 = tpu.matmul %4, %6, %cst_7 {dimension_numbers = #tpu.dot_dimension_numbers<[1], [0], [0], [1], [0, 0, 1, 1], [], []>} : vector<128x3xf32>, vector<3x16xf32>, vector<128x16xf32> -> vector<128x16xf32>
    %8 = arith.addf %1, %7 : vector<128x16xf32>
    %c1 = arith.constant 1 : index
    %c0_8 = arith.constant 0 : index
    %c0_9 = arith.constant 0 : index
    %c0_10 = arith.constant 0 : index
    %c0_11 = arith.constant 0 : index
    %9 = vector.load %arg1[%c1, %c0_8, %c0_9, %c0_10, %c0_11] : memref<4x2x9x9x3xf32, #tpu.memory_space<vmem>>, vector<1x2x8x8x3xf32>
    %10 = vector.shape_cast %9 : vector<1x2x8x8x3xf32> to vector<2x8x8x3xf32>
    %11 = vector.shape_cast %10 : vector<2x8x8x3xf32> to vector<128x3xf32>
    %12 = vector.extract_strided_slice %0 {offsets = [1, 0, 0], sizes = [1, 3, 16], strides = [1, 1, 1]} : vector<9x3x16xf32> to vector<1x3x16xf32>
    %13 = vector.shape_cast %12 : vector<1x3x16xf32> to vector<3x16xf32>
    %cst_12 = arith.constant dense<0.000000e+00> : vector<128x16xf32>
    %14 = tpu.matmul %11, %13, %cst_12 {dimension_numbers = #tpu.dot_dimension_numbers<[1], [0], [0], [1], [0, 0, 1, 1], [], []>} : vector<128x3xf32>, vector<3x16xf32>, vector<128x16xf32> -> vector<128x16xf32>
    %15 = arith.addf %8, %14 : vector<128x16xf32>
    %c0_13 = arith.constant 0 : index
    %c0_14 = arith.constant 0 : index
    %c0_15 = arith.constant 0 : index
    %c1_16 = arith.constant 1 : index
    %c0_17 = arith.constant 0 : index
    %16 = vector.load %arg1[%c0_13, %c0_14, %c0_15, %c1_16, %c0_17] : memref<4x2x9x9x3xf32, #tpu.memory_space<vmem>>, vector<1x2x8x8x3xf32>
    %17 = vector.shape_cast %16 : vector<1x2x8x8x3xf32> to vector<2x8x8x3xf32>
    %18 = vector.shape_cast %17 : vector<2x8x8x3xf32> to vector<128x3xf32>
    %19 = vector.extract_strided_slice %0 {offsets = [2, 0, 0], sizes = [1, 3, 16], strides = [1, 1, 1]} : vector<9x3x16xf32> to vector<1x3x16xf32>
    %20 = vector.shape_cast %19 : vector<1x3x16xf32> to vector<3x16xf32>
    %cst_18 = arith.constant dense<0.000000e+00> : vector<128x16xf32>
    %21 = tpu.matmul %18, %20, %cst_18 {dimension_numbers = #tpu.dot_dimension_numbers<[1], [0], [0], [1], [0, 0, 1, 1], [], []>} : vector<128x3xf32>, vector<3x16xf32>, vector<128x16xf32> -> vector<128x16xf32>
    %22 = arith.addf %15, %21 : vector<128x16xf32>
    %c2 = arith.constant 2 : index
    %c0_19 = arith.constant 0 : index
    %c0_20 = arith.constant 0 : index
    %c0_21 = arith.constant 0 : index
    %c0_22 = arith.constant 0 : index
    %23 = vector.load %arg1[%c2, %c0_19, %c0_20, %c0_21, %c0_22] : memref<4x2x9x9x3xf32, #tpu.memory_space<vmem>>, vector<1x2x8x8x3xf32>
    %24 = vector.shape_cast %23 : vector<1x2x8x8x3xf32> to vector<2x8x8x3xf32>
    %25 = vector.shape_cast %24 : vector<2x8x8x3xf32> to vector<128x3xf32>
    %26 = vector.extract_strided_slice %0 {offsets = [3, 0, 0], sizes = [1, 3, 16], strides = [1, 1, 1]} : vector<9x3x16xf32> to vector<1x3x16xf32>
    %27 = vector.shape_cast %26 : vector<1x3x16xf32> to vector<3x16xf32>
    %cst_23 = arith.constant dense<0.000000e+00> : vector<128x16xf32>
    %28 = tpu.matmul %25, %27, %cst_23 {dimension_numbers = #tpu.dot_dimension_numbers<[1], [0], [0], [1], [0, 0, 1, 1], [], []>} : vector<128x3xf32>, vector<3x16xf32>, vector<128x16xf32> -> vector<128x16xf32>
    %29 = arith.addf %22, %28 : vector<128x16xf32>
    %c3 = arith.constant 3 : index
    %c0_24 = arith.constant 0 : index
    %c0_25 = arith.constant 0 : index
    %c0_26 = arith.constant 0 : index
    %c0_27 = arith.constant 0 : index
    %30 = vector.load %arg1[%c3, %c0_24, %c0_25, %c0_26, %c0_27] : memref<4x2x9x9x3xf32, #tpu.memory_space<vmem>>, vector<1x2x8x8x3xf32>
    %31 = vector.shape_cast %30 : vector<1x2x8x8x3xf32> to vector<2x8x8x3xf32>
    %32 = vector.shape_cast %31 : vector<2x8x8x3xf32> to vector<128x3xf32>
    %33 = vector.extract_strided_slice %0 {offsets = [4, 0, 0], sizes = [1, 3, 16], strides = [1, 1, 1]} : vector<9x3x16xf32> to vector<1x3x16xf32>
    %34 = vector.shape_cast %33 : vector<1x3x16xf32> to vector<3x16xf32>
    %cst_28 = arith.constant dense<0.000000e+00> : vector<128x16xf32>
    %35 = tpu.matmul %32, %34, %cst_28 {dimension_numbers = #tpu.dot_dimension_numbers<[1], [0], [0], [1], [0, 0, 1, 1], [], []>} : vector<128x3xf32>, vector<3x16xf32>, vector<128x16xf32> -> vector<128x16xf32>
    %36 = arith.addf %29, %35 : vector<128x16xf32>
    %c2_29 = arith.constant 2 : index
    %c0_30 = arith.constant 0 : index
    %c0_31 = arith.constant 0 : index
    %c1_32 = arith.constant 1 : index
    %c0_33 = arith.constant 0 : index
    %37 = vector.load %arg1[%c2_29, %c0_30, %c0_31, %c1_32, %c0_33] : memref<4x2x9x9x3xf32, #tpu.memory_space<vmem>>, vector<1x2x8x8x3xf32>
    %38 = vector.shape_cast %37 : vector<1x2x8x8x3xf32> to vector<2x8x8x3xf32>
    %39 = vector.shape_cast %38 : vector<2x8x8x3xf32> to vector<128x3xf32>
    %40 = vector.extract_strided_slice %0 {offsets = [5, 0, 0], sizes = [1, 3, 16], strides = [1, 1, 1]} : vector<9x3x16xf32> to vector<1x3x16xf32>
    %41 = vector.shape_cast %40 : vector<1x3x16xf32> to vector<3x16xf32>
    %cst_34 = arith.constant dense<0.000000e+00> : vector<128x16xf32>
    %42 = tpu.matmul %39, %41, %cst_34 {dimension_numbers = #tpu.dot_dimension_numbers<[1], [0], [0], [1], [0, 0, 1, 1], [], []>} : vector<128x3xf32>, vector<3x16xf32>, vector<128x16xf32> -> vector<128x16xf32>
    %43 = arith.addf %36, %42 : vector<128x16xf32>
    %c0_35 = arith.constant 0 : index
    %c0_36 = arith.constant 0 : index
    %c1_37 = arith.constant 1 : index
    %c0_38 = arith.constant 0 : index
    %c0_39 = arith.constant 0 : index
    %44 = vector.load %arg1[%c0_35, %c0_36, %c1_37, %c0_38, %c0_39] : memref<4x2x9x9x3xf32, #tpu.memory_space<vmem>>, vector<1x2x8x8x3xf32>
    %45 = vector.shape_cast %44 : vector<1x2x8x8x3xf32> to vector<2x8x8x3xf32>
    %46 = vector.shape_cast %45 : vector<2x8x8x3xf32> to vector<128x3xf32>
    %47 = vector.extract_strided_slice %0 {offsets = [6, 0, 0], sizes = [1, 3, 16], strides = [1, 1, 1]} : vector<9x3x16xf32> to vector<1x3x16xf32>
    %48 = vector.shape_cast %47 : vector<1x3x16xf32> to vector<3x16xf32>
    %cst_40 = arith.constant dense<0.000000e+00> : vector<128x16xf32>
    %49 = tpu.matmul %46, %48, %cst_40 {dimension_numbers = #tpu.dot_dimension_numbers<[1], [0], [0], [1], [0, 0, 1, 1], [], []>} : vector<128x3xf32>, vector<3x16xf32>, vector<128x16xf32> -> vector<128x16xf32>
    %50 = arith.addf %43, %49 : vector<128x16xf32>
    %c1_41 = arith.constant 1 : index
    %c0_42 = arith.constant 0 : index
    %c1_43 = arith.constant 1 : index
    %c0_44 = arith.constant 0 : index
    %c0_45 = arith.constant 0 : index
    %51 = vector.load %arg1[%c1_41, %c0_42, %c1_43, %c0_44, %c0_45] : memref<4x2x9x9x3xf32, #tpu.memory_space<vmem>>, vector<1x2x8x8x3xf32>
    %52 = vector.shape_cast %51 : vector<1x2x8x8x3xf32> to vector<2x8x8x3xf32>
    %53 = vector.shape_cast %52 : vector<2x8x8x3xf32> to vector<128x3xf32>
    %54 = vector.extract_strided_slice %0 {offsets = [7, 0, 0], sizes = [1, 3, 16], strides = [1, 1, 1]} : vector<9x3x16xf32> to vector<1x3x16xf32>
    %55 = vector.shape_cast %54 : vector<1x3x16xf32> to vector<3x16xf32>
    %cst_46 = arith.constant dense<0.000000e+00> : vector<128x16xf32>
    %56 = tpu.matmul %53, %55, %cst_46 {dimension_numbers = #tpu.dot_dimension_numbers<[1], [0], [0], [1], [0, 0, 1, 1], [], []>} : vector<128x3xf32>, vector<3x16xf32>, vector<128x16xf32> -> vector<128x16xf32>
    %57 = arith.addf %50, %56 : vector<128x16xf32>
    %c0_47 = arith.constant 0 : index
    %c0_48 = arith.constant 0 : index
    %c1_49 = arith.constant 1 : index
    %c1_50 = arith.constant 1 : index
    %c0_51 = arith.constant 0 : index
    %58 = vector.load %arg1[%c0_47, %c0_48, %c1_49, %c1_50, %c0_51] : memref<4x2x9x9x3xf32, #tpu.memory_space<vmem>>, vector<1x2x8x8x3xf32>
    %59 = vector.shape_cast %58 : vector<1x2x8x8x3xf32> to vector<2x8x8x3xf32>
    %60 = vector.shape_cast %59 : vector<2x8x8x3xf32> to vector<128x3xf32>
    %61 = vector.extract_strided_slice %0 {offsets = [8, 0, 0], sizes = [1, 3, 16], strides = [1, 1, 1]} : vector<9x3x16xf32> to vector<1x3x16xf32>
    %62 = vector.shape_cast %61 : vector<1x3x16xf32> to vector<3x16xf32>
    %cst_52 = arith.constant dense<0.000000e+00> : vector<128x16xf32>
    %63 = tpu.matmul %60, %62, %cst_52 {dimension_numbers = #tpu.dot_dimension_numbers<[1], [0], [0], [1], [0, 0, 1, 1], [], []>} : vector<128x3xf32>, vector<3x16xf32>, vector<128x16xf32> -> vector<128x16xf32>
    %64 = arith.addf %57, %63 : vector<128x16xf32>
    %c0_53 = arith.constant 0 : index
    %c0_54 = arith.constant 0 : index
    %65 = vector.load %arg3[%c0_53, %c0_54] : memref<1x16xf32, #tpu.memory_space<vmem>>, vector<1x16xf32>
    %66 = vector.broadcast %65 : vector<1x16xf32> to vector<128x16xf32>
    %67 = arith.addf %64, %66 : vector<128x16xf32>
    %68 = arith.negf %67 : vector<128x16xf32>
    %69 = math.exp %68 : vector<128x16xf32>
    %cst_55 = arith.constant 1.000000e+00 : f32
    %70 = vector.broadcast %cst_55 : f32 to vector<128x16xf32>
    %71 = arith.addf %70, %69 : vector<128x16xf32>
    %72 = arith.divf %70, %71 : vector<128x16xf32>
    %73 = arith.mulf %67, %72 : vector<128x16xf32>
    %74 = arith.truncf %73 : vector<128x16xf32> to vector<128x16xbf16>
    %c0_56 = arith.constant 0 : index
    %c0_57 = arith.constant 0 : index
    %75 = vector.load %arg4[%c0_56, %c0_57] : memref<128x16xbf16, #tpu.memory_space<vmem>>, vector<128x16xbf16>
    tpu.vector_store %arg4[%c0_56, %c0_57], %74 {strides = array<i32>} : memref<128x16xbf16, #tpu.memory_space<vmem>>, vector<128x16xbf16>,
    return
  }
  func.func @transform_0(%arg0: i32) -> (i32, i32, i32, i32, i32) {
    %c0_i32 = arith.constant 0 : i32
    %c0_i32_0 = arith.constant 0 : i32
    %c0_i32_1 = arith.constant 0 : i32
    %c0_i32_2 = arith.constant 0 : i32
    %c0_i32_3 = arith.constant 0 : i32
    %c0_i32_4 = arith.constant 0 : i32
    return %c0_i32, %c0_i32_0, %c0_i32_1, %c0_i32_2, %c0_i32_3 : i32, i32, i32, i32, i32
  }
  func.func @transform_1(%arg0: i32) -> (i32, i32, i32) {
    %c0_i32 = arith.constant 0 : i32
    %c0_i32_0 = arith.constant 0 : i32
    %c0_i32_1 = arith.constant 0 : i32
    %c0_i32_2 = arith.constant 0 : i32
    return %c0_i32, %c0_i32_0, %c0_i32_1 : i32, i32, i32
  }
  func.func @transform_2(%arg0: i32) -> (i32, i32) {
    %c0_i32 = arith.constant 0 : i32
    %c0_i32_0 = arith.constant 0 : i32
    %c0_i32_1 = arith.constant 0 : i32
    return %c0_i32, %c0_i32_0 : i32, i32
  }
  func.func @transform_3(%arg0: i32) -> (i32, i32) {
    %c0_i32 = arith.constant 0 : i32
    %c0_i32_0 = arith.constant 0 : i32
    %c0_i32_1 = arith.constant 0 : i32
    return %c0_i32, %c0_i32_0 : i32, i32
  }
}

module attributes {stable_mosaic.version = 11 : i64} {
  func.func @_mbconv_kernel(%arg0: i32, %arg1: memref<128x16xbf16, #tpu.memory_space<vmem>>, %arg2: memref<16x64xbf16, #tpu.memory_space<vmem>>, %arg3: memref<1x64xf32, #tpu.memory_space<vmem>>, %arg4: memref<9x64xf32, #tpu.memory_space<vmem>>, %arg5: memref<1x64xf32, #tpu.memory_space<vmem>>, %arg6: memref<64x4xbf16, #tpu.memory_space<vmem>>, %arg7: memref<1x4xf32, #tpu.memory_space<vmem>>, %arg8: memref<4x64xbf16, #tpu.memory_space<vmem>>, %arg9: memref<1x64xf32, #tpu.memory_space<vmem>>, %arg10: memref<64x16xbf16, #tpu.memory_space<vmem>>, %arg11: memref<1x16xf32, #tpu.memory_space<vmem>>, %arg12: memref<128x16xbf16, #tpu.memory_space<vmem>>, %arg13: memref<2x10x10x64xf32, #tpu.memory_space<vmem>>) attributes {dimension_semantics = [#tpu.dimension_semantics<arbitrary>], iteration_bounds = array<i64: 1>, scalar_prefetch = 0 : i64, scratch_operands = 1 : i64, tpu.core_type = #tpu.core_type<tc>, window_params = [{pipeline_mode = #tpu.pipeline_mode<synchronous>, transform_indices = @transform_0, window_bounds = array<i64: 128, 16>}, {pipeline_mode = #tpu.pipeline_mode<synchronous>, transform_indices = @transform_1, window_bounds = array<i64: 16, 64>}, {pipeline_mode = #tpu.pipeline_mode<synchronous>, transform_indices = @transform_2, window_bounds = array<i64: 1, 64>}, {pipeline_mode = #tpu.pipeline_mode<synchronous>, transform_indices = @transform_3, window_bounds = array<i64: 9, 64>}, {pipeline_mode = #tpu.pipeline_mode<synchronous>, transform_indices = @transform_4, window_bounds = array<i64: 1, 64>}, {pipeline_mode = #tpu.pipeline_mode<synchronous>, transform_indices = @transform_5, window_bounds = array<i64: 64, 4>}, {pipeline_mode = #tpu.pipeline_mode<synchronous>, transform_indices = @transform_6, window_bounds = array<i64: 1, 4>}, {pipeline_mode = #tpu.pipeline_mode<synchronous>, transform_indices = @transform_7, window_bounds = array<i64: 4, 64>}, {pipeline_mode = #tpu.pipeline_mode<synchronous>, transform_indices = @transform_8, window_bounds = array<i64: 1, 64>}, {pipeline_mode = #tpu.pipeline_mode<synchronous>, transform_indices = @transform_9, window_bounds = array<i64: 64, 16>}, {pipeline_mode = #tpu.pipeline_mode<synchronous>, transform_indices = @transform_10, window_bounds = array<i64: 1, 16>}, {pipeline_mode = #tpu.pipeline_mode<synchronous>, transform_indices = @transform_11, window_bounds = array<i64: 128, 16>}]} {
    %c0 = arith.constant 0 : index
    %c0_0 = arith.constant 0 : index
    %0 = vector.load %arg1[%c0, %c0_0] : memref<128x16xbf16, #tpu.memory_space<vmem>>, vector<128x16xbf16>
    %c0_1 = arith.constant 0 : index
    %c0_2 = arith.constant 0 : index
    %1 = vector.load %arg2[%c0_1, %c0_2] : memref<16x64xbf16, #tpu.memory_space<vmem>>, vector<16x64xbf16>
    %cst = arith.constant dense<0.000000e+00> : vector<128x64xf32>
    %2 = tpu.matmul %0, %1, %cst {dimension_numbers = #tpu.dot_dimension_numbers<[1], [0], [0], [1], [0, 0, 1, 1], [], []>} : vector<128x16xbf16>, vector<16x64xbf16>, vector<128x64xf32> -> vector<128x64xf32>
    %c0_3 = arith.constant 0 : index
    %c0_4 = arith.constant 0 : index
    %3 = vector.load %arg3[%c0_3, %c0_4] : memref<1x64xf32, #tpu.memory_space<vmem>>, vector<1x64xf32>
    %4 = vector.broadcast %3 : vector<1x64xf32> to vector<128x64xf32>
    %5 = arith.addf %2, %4 : vector<128x64xf32>
    %6 = arith.negf %5 : vector<128x64xf32>
    %7 = math.exp %6 : vector<128x64xf32>
    %cst_5 = arith.constant 1.000000e+00 : f32
    %8 = vector.broadcast %cst_5 : f32 to vector<128x64xf32>
    %9 = arith.addf %8, %7 : vector<128x64xf32>
    %10 = arith.divf %8, %9 : vector<128x64xf32>
    %11 = arith.mulf %5, %10 : vector<128x64xf32>
    %cst_6 = arith.constant 0.000000e+00 : f32
    %12 = vector.broadcast %cst_6 : f32 to vector<2x10x10x64xf32>
    %c0_7 = arith.constant 0 : index
    %c0_8 = arith.constant 0 : index
    %c0_9 = arith.constant 0 : index
    %c0_10 = arith.constant 0 : index
    %13 = vector.load %arg13[%c0_7, %c0_8, %c0_9, %c0_10] : memref<2x10x10x64xf32, #tpu.memory_space<vmem>>, vector<2x10x10x64xf32>
    tpu.vector_store %arg13[%c0_7, %c0_8, %c0_9, %c0_10], %12 {strides = array<i32>} : memref<2x10x10x64xf32, #tpu.memory_space<vmem>>, vector<2x10x10x64xf32>,
    %14 = vector.shape_cast %11 : vector<128x64xf32> to vector<2x8x8x64xf32>
    %c0_11 = arith.constant 0 : index
    %c1 = arith.constant 1 : index
    %c1_12 = arith.constant 1 : index
    %c0_13 = arith.constant 0 : index
    %15 = vector.load %arg13[%c0_11, %c1, %c1_12, %c0_13] : memref<2x10x10x64xf32, #tpu.memory_space<vmem>>, vector<2x8x8x64xf32>
    tpu.vector_store %arg13[%c0_11, %c1, %c1_12, %c0_13], %14 {strides = array<i32>} : memref<2x10x10x64xf32, #tpu.memory_space<vmem>>, vector<2x8x8x64xf32>,
    %c0_14 = arith.constant 0 : index
    %c0_15 = arith.constant 0 : index
    %16 = vector.load %arg4[%c0_14, %c0_15] : memref<9x64xf32, #tpu.memory_space<vmem>>, vector<9x64xf32>
    %c0_16 = arith.constant 0 : index
    %c0_17 = arith.constant 0 : index
    %17 = vector.load %arg5[%c0_16, %c0_17] : memref<1x64xf32, #tpu.memory_space<vmem>>, vector<1x64xf32>
    %cst_18 = arith.constant 0.000000e+00 : f32
    %18 = vector.broadcast %cst_18 : f32 to vector<2x8x8x64xf32>
    %c0_19 = arith.constant 0 : index
    %c0_20 = arith.constant 0 : index
    %c0_21 = arith.constant 0 : index
    %c0_22 = arith.constant 0 : index
    %19 = vector.load %arg13[%c0_19, %c0_20, %c0_21, %c0_22] : memref<2x10x10x64xf32, #tpu.memory_space<vmem>>, vector<2x8x8x64xf32>
    %20 = vector.extract_strided_slice %16 {offsets = [0, 0], sizes = [1, 64], strides = [1, 1]} : vector<9x64xf32> to vector<1x64xf32>
    %21 = vector.shape_cast %20 : vector<1x64xf32> to vector<64xf32>
    %22 = vector.shape_cast %21 : vector<64xf32> to vector<1x1x1x64xf32>
    %23 = vector.broadcast %22 : vector<1x1x1x64xf32> to vector<2x8x8x64xf32>
    %24 = arith.mulf %19, %23 : vector<2x8x8x64xf32>
    %25 = arith.addf %18, %24 : vector<2x8x8x64xf32>
    %c0_23 = arith.constant 0 : index
    %c0_24 = arith.constant 0 : index
    %c1_25 = arith.constant 1 : index
    %c0_26 = arith.constant 0 : index
    %26 = vector.load %arg13[%c0_23, %c0_24, %c1_25, %c0_26] : memref<2x10x10x64xf32, #tpu.memory_space<vmem>>, vector<2x8x8x64xf32>
    %27 = vector.extract_strided_slice %16 {offsets = [1, 0], sizes = [1, 64], strides = [1, 1]} : vector<9x64xf32> to vector<1x64xf32>
    %28 = vector.shape_cast %27 : vector<1x64xf32> to vector<64xf32>
    %29 = vector.shape_cast %28 : vector<64xf32> to vector<1x1x1x64xf32>
    %30 = vector.broadcast %29 : vector<1x1x1x64xf32> to vector<2x8x8x64xf32>
    %31 = arith.mulf %26, %30 : vector<2x8x8x64xf32>
    %32 = arith.addf %25, %31 : vector<2x8x8x64xf32>
    %c0_27 = arith.constant 0 : index
    %c0_28 = arith.constant 0 : index
    %c2 = arith.constant 2 : index
    %c0_29 = arith.constant 0 : index
    %33 = vector.load %arg13[%c0_27, %c0_28, %c2, %c0_29] : memref<2x10x10x64xf32, #tpu.memory_space<vmem>>, vector<2x8x8x64xf32>
    %34 = vector.extract_strided_slice %16 {offsets = [2, 0], sizes = [1, 64], strides = [1, 1]} : vector<9x64xf32> to vector<1x64xf32>
    %35 = vector.shape_cast %34 : vector<1x64xf32> to vector<64xf32>
    %36 = vector.shape_cast %35 : vector<64xf32> to vector<1x1x1x64xf32>
    %37 = vector.broadcast %36 : vector<1x1x1x64xf32> to vector<2x8x8x64xf32>
    %38 = arith.mulf %33, %37 : vector<2x8x8x64xf32>
    %39 = arith.addf %32, %38 : vector<2x8x8x64xf32>
    %c0_30 = arith.constant 0 : index
    %c1_31 = arith.constant 1 : index
    %c0_32 = arith.constant 0 : index
    %c0_33 = arith.constant 0 : index
    %40 = vector.load %arg13[%c0_30, %c1_31, %c0_32, %c0_33] : memref<2x10x10x64xf32, #tpu.memory_space<vmem>>, vector<2x8x8x64xf32>
    %41 = vector.extract_strided_slice %16 {offsets = [3, 0], sizes = [1, 64], strides = [1, 1]} : vector<9x64xf32> to vector<1x64xf32>
    %42 = vector.shape_cast %41 : vector<1x64xf32> to vector<64xf32>
    %43 = vector.shape_cast %42 : vector<64xf32> to vector<1x1x1x64xf32>
    %44 = vector.broadcast %43 : vector<1x1x1x64xf32> to vector<2x8x8x64xf32>
    %45 = arith.mulf %40, %44 : vector<2x8x8x64xf32>
    %46 = arith.addf %39, %45 : vector<2x8x8x64xf32>
    %c0_34 = arith.constant 0 : index
    %c1_35 = arith.constant 1 : index
    %c1_36 = arith.constant 1 : index
    %c0_37 = arith.constant 0 : index
    %47 = vector.load %arg13[%c0_34, %c1_35, %c1_36, %c0_37] : memref<2x10x10x64xf32, #tpu.memory_space<vmem>>, vector<2x8x8x64xf32>
    %48 = vector.extract_strided_slice %16 {offsets = [4, 0], sizes = [1, 64], strides = [1, 1]} : vector<9x64xf32> to vector<1x64xf32>
    %49 = vector.shape_cast %48 : vector<1x64xf32> to vector<64xf32>
    %50 = vector.shape_cast %49 : vector<64xf32> to vector<1x1x1x64xf32>
    %51 = vector.broadcast %50 : vector<1x1x1x64xf32> to vector<2x8x8x64xf32>
    %52 = arith.mulf %47, %51 : vector<2x8x8x64xf32>
    %53 = arith.addf %46, %52 : vector<2x8x8x64xf32>
    %c0_38 = arith.constant 0 : index
    %c1_39 = arith.constant 1 : index
    %c2_40 = arith.constant 2 : index
    %c0_41 = arith.constant 0 : index
    %54 = vector.load %arg13[%c0_38, %c1_39, %c2_40, %c0_41] : memref<2x10x10x64xf32, #tpu.memory_space<vmem>>, vector<2x8x8x64xf32>
    %55 = vector.extract_strided_slice %16 {offsets = [5, 0], sizes = [1, 64], strides = [1, 1]} : vector<9x64xf32> to vector<1x64xf32>
    %56 = vector.shape_cast %55 : vector<1x64xf32> to vector<64xf32>
    %57 = vector.shape_cast %56 : vector<64xf32> to vector<1x1x1x64xf32>
    %58 = vector.broadcast %57 : vector<1x1x1x64xf32> to vector<2x8x8x64xf32>
    %59 = arith.mulf %54, %58 : vector<2x8x8x64xf32>
    %60 = arith.addf %53, %59 : vector<2x8x8x64xf32>
    %c0_42 = arith.constant 0 : index
    %c2_43 = arith.constant 2 : index
    %c0_44 = arith.constant 0 : index
    %c0_45 = arith.constant 0 : index
    %61 = vector.load %arg13[%c0_42, %c2_43, %c0_44, %c0_45] : memref<2x10x10x64xf32, #tpu.memory_space<vmem>>, vector<2x8x8x64xf32>
    %62 = vector.extract_strided_slice %16 {offsets = [6, 0], sizes = [1, 64], strides = [1, 1]} : vector<9x64xf32> to vector<1x64xf32>
    %63 = vector.shape_cast %62 : vector<1x64xf32> to vector<64xf32>
    %64 = vector.shape_cast %63 : vector<64xf32> to vector<1x1x1x64xf32>
    %65 = vector.broadcast %64 : vector<1x1x1x64xf32> to vector<2x8x8x64xf32>
    %66 = arith.mulf %61, %65 : vector<2x8x8x64xf32>
    %67 = arith.addf %60, %66 : vector<2x8x8x64xf32>
    %c0_46 = arith.constant 0 : index
    %c2_47 = arith.constant 2 : index
    %c1_48 = arith.constant 1 : index
    %c0_49 = arith.constant 0 : index
    %68 = vector.load %arg13[%c0_46, %c2_47, %c1_48, %c0_49] : memref<2x10x10x64xf32, #tpu.memory_space<vmem>>, vector<2x8x8x64xf32>
    %69 = vector.extract_strided_slice %16 {offsets = [7, 0], sizes = [1, 64], strides = [1, 1]} : vector<9x64xf32> to vector<1x64xf32>
    %70 = vector.shape_cast %69 : vector<1x64xf32> to vector<64xf32>
    %71 = vector.shape_cast %70 : vector<64xf32> to vector<1x1x1x64xf32>
    %72 = vector.broadcast %71 : vector<1x1x1x64xf32> to vector<2x8x8x64xf32>
    %73 = arith.mulf %68, %72 : vector<2x8x8x64xf32>
    %74 = arith.addf %67, %73 : vector<2x8x8x64xf32>
    %c0_50 = arith.constant 0 : index
    %c2_51 = arith.constant 2 : index
    %c2_52 = arith.constant 2 : index
    %c0_53 = arith.constant 0 : index
    %75 = vector.load %arg13[%c0_50, %c2_51, %c2_52, %c0_53] : memref<2x10x10x64xf32, #tpu.memory_space<vmem>>, vector<2x8x8x64xf32>
    %76 = vector.extract_strided_slice %16 {offsets = [8, 0], sizes = [1, 64], strides = [1, 1]} : vector<9x64xf32> to vector<1x64xf32>
    %77 = vector.shape_cast %76 : vector<1x64xf32> to vector<64xf32>
    %78 = vector.shape_cast %77 : vector<64xf32> to vector<1x1x1x64xf32>
    %79 = vector.broadcast %78 : vector<1x1x1x64xf32> to vector<2x8x8x64xf32>
    %80 = arith.mulf %75, %79 : vector<2x8x8x64xf32>
    %81 = arith.addf %74, %80 : vector<2x8x8x64xf32>
    %82 = vector.shape_cast %17 : vector<1x64xf32> to vector<1x1x1x64xf32>
    %83 = vector.broadcast %82 : vector<1x1x1x64xf32> to vector<2x8x8x64xf32>
    %84 = arith.addf %81, %83 : vector<2x8x8x64xf32>
    %85 = arith.negf %84 : vector<2x8x8x64xf32>
    %86 = math.exp %85 : vector<2x8x8x64xf32>
    %cst_54 = arith.constant 1.000000e+00 : f32
    %87 = vector.broadcast %cst_54 : f32 to vector<2x8x8x64xf32>
    %88 = arith.addf %87, %86 : vector<2x8x8x64xf32>
    %89 = arith.divf %87, %88 : vector<2x8x8x64xf32>
    %90 = arith.mulf %84, %89 : vector<2x8x8x64xf32>
    %91 = vector.shape_cast %90 : vector<2x8x8x64xf32> to vector<2x64x64xf32>
    %cst_55 = arith.constant dense<0.000000e+00> : vector<2x64xf32>
    %92 = vector.multi_reduction <add>, %91, %cst_55 [1] : vector<2x64x64xf32> to vector<2x64xf32>
    %cst_56 = arith.constant 6.400000e+01 : f32
    %93 = vector.broadcast %cst_56 : f32 to vector<2x64xf32>
    %94 = arith.divf %92, %93 : vector<2x64xf32>
    %95 = arith.truncf %94 : vector<2x64xf32> to vector<2x64xbf16>
    %c0_57 = arith.constant 0 : index
    %c0_58 = arith.constant 0 : index
    %96 = vector.load %arg6[%c0_57, %c0_58] : memref<64x4xbf16, #tpu.memory_space<vmem>>, vector<64x4xbf16>
    %cst_59 = arith.constant dense<0.000000e+00> : vector<2x4xf32>
    %97 = tpu.matmul %95, %96, %cst_59 {dimension_numbers = #tpu.dot_dimension_numbers<[1], [0], [0], [1], [0, 0, 1, 1], [], []>} : vector<2x64xbf16>, vector<64x4xbf16>, vector<2x4xf32> -> vector<2x4xf32>
    %c0_60 = arith.constant 0 : index
    %c0_61 = arith.constant 0 : index
    %98 = vector.load %arg7[%c0_60, %c0_61] : memref<1x4xf32, #tpu.memory_space<vmem>>, vector<1x4xf32>
    %99 = vector.broadcast %98 : vector<1x4xf32> to vector<2x4xf32>
    %100 = arith.addf %97, %99 : vector<2x4xf32>
    %101 = arith.negf %100 : vector<2x4xf32>
    %102 = math.exp %101 : vector<2x4xf32>
    %cst_62 = arith.constant 1.000000e+00 : f32
    %103 = vector.broadcast %cst_62 : f32 to vector<2x4xf32>
    %104 = arith.addf %103, %102 : vector<2x4xf32>
    %105 = arith.divf %103, %104 : vector<2x4xf32>
    %106 = arith.mulf %100, %105 : vector<2x4xf32>
    %107 = arith.truncf %106 : vector<2x4xf32> to vector<2x4xbf16>
    %c0_63 = arith.constant 0 : index
    %c0_64 = arith.constant 0 : index
    %108 = vector.load %arg8[%c0_63, %c0_64] : memref<4x64xbf16, #tpu.memory_space<vmem>>, vector<4x64xbf16>
    %cst_65 = arith.constant dense<0.000000e+00> : vector<2x64xf32>
    %109 = tpu.matmul %107, %108, %cst_65 {dimension_numbers = #tpu.dot_dimension_numbers<[1], [0], [0], [1], [0, 0, 1, 1], [], []>} : vector<2x4xbf16>, vector<4x64xbf16>, vector<2x64xf32> -> vector<2x64xf32>
    %c0_66 = arith.constant 0 : index
    %c0_67 = arith.constant 0 : index
    %110 = vector.load %arg9[%c0_66, %c0_67] : memref<1x64xf32, #tpu.memory_space<vmem>>, vector<1x64xf32>
    %111 = vector.broadcast %110 : vector<1x64xf32> to vector<2x64xf32>
    %112 = arith.addf %109, %111 : vector<2x64xf32>
    %113 = arith.negf %112 : vector<2x64xf32>
    %114 = math.exp %113 : vector<2x64xf32>
    %cst_68 = arith.constant 1.000000e+00 : f32
    %115 = vector.broadcast %cst_68 : f32 to vector<2x64xf32>
    %116 = arith.addf %115, %114 : vector<2x64xf32>
    %117 = arith.divf %115, %116 : vector<2x64xf32>
    %118 = vector.shape_cast %117 : vector<2x64xf32> to vector<2x1x1x64xf32>
    %119 = vector.broadcast %118 : vector<2x1x1x64xf32> to vector<2x8x8x64xf32>
    %120 = arith.mulf %90, %119 : vector<2x8x8x64xf32>
    %121 = vector.shape_cast %120 : vector<2x8x8x64xf32> to vector<128x64xf32>
    %122 = arith.truncf %121 : vector<128x64xf32> to vector<128x64xbf16>
    %c0_69 = arith.constant 0 : index
    %c0_70 = arith.constant 0 : index
    %123 = vector.load %arg10[%c0_69, %c0_70] : memref<64x16xbf16, #tpu.memory_space<vmem>>, vector<64x16xbf16>
    %cst_71 = arith.constant dense<0.000000e+00> : vector<128x16xf32>
    %124 = tpu.matmul %122, %123, %cst_71 {dimension_numbers = #tpu.dot_dimension_numbers<[1], [0], [0], [1], [0, 0, 1, 1], [], []>} : vector<128x64xbf16>, vector<64x16xbf16>, vector<128x16xf32> -> vector<128x16xf32>
    %c0_72 = arith.constant 0 : index
    %c0_73 = arith.constant 0 : index
    %125 = vector.load %arg11[%c0_72, %c0_73] : memref<1x16xf32, #tpu.memory_space<vmem>>, vector<1x16xf32>
    %126 = vector.broadcast %125 : vector<1x16xf32> to vector<128x16xf32>
    %127 = arith.addf %124, %126 : vector<128x16xf32>
    %128 = arith.extf %0 : vector<128x16xbf16> to vector<128x16xf32>
    %129 = arith.addf %127, %128 : vector<128x16xf32>
    %130 = arith.truncf %129 : vector<128x16xf32> to vector<128x16xbf16>
    %c0_74 = arith.constant 0 : index
    %c0_75 = arith.constant 0 : index
    %131 = vector.load %arg12[%c0_74, %c0_75] : memref<128x16xbf16, #tpu.memory_space<vmem>>, vector<128x16xbf16>
    tpu.vector_store %arg12[%c0_74, %c0_75], %130 {strides = array<i32>} : memref<128x16xbf16, #tpu.memory_space<vmem>>, vector<128x16xbf16>,
    return
  }
  func.func @transform_0(%arg0: i32) -> (i32, i32) {
    %c0_i32 = arith.constant 0 : i32
    %c0_i32_0 = arith.constant 0 : i32
    %c0_i32_1 = arith.constant 0 : i32
    return %c0_i32, %c0_i32_0 : i32, i32
  }
  func.func @transform_1(%arg0: i32) -> (i32, i32) {
    %c0_i32 = arith.constant 0 : i32
    %c0_i32_0 = arith.constant 0 : i32
    %c0_i32_1 = arith.constant 0 : i32
    return %c0_i32, %c0_i32_0 : i32, i32
  }
  func.func @transform_2(%arg0: i32) -> (i32, i32) {
    %c0_i32 = arith.constant 0 : i32
    %c0_i32_0 = arith.constant 0 : i32
    %c0_i32_1 = arith.constant 0 : i32
    return %c0_i32, %c0_i32_0 : i32, i32
  }
  func.func @transform_3(%arg0: i32) -> (i32, i32) {
    %c0_i32 = arith.constant 0 : i32
    %c0_i32_0 = arith.constant 0 : i32
    %c0_i32_1 = arith.constant 0 : i32
    return %c0_i32, %c0_i32_0 : i32, i32
  }
  func.func @transform_4(%arg0: i32) -> (i32, i32) {
    %c0_i32 = arith.constant 0 : i32
    %c0_i32_0 = arith.constant 0 : i32
    %c0_i32_1 = arith.constant 0 : i32
    return %c0_i32, %c0_i32_0 : i32, i32
  }
  func.func @transform_5(%arg0: i32) -> (i32, i32) {
    %c0_i32 = arith.constant 0 : i32
    %c0_i32_0 = arith.constant 0 : i32
    %c0_i32_1 = arith.constant 0 : i32
    return %c0_i32, %c0_i32_0 : i32, i32
  }
  func.func @transform_6(%arg0: i32) -> (i32, i32) {
    %c0_i32 = arith.constant 0 : i32
    %c0_i32_0 = arith.constant 0 : i32
    %c0_i32_1 = arith.constant 0 : i32
    return %c0_i32, %c0_i32_0 : i32, i32
  }
  func.func @transform_7(%arg0: i32) -> (i32, i32) {
    %c0_i32 = arith.constant 0 : i32
    %c0_i32_0 = arith.constant 0 : i32
    %c0_i32_1 = arith.constant 0 : i32
    return %c0_i32, %c0_i32_0 : i32, i32
  }
  func.func @transform_8(%arg0: i32) -> (i32, i32) {
    %c0_i32 = arith.constant 0 : i32
    %c0_i32_0 = arith.constant 0 : i32
    %c0_i32_1 = arith.constant 0 : i32
    return %c0_i32, %c0_i32_0 : i32, i32
  }
  func.func @transform_9(%arg0: i32) -> (i32, i32) {
    %c0_i32 = arith.constant 0 : i32
    %c0_i32_0 = arith.constant 0 : i32
    %c0_i32_1 = arith.constant 0 : i32
    return %c0_i32, %c0_i32_0 : i32, i32
  }
  func.func @transform_10(%arg0: i32) -> (i32, i32) {
    %c0_i32 = arith.constant 0 : i32
    %c0_i32_0 = arith.constant 0 : i32
    %c0_i32_1 = arith.constant 0 : i32
    return %c0_i32, %c0_i32_0 : i32, i32
  }
  func.func @transform_11(%arg0: i32) -> (i32, i32) {
    %c0_i32 = arith.constant 0 : i32
    %c0_i32_0 = arith.constant 0 : i32
    %c0_i32_1 = arith.constant 0 : i32
    return %c0_i32, %c0_i32_0 : i32, i32
  }
}

module attributes {stable_mosaic.version = 11 : i64} {
  func.func @_tail_kernel(%arg0: i32, %arg1: memref<128x16xbf16, #tpu.memory_space<vmem>>, %arg2: memref<16x64xbf16, #tpu.memory_space<vmem>>, %arg3: memref<1x64xf32, #tpu.memory_space<vmem>>, %arg4: memref<64x5xbf16, #tpu.memory_space<vmem>>, %arg5: memref<1x5xf32, #tpu.memory_space<vmem>>, %arg6: memref<2x5xf32, #tpu.memory_space<vmem>>) attributes {dimension_semantics = [#tpu.dimension_semantics<arbitrary>], iteration_bounds = array<i64: 1>, scalar_prefetch = 0 : i64, scratch_operands = 0 : i64, tpu.core_type = #tpu.core_type<tc>, window_params = [{pipeline_mode = #tpu.pipeline_mode<synchronous>, transform_indices = @transform_0, window_bounds = array<i64: 128, 16>}, {pipeline_mode = #tpu.pipeline_mode<synchronous>, transform_indices = @transform_1, window_bounds = array<i64: 16, 64>}, {pipeline_mode = #tpu.pipeline_mode<synchronous>, transform_indices = @transform_2, window_bounds = array<i64: 1, 64>}, {pipeline_mode = #tpu.pipeline_mode<synchronous>, transform_indices = @transform_3, window_bounds = array<i64: 64, 5>}, {pipeline_mode = #tpu.pipeline_mode<synchronous>, transform_indices = @transform_4, window_bounds = array<i64: 1, 5>}, {pipeline_mode = #tpu.pipeline_mode<synchronous>, transform_indices = @transform_5, window_bounds = array<i64: 2, 5>}]} {
    %c0 = arith.constant 0 : index
    %c0_0 = arith.constant 0 : index
    %0 = vector.load %arg1[%c0, %c0_0] : memref<128x16xbf16, #tpu.memory_space<vmem>>, vector<128x16xbf16>
    %c0_1 = arith.constant 0 : index
    %c0_2 = arith.constant 0 : index
    %1 = vector.load %arg2[%c0_1, %c0_2] : memref<16x64xbf16, #tpu.memory_space<vmem>>, vector<16x64xbf16>
    %cst = arith.constant dense<0.000000e+00> : vector<128x64xf32>
    %2 = tpu.matmul %0, %1, %cst {dimension_numbers = #tpu.dot_dimension_numbers<[1], [0], [0], [1], [0, 0, 1, 1], [], []>} : vector<128x16xbf16>, vector<16x64xbf16>, vector<128x64xf32> -> vector<128x64xf32>
    %c0_3 = arith.constant 0 : index
    %c0_4 = arith.constant 0 : index
    %3 = vector.load %arg3[%c0_3, %c0_4] : memref<1x64xf32, #tpu.memory_space<vmem>>, vector<1x64xf32>
    %4 = vector.broadcast %3 : vector<1x64xf32> to vector<128x64xf32>
    %5 = arith.addf %2, %4 : vector<128x64xf32>
    %6 = arith.negf %5 : vector<128x64xf32>
    %7 = math.exp %6 : vector<128x64xf32>
    %cst_5 = arith.constant 1.000000e+00 : f32
    %8 = vector.broadcast %cst_5 : f32 to vector<128x64xf32>
    %9 = arith.addf %8, %7 : vector<128x64xf32>
    %10 = arith.divf %8, %9 : vector<128x64xf32>
    %11 = arith.mulf %5, %10 : vector<128x64xf32>
    %12 = vector.shape_cast %11 : vector<128x64xf32> to vector<2x64x64xf32>
    %cst_6 = arith.constant dense<0.000000e+00> : vector<2x64xf32>
    %13 = vector.multi_reduction <add>, %12, %cst_6 [1] : vector<2x64x64xf32> to vector<2x64xf32>
    %cst_7 = arith.constant 6.400000e+01 : f32
    %14 = vector.broadcast %cst_7 : f32 to vector<2x64xf32>
    %15 = arith.divf %13, %14 : vector<2x64xf32>
    %16 = arith.truncf %15 : vector<2x64xf32> to vector<2x64xbf16>
    %c0_8 = arith.constant 0 : index
    %c0_9 = arith.constant 0 : index
    %17 = vector.load %arg4[%c0_8, %c0_9] : memref<64x5xbf16, #tpu.memory_space<vmem>>, vector<64x5xbf16>
    %cst_10 = arith.constant dense<0.000000e+00> : vector<2x5xf32>
    %18 = tpu.matmul %16, %17, %cst_10 {dimension_numbers = #tpu.dot_dimension_numbers<[1], [0], [0], [1], [0, 0, 1, 1], [], []>} : vector<2x64xbf16>, vector<64x5xbf16>, vector<2x5xf32> -> vector<2x5xf32>
    %c0_11 = arith.constant 0 : index
    %c0_12 = arith.constant 0 : index
    %19 = vector.load %arg5[%c0_11, %c0_12] : memref<1x5xf32, #tpu.memory_space<vmem>>, vector<1x5xf32>
    %20 = vector.broadcast %19 : vector<1x5xf32> to vector<2x5xf32>
    %21 = arith.addf %18, %20 : vector<2x5xf32>
    %22 = arith.negf %21 : vector<2x5xf32>
    %23 = math.exp %22 : vector<2x5xf32>
    %cst_13 = arith.constant 1.000000e+00 : f32
    %24 = vector.broadcast %cst_13 : f32 to vector<2x5xf32>
    %25 = arith.addf %24, %23 : vector<2x5xf32>
    %26 = arith.divf %24, %25 : vector<2x5xf32>
    %c0_14 = arith.constant 0 : index
    %c0_15 = arith.constant 0 : index
    %27 = vector.load %arg6[%c0_14, %c0_15] : memref<2x5xf32, #tpu.memory_space<vmem>>, vector<2x5xf32>
    tpu.vector_store %arg6[%c0_14, %c0_15], %26 {strides = array<i32>} : memref<2x5xf32, #tpu.memory_space<vmem>>, vector<2x5xf32>,
    return
  }
  func.func @transform_0(%arg0: i32) -> (i32, i32) {
    %c0_i32 = arith.constant 0 : i32
    %c0_i32_0 = arith.constant 0 : i32
    %c0_i32_1 = arith.constant 0 : i32
    return %c0_i32, %c0_i32_0 : i32, i32
  }
  func.func @transform_1(%arg0: i32) -> (i32, i32) {
    %c0_i32 = arith.constant 0 : i32
    %c0_i32_0 = arith.constant 0 : i32
    %c0_i32_1 = arith.constant 0 : i32
    return %c0_i32, %c0_i32_0 : i32, i32
  }
  func.func @transform_2(%arg0: i32) -> (i32, i32) {
    %c0_i32 = arith.constant 0 : i32
    %c0_i32_0 = arith.constant 0 : i32
    %c0_i32_1 = arith.constant 0 : i32
    return %c0_i32, %c0_i32_0 : i32, i32
  }
  func.func @transform_3(%arg0: i32) -> (i32, i32) {
    %c0_i32 = arith.constant 0 : i32
    %c0_i32_0 = arith.constant 0 : i32
    %c0_i32_1 = arith.constant 0 : i32
    return %c0_i32, %c0_i32_0 : i32, i32
  }
  func.func @transform_4(%arg0: i32) -> (i32, i32) {
    %c0_i32 = arith.constant 0 : i32
    %c0_i32_0 = arith.constant 0 : i32
    %c0_i32_1 = arith.constant 0 : i32
    return %c0_i32, %c0_i32_0 : i32, i32
  }
  func.func @transform_5(%arg0: i32) -> (i32, i32) {
    %c0_i32 = arith.constant 0 : i32
    %c0_i32_0 = arith.constant 0 : i32
    %c0_i32_1 = arith.constant 0 : i32
    return %c0_i32, %c0_i32_0 : i32, i32
  }
}

</mosaic_0001>

<llo_original>
// kernel: effnet_forward.5
$region0: #{effnet_forward.5}
  #allocation0 [shape = 'u32[]', space=smem, size = 0x4, offset = 0x4, fixed_abs, tag = 'smem constant byte address 0x4 - core index']
  #allocation1 [shape = 'u32[144,128]{1,0:T(1,128)}', space=vmem, size = 0x12000, scoped, tag = 'internal scratch']
  %s0 = inlined_call_operand.vmem [shape: bf16[128,16], index: 0, kind: input, shape index: {}]
  %s1 = inlined_call_operand.vmem [shape: bf16[16,64], index: 1, kind: input, shape index: {}]
  %s2 = inlined_call_operand.vmem [shape: f32[1,64], index: 2, kind: input, shape index: {}]
  %s3 = inlined_call_operand.vmem [shape: bf16[64,5], index: 3, kind: input, shape index: {}]
  %s4 = inlined_call_operand.vmem [shape: f32[1,5], index: 4, kind: input, shape index: {}]
  %s5 = inlined_call_operand.hbm [shape: f32[2,5], index: 5, kind: output, shape index: {}]
  %s6 = sld [smem:[#allocation0]]
  $region30: #{effnet_forward.5} parent=0
    _
  %s8 = ssub.s32 1, %s6
  %s9 = scalar_select 0, %s8, %s6
  $region1: #{effnet_forward.5} parent=0
    #allocation2 [shape = 'u8[1024]{0}', space=vmem, size = 0x400, scoped, tag = 'output window, operand 0, single buffered']
    #allocation3 [shape = 's32[1]{0}', space=sflag, size = 0x4, scoped, tag = 'scoped memory for effnet_forward.5']
    %10 = vsyncpa [#allocation3], 0
    // Predicated region
    $region2: #{effnet_forward.5} parent=1 // pred_check
      _
    $region3: #{effnet_forward.5} parent=1 // pred_check_branch
      %12 = sbr.rel (0) target = $region5
    $region4: #{effnet_forward.5} parent=1 // pred_region
      _
    $region5: #{effnet_forward.5} parent=1 // pred_fallthru
      _
    // Predicated region
    $region6: #{effnet_forward.5} parent=1 // pred_check
      _
    $region7: #{effnet_forward.5} parent=1 // pred_check_branch
      %14 = sbr.rel (0) target = $region9
    $region8: #{effnet_forward.5} parent=1 // pred_region
      _
    $region9: #{effnet_forward.5} parent=1 // pred_fallthru
      _
    // Predicated region
    $region10: #{effnet_forward.5} parent=1 // pred_check
      _
    $region11: #{effnet_forward.5} parent=1 // pred_check_branch
      %16 = sbr.rel (0) target = $region13
    $region12: #{effnet_forward.5} parent=1 // pred_region
      _
    $region13: #{effnet_forward.5} parent=1 // pred_fallthru
      _
    // Predicated region
    $region14: #{effnet_forward.5} parent=1 // pred_check
      _
    $region15: #{effnet_forward.5} parent=1 // pred_check_branch
      %18 = sbr.rel (0) target = $region17
    $region16: #{effnet_forward.5} parent=1 // pred_region
      _
    $region17: #{effnet_forward.5} parent=1 // pred_fallthru
      _
    // Predicated region
    $region18: #{effnet_forward.5} parent=1 // pred_check
      _
    $region19: #{effnet_forward.5} parent=1 // pred_check_branch
      %20 = sbr.rel (0) target = $region21
    $region20: #{effnet_forward.5} parent=1 // pred_region
      _
    $region21: #{effnet_forward.5} parent=1 // pred_fallthru
      _
    %v22 = vld [vmem:[%s0] sm:$0xf]
    %v23 = vld [vmem:[%s0 + $0x4] sm:$0xf]
    %v24 = vld [vmem:[%s0 + $0x8] sm:$0xf]
    %v25 = vld [vmem:[%s0 + $0xc] sm:$0xf]
    %v26 = vld [vmem:[%s0 + $0x10] sm:$0xf]
    %v27 = vld [vmem:[%s0 + $0x14] sm:$0xf]
    %v28 = vld [vmem:[%s0 + $0x18] sm:$0xf]
    %v29 = vld [vmem:[%s0 + $0x1c] sm:$0xf]
    %v30 = vld [vmem:[%s0 + $0x20] sm:$0xf]
    %v31 = vld [vmem:[%s0 + $0x24] sm:$0xf]
    %v32 = vld [vmem:[%s0 + $0x28] sm:$0xf]
    %v33 = vld [vmem:[%s0 + $0x2c] sm:$0xf]
    %v34 = vld [vmem:[%s0 + $0x30] sm:$0xf]
    %v35 = vld [vmem:[%s0 + $0x34] sm:$0xf]
    %v36 = vld [vmem:[%s0 + $0x38] sm:$0xf]
    %v37 = vld [vmem:[%s0 + $0x3c] sm:$0xf]
    %v38 = vld [vmem:[%s1] sm:$0xf]
    %v39 = vld [vmem:[%s1 + $0x4] sm:$0xf]
    %v40 = vld [vmem:[%s2] sm:$0x1]
    %v42 = vlaneseq
    %v43 = vshrl.u32 %v42, 7
    %v44 = vsub.s32 0, %v43
    %v45 = vrot.slane %v40, %v44
    %v63 = vunpack.c.l.b16 %v22
    %v64 = vunpack.c.l.b16 %v23
    %v65 = vunpack.c.l.b16 %v24
    %v66 = vunpack.c.l.b16 %v25
    %v67 = vunpack.c.l.b16 %v26
    %v68 = vunpack.c.l.b16 %v27
    %v69 = vunpack.c.l.b16 %v28
    %v70 = vunpack.c.l.b16 %v29
    %v71 = vunpack.c.l.b16 %v30
    %v72 = vunpack.c.l.b16 %v31
    %v73 = vunpack.c.l.b16 %v32
    %v74 = vunpack.c.l.b16 %v33
    %v75 = vunpack.c.l.b16 %v34
    %v76 = vunpack.c.l.b16 %v35
    %v77 = vunpack.c.l.b16 %v36
    %v78 = vunpack.c.l.b16 %v37
    %v79 = vpack.c.b16 %v64, %v63
    %v80 = vpack.c.b16 %v66, %v65
    %v81 = vpack.c.b16 %v68, %v67
    %v82 = vpack.c.b16 %v70, %v69
    %v83 = vpack.c.b16 %v72, %v71
    %v84 = vpack.c.b16 %v74, %v73
    %v85 = vpack.c.b16 %v76, %v75
    %v86 = vpack.c.b16 %v78, %v77
    %v89 = vunpack.c.l.b16 %v38
    %v90 = vunpack.c.l.b16 %v39
    %v91 = vpack.c.b16 %v90, %v89
    %vm93 = vcmask 130048
    %v95 = vsel %vm93, %v79, 0
    %v98 = vsel %vm93, %v80, 0
    %v101 = vsel %vm93, %v81, 0
    %v104 = vsel %vm93, %v82, 0
    %v107 = vsel %vm93, %v83, 0
    %v110 = vsel %vm93, %v84, 0
    %v113 = vsel %vm93, %v85, 0
    %v116 = vsel %vm93, %v86, 0
    %118 = vmatprep.subr.bf16.mxu0 0
    %119 = vmatpush1.bf16.msra.mxu0 %v91
    %120 = vmatprep.subr.bf16.mxu0 0
    %121 = vmatpush1.bf16.msra.mxu0 0
    %122 = vmatprep.subr.bf16.mxu0 0
    %123 = vmatpush1.bf16.msra.mxu0 0
    %124 = vmatprep.subr.bf16.mxu0 0
    %125 = vmatpush1.bf16.msra.mxu0 0
    %126 = vmatprep.subr.bf16.mxu0 0
    %127 = vmatpush1.bf16.msra.mxu0 0
    %128 = vmatprep.subr.bf16.mxu0 0
    %129 = vmatpush1.bf16.msra.mxu0 0
    %130 = vmatprep.subr.bf16.mxu0 0
    %131 = vmatpush1.bf16.msra.mxu0 0
    %132 = vmatprep.subr.bf16.mxu0 0
    %133 = vmatpush1.bf16.msra.mxu0 0
    %134 = vmatprep.subr.bf16.mxu0 0
    %135 = vmatpush1.bf16.msra.mxu0 0
    %136 = vmatprep.subr.bf16.mxu0 0
    %137 = vmatpush1.bf16.msra.mxu0 0
    %138 = vmatprep.subr.bf16.mxu0 0
    %139 = vmatpush1.bf16.msra.mxu0 0
    %140 = vmatprep.subr.bf16.mxu0 0
    %141 = vmatpush1.bf16.msra.mxu0 0
    %142 = vmatprep.subr.bf16.mxu0 0
    %143 = vmatpush1.bf16.msra.mxu0 0
    %144 = vmatprep.subr.bf16.mxu0 0
    %145 = vmatpush1.bf16.msra.mxu0 0
    %146 = vmatprep.subr.bf16.mxu0 0
    %147 = vmatpush1.bf16.msra.mxu0 0
    %148 = vmatprep.subr.bf16.mxu0 0
    %149 = vmatpush1.bf16.msra.mxu0 0
    %150 = vmatprep.mubr.bf16.mxu0 0
    %151 = vmatmul.mubr.bf16.gmra.mrb[0].mxu0 %v95
    %v152 = vpop.f32.mrb[0].mxu0
    %v153 = vadd.f32 %v45, %v152
    %v154 = vpop.f32.mrb[0].mxu0
    %v155 = vpop.f32.mrb[0].mxu0
    %v156 = vadd.f32 %v45, %v155
    %v157 = vpop.f32.mrb[0].mxu0
    %158 = vmatprep.mubr.bf16.mxu0 0
    %159 = vmatmul.mubr.bf16.gmra.mrb[0].mxu0 %v98
    %v160 = vpop.f32.mrb[0].mxu0
    %v161 = vadd.f32 %v45, %v160
    %v162 = vpop.f32.mrb[0].mxu0
    %v163 = vpop.f32.mrb[0].mxu0
    %v164 = vadd.f32 %v45, %v163
    %v165 = vpop.f32.mrb[0].mxu0
    %166 = vmatprep.mubr.bf16.mxu0 0
    %167 = vmatmul.mubr.bf16.gmra.mrb[0].mxu0 %v101
    %v168 = vpop.f32.mrb[0].mxu0
    %v169 = vadd.f32 %v45, %v168
    %v170 = vpop.f32.mrb[0].mxu0
    %v171 = vpop.f32.mrb[0].mxu0
    %v172 = vadd.f32 %v45, %v171
    %v173 = vpop.f32.mrb[0].mxu0
    %174 = vmatprep.mubr.bf16.mxu0 0
    %175 = vmatmul.mubr.bf16.gmra.mrb[0].mxu0 %v104
    %v176 = vpop.f32.mrb[0].mxu0
    %v177 = vadd.f32 %v45, %v176
    %v178 = vpop.f32.mrb[0].mxu0
    %v179 = vpop.f32.mrb[0].mxu0
    %v180 = vadd.f32 %v45, %v179
    %v181 = vpop.f32.mrb[0].mxu0
    %182 = vmatprep.mubr.bf16.mxu0 0
    %183 = vmatmul.mubr.bf16.gmra.mrb[0].mxu0 %v107
    %v184 = vpop.f32.mrb[0].mxu0
    %v185 = vadd.f32 %v45, %v184
    %v186 = vpop.f32.mrb[0].mxu0
    %v187 = vpop.f32.mrb[0].mxu0
    %v188 = vadd.f32 %v45, %v187
    %v189 = vpop.f32.mrb[0].mxu0
    %190 = vmatprep.mubr.bf16.mxu0 0
    %191 = vmatmul.mubr.bf16.gmra.mrb[0].mxu0 %v110
    %v192 = vpop.f32.mrb[0].mxu0
    %v193 = vadd.f32 %v45, %v192
    %v194 = vpop.f32.mrb[0].mxu0
    %v195 = vpop.f32.mrb[0].mxu0
    %v196 = vadd.f32 %v45, %v195
    %v197 = vpop.f32.mrb[0].mxu0
    %198 = vmatprep.mubr.bf16.mxu0 0
    %199 = vmatmul.mubr.bf16.gmra.mrb[0].mxu0 %v113
    %v200 = vpop.f32.mrb[0].mxu0
    %v201 = vadd.f32 %v45, %v200
    %v202 = vpop.f32.mrb[0].mxu0
    %v203 = vpop.f32.mrb[0].mxu0
    %v204 = vadd.f32 %v45, %v203
    %v205 = vpop.f32.mrb[0].mxu0
    %206 = vmatprep.mubr.bf16.mxu0 0
    %207 = vmatmul.mubr.bf16.gmra.mrb[0].mxu0 %v116
    %v208 = vpop.f32.mrb[0].mxu0
    %v209 = vadd.f32 %v45, %v208
    %v210 = vpop.f32.mrb[0].mxu0
    %v211 = vpop.f32.mrb[0].mxu0
    %v212 = vadd.f32 %v45, %v211
    %v213 = vpop.f32.mrb[0].mxu0
    %214 = vdwg.mxu0
    %v215 = vxor.u32 %v153, 2147483648
    %v216 = vxor.u32 %v156, 2147483648
    %v217 = vxor.u32 %v161, 2147483648
    %v218 = vxor.u32 %v164, 2147483648
    %v219 = vxor.u32 %v169, 2147483648
    %v220 = vxor.u32 %v172, 2147483648
    %v221 = vxor.u32 %v177, 2147483648
    %v222 = vxor.u32 %v180, 2147483648
    %v223 = vxor.u32 %v185, 2147483648
    %v224 = vxor.u32 %v188, 2147483648
    %v225 = vxor.u32 %v193, 2147483648
    %v226 = vxor.u32 %v196, 2147483648
    %v227 = vxor.u32 %v201, 2147483648
    %v228 = vxor.u32 %v204, 2147483648
    %v229 = vxor.u32 %v209, 2147483648
    %v230 = vxor.u32 %v212, 2147483648
    %v231 = vmul.f32 %v215, 1.442695
    %v232 = vpow.pop %v231
    %v233 = vmul.f32 %v216, 1.442695
    %v234 = vpow.pop %v233
    %v235 = vmul.f32 %v217, 1.442695
    %v236 = vpow.pop %v235
    %v237 = vmul.f32 %v218, 1.442695
    %v238 = vpow.pop %v237
    %v239 = vmul.f32 %v219, 1.442695
    %v240 = vpow.pop %v239
    %v241 = vmul.f32 %v220, 1.442695
    %v242 = vpow.pop %v241
    %v243 = vmul.f32 %v221, 1.442695
    %v244 = vpow.pop %v243
    %v245 = vmul.f32 %v222, 1.442695
    %v246 = vpow.pop %v245
    %v247 = vmul.f32 %v223, 1.442695
    %v248 = vpow.pop %v247
    %v249 = vmul.f32 %v224, 1.442695
    %v250 = vpow.pop %v249
    %v251 = vmul.f32 %v225, 1.442695
    %v252 = vpow.pop %v251
    %v253 = vmul.f32 %v226, 1.442695
    %v254 = vpow.pop %v253
    %v255 = vmul.f32 %v227, 1.442695
    %v256 = vpow.pop %v255
    %v257 = vmul.f32 %v228, 1.442695
    %v258 = vpow.pop %v257
    %v259 = vmul.f32 %v229, 1.442695
    %v260 = vpow.pop %v259
    %v261 = vmul.f32 %v230, 1.442695
    %v262 = vpow.pop %v261
    %v263 = vadd.f32 %v232, 1.0
    %v264 = vadd.f32 %v234, 1.0
    %v265 = vadd.f32 %v236, 1.0
    %v266 = vadd.f32 %v238, 1.0
    %v267 = vadd.f32 %v240, 1.0
    %v268 = vadd.f32 %v242, 1.0
    %v269 = vadd.f32 %v244, 1.0
    %v270 = vadd.f32 %v246, 1.0
    %v271 = vadd.f32 %v248, 1.0
    %v272 = vadd.f32 %v250, 1.0
    %v273 = vadd.f32 %v252, 1.0
    %v274 = vadd.f32 %v254, 1.0
    %v275 = vadd.f32 %v256, 1.0
    %v276 = vadd.f32 %v258, 1.0
    %v277 = vadd.f32 %v260, 1.0
    %v278 = vadd.f32 %v262, 1.0
    %v279 = vrcp.pop %v263
    %v280 = vmul.f32 1.0, %v279
    %v281 = vrcp.pop %v264
    %v282 = vmul.f32 1.0, %v281
    %v283 = vrcp.pop %v265
    %v284 = vmul.f32 1.0, %v283
    %v285 = vrcp.pop %v266
    %v286 = vmul.f32 1.0, %v285
    %v287 = vrcp.pop %v267
    %v288 = vmul.f32 1.0, %v287
    %v289 = vrcp.pop %v268
    %v290 = vmul.f32 1.0, %v289
    %v291 = vrcp.pop %v269
    %v292 = vmul.f32 1.0, %v291
    %v293 = vrcp.pop %v270
    %v294 = vmul.f32 1.0, %v293
    %v295 = vrcp.pop %v271
    %v296 = vmul.f32 1.0, %v295
    %v297 = vrcp.pop %v272
    %v298 = vmul.f32 1.0, %v297
    %v299 = vrcp.pop %v273
    %v300 = vmul.f32 1.0, %v299
    %v301 = vrcp.pop %v274
    %v302 = vmul.f32 1.0, %v301
    %v303 = vrcp.pop %v275
    %v304 = vmul.f32 1.0, %v303
    %v305 = vrcp.pop %v276
    %v306 = vmul.f32 1.0, %v305
    %v307 = vrcp.pop %v277
    %v308 = vmul.f32 1.0, %v307
    %v309 = vrcp.pop %v278
    %v310 = vmul.f32 1.0, %v309
    %v311 = vmul.f32 %v153, %v280
    %v312 = vmul.f32 %v156, %v282
    %v313 = vmul.f32 %v161, %v284
    %v314 = vmul.f32 %v164, %v286
    %v315 = vmul.f32 %v169, %v288
    %v316 = vmul.f32 %v172, %v290
    %v317 = vmul.f32 %v177, %v292
    %v318 = vmul.f32 %v180, %v294
    %v319 = vmul.f32 %v185, %v296
    %v320 = vmul.f32 %v188, %v298
    %v321 = vmul.f32 %v193, %v300
    %v322 = vmul.f32 %v196, %v302
    %v323 = vmul.f32 %v201, %v304
    %v324 = vmul.f32 %v204, %v306
    %v325 = vmul.f32 %v209, %v308
    %v326 = vmul.f32 %v212, %v310
    %vm327 = vcmask 523264
    %v328 = vsel %vm327, %v311, 0.0
    %v329 = vsel %vm327, %v312, 0.0
    %v330 = vadd.f32 %v328, %v329
    %v331 = vsel %vm327, %v313, 0.0
    %v332 = vadd.f32 %v330, %v331
    %v333 = vsel %vm327, %v314, 0.0
    %v334 = vadd.f32 %v332, %v333
    %v335 = vsel %vm327, %v315, 0.0
    %v336 = vadd.f32 %v334, %v335
    %v337 = vsel %vm327, %v316, 0.0
    %v338 = vadd.f32 %v336, %v337
    %v339 = vsel %vm327, %v317, 0.0
    %v340 = vadd.f32 %v338, %v339
    %v341 = vsel %vm327, %v318, 0.0
    %v342 = vadd.f32 %v340, %v341
    %v343 = vrot.slane %v342, 4
    %v344 = vadd.f32 %v342, %v343
    %v345 = vrot.slane %v344, 2
    %v346 = vadd.f32 %v344, %v345
    %v347 = vrot.slane %v346, 1
    %v348 = vadd.f32 %v346, %v347
    %v349 = vsel %vm327, %v319, 0.0
    %v350 = vsel %vm327, %v320, 0.0
    %v351 = vadd.f32 %v349, %v350
    %v352 = vsel %vm327, %v321, 0.0
    %v353 = vadd.f32 %v351, %v352
    %v354 = vsel %vm327, %v322, 0.0
    %v355 = vadd.f32 %v353, %v354
    %v356 = vsel %vm327, %v323, 0.0
    %v357 = vadd.f32 %v355, %v356
    %v358 = vsel %vm327, %v324, 0.0
    %v359 = vadd.f32 %v357, %v358
    %v360 = vsel %vm327, %v325, 0.0
    %v361 = vadd.f32 %v359, %v360
    %v362 = vsel %vm327, %v326, 0.0
    %v363 = vadd.f32 %v361, %v362
    %v364 = vrot.slane %v363, 4
    %v365 = vadd.f32 %v363, %v364
    %v366 = vrot.slane %v365, 2
    %v367 = vadd.f32 %v365, %v366
    %v368 = vrot.slane %v367, 1
    %v369 = vadd.f32 %v367, %v368
    %v370 = vrcp.pop 64.0
    %v371 = vmul.f32 %v348, %v370
    %v372 = vmul.f32 %v369, %v370
    %v373 = vpack.c.bf16 %v371, %v371
    %v374 = vpack.c.bf16 %v372, %v372
    %v375 = vld [vmem:[%s3] sm:$0xf]
    %v376 = vld [vmem:[%s3 + $0x4] sm:$0xf]
    %v377 = vld [vmem:[%s3 + $0x8] sm:$0xf]
    %v378 = vld [vmem:[%s3 + $0xc] sm:$0xf]
    %v379 = vld [vmem:[%s3 + $0x10] sm:$0xf]
    %v380 = vld [vmem:[%s3 + $0x14] sm:$0xf]
    %v381 = vld [vmem:[%s3 + $0x18] sm:$0xf]
    %v382 = vld [vmem:[%s3 + $0x1c] sm:$0xf]
    %v383 = vld [vmem:[%s4] sm:$0x1]
    %v385 = vlaneseq
    %v386 = vshrl.u32 %v385, 7
    %v387 = vsub.s32 0, %v386
    %v388 = vrot.slane %v383, %v387
    %v392 = vunpack.c.l.b16 %v373
    %v393 = vunpack.c.l.b16 %v374
    %vm394 = vcmask 1041409
    %v395 = vsel %vm394, %v393, %v392
    %v396 = vpack.c.b16 %v395, %v395
    %v405 = vunpack.c.l.b16 %v375
    %v406 = vunpack.c.l.b16 %v376
    %v407 = vunpack.c.l.b16 %v377
    %v408 = vunpack.c.l.b16 %v378
    %v409 = vunpack.c.l.b16 %v379
    %v410 = vunpack.c.l.b16 %v380
    %v411 = vunpack.c.l.b16 %v381
    %v412 = vunpack.c.l.b16 %v382
    %v413 = vpack.c.b16 %v406, %v405
    %v414 = vpack.c.b16 %v408, %v407
    %v415 = vpack.c.b16 %v410, %v409
    %v416 = vpack.c.b16 %v412, %v411
    %v422 = vsel %vm327, %v396, 0
    %424 = vmatprep.subr.bf16.mxu0 0
    %425 = vmatpush1.bf16.msra.mxu0 %v413
    %426 = vmatprep.subr.bf16.mxu0 0
    %427 = vmatpush1.bf16.msra.mxu0 %v414
    %428 = vmatprep.subr.bf16.mxu0 0
    %429 = vmatpush1.bf16.msra.mxu0 %v415
    %430 = vmatprep.subr.bf16.mxu0 0
    %431 = vmatpush1.bf16.msra.mxu0 %v416
    %432 = vmatprep.subr.bf16.mxu0 0
    %433 = vmatpush1.bf16.msra.mxu0 0
    %434 = vmatprep.subr.bf16.mxu0 0
    %435 = vmatpush1.bf16.msra.mxu0 0
    %436 = vmatprep.subr.bf16.mxu0 0
    %437 = vmatpush1.bf16.msra.mxu0 0
    %438 = vmatprep.subr.bf16.mxu0 0
    %439 = vmatpush1.bf16.msra.mxu0 0
    %440 = vmatprep.subr.bf16.mxu0 0
    %441 = vmatpush1.bf16.msra.mxu0 0
    %442 = vmatprep.subr.bf16.mxu0 0
    %443 = vmatpush1.bf16.msra.mxu0 0
    %444 = vmatprep.subr.bf16.mxu0 0
    %445 = vmatpush1.bf16.msra.mxu0 0
    %446 = vmatprep.subr.bf16.mxu0 0
    %447 = vmatpush1.bf16.msra.mxu0 0
    %448 = vmatprep.subr.bf16.mxu0 0
    %449 = vmatpush1.bf16.msra.mxu0 0
    %450 = vmatprep.subr.bf16.mxu0 0
    %451 = vmatpush1.bf16.msra.mxu0 0
    %452 = vmatprep.subr.bf16.mxu0 0
    %453 = vmatpush1.bf16.msra.mxu0 0
    %454 = vmatprep.subr.bf16.mxu0 0
    %455 = vmatpush1.bf16.msra.mxu0 0
    %456 = vmatprep.mubr.bf16.mxu0 0
    %457 = vmatmul.mubr.bf16.gmra.mrb[0].mxu0 %v422
    %v458 = vpop.f32.mrb[0].mxu0
    %v459 = vadd.f32 %v388, %v458
    %v460 = vpop.f32.mrb[0].mxu0
    %v461 = vpop.f32.mrb[0].mxu0
    %v462 = vpop.f32.mrb[0].mxu0
    %463 = vdwg.mxu0
    %v464 = vxor.u32 %v459, 2147483648
    %v465 = vmul.f32 %v464, 1.442695
    %v466 = vpow.pop %v465
    %v467 = vadd.f32 %v466, 1.0
    %v468 = vrcp.pop %v467
    %v469 = vmul.f32 1.0, %v468
    %vm470 = vcmask 33792
    %471 = vst.msk [vmem:[#allocation2] sm:$0x3] %vm470, %v469
    // Predicated region
    $region22: #{effnet_forward.5} parent=1 // pred_check
      _
    $region23: #{effnet_forward.5} parent=1 // pred_check_branch
      %473 = sbr.rel (0) target = $region25
    $region24: #{effnet_forward.5} parent=1 // pred_region
      %s475 = ssub.s32 32, 32
      %476 = vsyncadd [#allocation3], %s475
      %s478 = sshll.u32 [#allocation2], 4
      %s479 = int_to_ptr.vmem [resolvable:$true] %s478
      %481 = dma.vmem_to_hbm [thread:$0]  %s479, 32, %s5, [#allocation3]
    $region25: #{effnet_forward.5} parent=1 // pred_fallthru
      _
    // Predicated region
    $region26: #{effnet_forward.5} parent=1 // pred_check
      _
    $region27: #{effnet_forward.5} parent=1 // pred_check_branch
      %483 = sbr.rel (0) target = $region29
    $region28: #{effnet_forward.5} parent=1 // pred_region
      %484 = dma.done [#allocation3], 32
    $region29: #{effnet_forward.5} parent=1 // pred_fallthru
      _
    %485 = vsyncpa [#allocation3], 1

// kernel: effnet_forward.3
$region0: #{effnet_forward.3}
  #allocation0 [shape = 'u32[]', space=smem, size = 0x4, offset = 0x4, fixed_abs, tag = 'smem constant byte address 0x4 - core index']
  #allocation1 [shape = 'u32[144,128]{1,0:T(1,128)}', space=vmem, size = 0x12000, scoped, tag = 'internal scratch']
  %s0 = inlined_call_operand.vmem [shape: f32[4,2,9,9,3], index: 0, kind: input, shape index: {}]
  %s1 = inlined_call_operand.vmem [shape: f32[9,3,16], index: 1, kind: input, shape index: {}]
  %s2 = inlined_call_operand.vmem [shape: f32[1,16], index: 2, kind: input, shape index: {}]
  %s3 = inlined_call_operand.vmem [shape: bf16[128,16], index: 3, kind: output, shape index: {}]
  %s4 = sld [smem:[#allocation0]]
  $region22: #{effnet_forward.3} parent=0
    _
  %s6 = ssub.s32 1, %s4
  %s7 = scalar_select 0, %s6, %s4
  // Predicated region
  $region2: #{effnet_forward.3} parent=0 // pred_check
    _
  $region3: #{effnet_forward.3} parent=0 // pred_check_branch
    %9 = sbr.rel (0) target = $region5
  $region4: #{effnet_forward.3} parent=0 // pred_region
    _
  $region5: #{effnet_forward.3} parent=0 // pred_fallthru
    _
  // Predicated region
  $region6: #{effnet_forward.3} parent=0 // pred_check
    _
  $region7: #{effnet_forward.3} parent=0 // pred_check_branch
    %11 = sbr.rel (0) target = $region9
  $region8: #{effnet_forward.3} parent=0 // pred_region
    _
  $region9: #{effnet_forward.3} parent=0 // pred_fallthru
    _
  // Predicated region
  $region10: #{effnet_forward.3} parent=0 // pred_check
    _
  $region11: #{effnet_forward.3} parent=0 // pred_check_branch
    %13 = sbr.rel (0) target = $region13
  $region12: #{effnet_forward.3} parent=0 // pred_region
    _
  $region13: #{effnet_forward.3} parent=0 // pred_fallthru
    _
  %v14 = vld [vmem:[%s1] sm:$0x7]
  %v15 = vld [vmem:[%s1 + $0x4] sm:$0x7]
  %v16 = vld [vmem:[%s1 + $0x8] sm:$0x7]
  %v17 = vld [vmem:[%s1 + $0xc] sm:$0x7]
  %v18 = vld [vmem:[%s1 + $0x10] sm:$0x7]
  %v19 = vld [vmem:[%s1 + $0x14] sm:$0x7]
  %v20 = vld [vmem:[%s1 + $0x18] sm:$0x7]
  %v21 = vld [vmem:[%s1 + $0x1c] sm:$0x7]
  %v22 = vld [vmem:[%s1 + $0x20] sm:$0x7]
  %v23 = vld [vmem:[%s0] sm:$0xff]
  %v24 = vld [vmem:[%s0 + $0x10] sm:$0xff]
  %v25 = vld [vmem:[%s0 + $0x20] sm:$0xff]
  %v26 = vld [vmem:[%s0 + $0x30] sm:$0xff]
  %v27 = vld [vmem:[%s0 + $0x40] sm:$0xff]
  %v28 = vld [vmem:[%s0 + $0x50] sm:$0xff]
  %v29 = vld [vmem:[%s0 + $0x60] sm:$0xff]
  %v30 = vld [vmem:[%s0 + $0x70] sm:$0xff]
  %v31 = vld [vmem:[%s0 + $0x90] sm:$0xff]
  %v32 = vld [vmem:[%s0 + $0xa0] sm:$0xff]
  %v33 = vld [vmem:[%s0 + $0xb0] sm:$0xff]
  %v34 = vld [vmem:[%s0 + $0xc0] sm:$0xff]
  %v35 = vld [vmem:[%s0 + $0xd0] sm:$0xff]
  %v36 = vld [vmem:[%s0 + $0xe0] sm:$0xff]
  %v37 = vld [vmem:[%s0 + $0xf0] sm:$0xff]
  %v38 = vld [vmem:[%s0 + $0x100] sm:$0xff]
  %s39 = scalar_lea.vmem %s0, 288
  %v40 = vld [vmem:[%s39] sm:$0xff]
  %v41 = vld [vmem:[%s39 + $0x10] sm:$0xff]
  %v42 = vld [vmem:[%s39 + $0x20] sm:$0xff]
  %v43 = vld [vmem:[%s39 + $0x30] sm:$0xff]
  %v44 = vld [vmem:[%s39 + $0x40] sm:$0xff]
  %v45 = vld [vmem:[%s39 + $0x50] sm:$0xff]
  %v46 = vld [vmem:[%s39 + $0x60] sm:$0xff]
  %v47 = vld [vmem:[%s39 + $0x70] sm:$0xff]
  %v48 = vld [vmem:[%s39 + $0x90] sm:$0xff]
  %v49 = vld [vmem:[%s39 + $0xa0] sm:$0xff]
  %v50 = vld [vmem:[%s39 + $0xb0] sm:$0xff]
  %v51 = vld [vmem:[%s39 + $0xc0] sm:$0xff]
  %v52 = vld [vmem:[%s39 + $0xd0] sm:$0xff]
  %v53 = vld [vmem:[%s39 + $0xe0] sm:$0xff]
  %v54 = vld [vmem:[%s39 + $0xf0] sm:$0xff]
  %v55 = vld [vmem:[%s39 + $0x100] sm:$0xff]
  %vm56 = vcmask 23552
  %v58 = vsel %vm56, %v40, 0
  %v61 = vsel %vm56, %v41, 0
  %v64 = vsel %vm56, %v42, 0
  %v67 = vsel %vm56, %v43, 0
  %v70 = vsel %vm56, %v44, 0
  %v73 = vsel %vm56, %v45, 0
  %v76 = vsel %vm56, %v46, 0
  %v79 = vsel %vm56, %v47, 0
  %v82 = vsel %vm56, %v48, 0
  %v85 = vsel %vm56, %v49, 0
  %v88 = vsel %vm56, %v50, 0
  %v91 = vsel %vm56, %v51, 0
  %v94 = vsel %vm56, %v52, 0
  %v97 = vsel %vm56, %v53, 0
  %v100 = vsel %vm56, %v54, 0
  %v103 = vsel %vm56, %v55, 0
  %vm105 = vcmask 1042432
  %v107 = vsel %vm105, %v15, 0
  %109 = vmatprep.subr.mxu0 0.0
  %110 = vmatpush1.msra.mxu0 %v107
  %111 = vmatprep.subr.mxu0 0.0
  %112 = vmatpush1.msra.mxu0 0.0
  %113 = vmatprep.subr.mxu0 0.0
  %114 = vmatpush1.msra.mxu0 0.0
  %115 = vmatprep.subr.mxu0 0.0
  %116 = vmatpush1.msra.mxu0 0.0
  %117 = vmatprep.subr.mxu0 0.0
  %118 = vmatpush1.msra.mxu0 0.0
  %119 = vmatprep.subr.mxu0 0.0
  %120 = vmatpush1.msra.mxu0 0.0
  %121 = vmatprep.subr.mxu0 0.0
  %122 = vmatpush1.msra.mxu0 0.0
  %123 = vmatprep.subr.mxu0 0.0
  %124 = vmatpush1.msra.mxu0 0.0
  %125 = vmatprep.subr.mxu0 0.0
  %126 = vmatpush1.msra.mxu0 0.0
  %127 = vmatprep.subr.mxu0 0.0
  %128 = vmatpush1.msra.mxu0 0.0
  %129 = vmatprep.subr.mxu0 0.0
  %130 = vmatpush1.msra.mxu0 0.0
  %131 = vmatprep.subr.mxu0 0.0
  %132 = vmatpush1.msra.mxu0 0.0
  %133 = vmatprep.subr.mxu0 0.0
  %134 = vmatpush1.msra.mxu0 0.0
  %135 = vmatprep.subr.mxu0 0.0
  %136 = vmatpush1.msra.mxu0 0.0
  %137 = vmatprep.subr.mxu0 0.0
  %138 = vmatpush1.msra.mxu0 0.0
  %139 = vmatprep.subr.mxu0 0.0
  %140 = vmatpush1.msra.mxu0 0.0
  %141 = vmatprep.subr.mxu0 0.0
  %142 = vmatpush1.msra.mxu0 0.0
  %143 = vmatprep.subr.mxu0 0.0
  %144 = vmatpush1.msra.mxu0 0.0
  %145 = vmatprep.subr.mxu0 0.0
  %146 = vmatpush1.msra.mxu0 0.0
  %147 = vmatprep.subr.mxu0 0.0
  %148 = vmatpush1.msra.mxu0 0.0
  %149 = vmatprep.subr.mxu0 0.0
  %150 = vmatpush1.msra.mxu0 0.0
  %151 = vmatprep.subr.mxu0 0.0
  %152 = vmatpush1.msra.mxu0 0.0
  %153 = vmatprep.subr.mxu0 0.0
  %154 = vmatpush1.msra.mxu0 0.0
  %155 = vmatprep.subr.mxu0 0.0
  %156 = vmatpush1.msra.mxu0 0.0
  %157 = vmatprep.subr.mxu0 0.0
  %158 = vmatpush1.msra.mxu0 0.0
  %159 = vmatprep.subr.mxu0 0.0
  %160 = vmatpush1.msra.mxu0 0.0
  %161 = vmatprep.subr.mxu0 0.0
  %162 = vmatpush1.msra.mxu0 0.0
  %163 = vmatprep.subr.mxu0 0.0
  %164 = vmatpush1.msra.mxu0 0.0
  %165 = vmatprep.subr.mxu0 0.0
  %166 = vmatpush1.msra.mxu0 0.0
  %167 = vmatprep.subr.mxu0 0.0
  %168 = vmatpush1.msra.mxu0 0.0
  %169 = vmatprep.subr.mxu0 0.0
  %170 = vmatpush1.msra.mxu0 0.0
  %171 = vmatprep.subr.mxu0 0.0
  %172 = vmatpush1.msra.mxu0 0.0
  %173 = vmatprep.mubr.f32.mxu0 0.0
  %174 = vmatmul.mubr.f32.gmra.mrb[0].mxu0 %v58
  %v175 = vpop.f32.mrb[0].mxu0
  %v176 = vadd.f32 0.0, %v175
  %v177 = vpop.f32.mrb[0].mxu0
  %178 = vmatprep.mubr.f32.mxu0 0.0
  %179 = vmatmul.mubr.f32.gmra.mrb[0].mxu0 %v61
  %v180 = vpop.f32.mrb[0].mxu0
  %v181 = vadd.f32 0.0, %v180
  %v182 = vpop.f32.mrb[0].mxu0
  %183 = vmatprep.mubr.f32.mxu0 0.0
  %184 = vmatmul.mubr.f32.gmra.mrb[0].mxu0 %v64
  %v185 = vpop.f32.mrb[0].mxu0
  %v186 = vadd.f32 0.0, %v185
  %v187 = vpop.f32.mrb[0].mxu0
  %188 = vmatprep.mubr.f32.mxu0 0.0
  %189 = vmatmul.mubr.f32.gmra.mrb[0].mxu0 %v67
  %v190 = vpop.f32.mrb[0].mxu0
  %v191 = vadd.f32 0.0, %v190
  %v192 = vpop.f32.mrb[0].mxu0
  %193 = vmatprep.mubr.f32.mxu0 0.0
  %194 = vmatmul.mubr.f32.gmra.mrb[0].mxu0 %v70
  %v195 = vpop.f32.mrb[0].mxu0
  %v196 = vadd.f32 0.0, %v195
  %v197 = vpop.f32.mrb[0].mxu0
  %198 = vmatprep.mubr.f32.mxu0 0.0
  %199 = vmatmul.mubr.f32.gmra.mrb[0].mxu0 %v73
  %v200 = vpop.f32.mrb[0].mxu0
  %v201 = vadd.f32 0.0, %v200
  %v202 = vpop.f32.mrb[0].mxu0
  %203 = vmatprep.mubr.f32.mxu0 0.0
  %204 = vmatmul.mubr.f32.gmra.mrb[0].mxu0 %v76
  %v205 = vpop.f32.mrb[0].mxu0
  %v206 = vadd.f32 0.0, %v205
  %v207 = vpop.f32.mrb[0].mxu0
  %208 = vmatprep.mubr.f32.mxu0 0.0
  %209 = vmatmul.mubr.f32.gmra.mrb[0].mxu0 %v79
  %v210 = vpop.f32.mrb[0].mxu0
  %v211 = vadd.f32 0.0, %v210
  %v212 = vpop.f32.mrb[0].mxu0
  %213 = vmatprep.mubr.f32.mxu0 0.0
  %214 = vmatmul.mubr.f32.gmra.mrb[0].mxu0 %v82
  %v215 = vpop.f32.mrb[0].mxu0
  %v216 = vadd.f32 0.0, %v215
  %v217 = vpop.f32.mrb[0].mxu0
  %218 = vmatprep.mubr.f32.mxu0 0.0
  %219 = vmatmul.mubr.f32.gmra.mrb[0].mxu0 %v85
  %v220 = vpop.f32.mrb[0].mxu0
  %v221 = vadd.f32 0.0, %v220
  %v222 = vpop.f32.mrb[0].mxu0
  %223 = vmatprep.mubr.f32.mxu0 0.0
  %224 = vmatmul.mubr.f32.gmra.mrb[0].mxu0 %v88
  %v225 = vpop.f32.mrb[0].mxu0
  %v226 = vadd.f32 0.0, %v225
  %v227 = vpop.f32.mrb[0].mxu0
  %228 = vmatprep.mubr.f32.mxu0 0.0
  %229 = vmatmul.mubr.f32.gmra.mrb[0].mxu0 %v91
  %v230 = vpop.f32.mrb[0].mxu0
  %v231 = vadd.f32 0.0, %v230
  %v232 = vpop.f32.mrb[0].mxu0
  %233 = vmatprep.mubr.f32.mxu0 0.0
  %234 = vmatmul.mubr.f32.gmra.mrb[0].mxu0 %v94
  %v235 = vpop.f32.mrb[0].mxu0
  %v236 = vadd.f32 0.0, %v235
  %v237 = vpop.f32.mrb[0].mxu0
  %238 = vmatprep.mubr.f32.mxu0 0.0
  %239 = vmatmul.mubr.f32.gmra.mrb[0].mxu0 %v97
  %v240 = vpop.f32.mrb[0].mxu0
  %v241 = vadd.f32 0.0, %v240
  %v242 = vpop.f32.mrb[0].mxu0
  %243 = vmatprep.mubr.f32.mxu0 0.0
  %244 = vmatmul.mubr.f32.gmra.mrb[0].mxu0 %v100
  %v245 = vpop.f32.mrb[0].mxu0
  %v246 = vadd.f32 0.0, %v245
  %v247 = vpop.f32.mrb[0].mxu0
  %248 = vmatprep.mubr.f32.mxu0 0.0
  %249 = vmatmul.mubr.f32.gmra.mrb[0].mxu0 %v103
  %v250 = vpop.f32.mrb[0].mxu0
  %v251 = vadd.f32 0.0, %v250
  %v252 = vpop.f32.mrb[0].mxu0
  %253 = vdwg.mxu0
  %v255 = vsel %vm56, %v23, 0
  %v258 = vsel %vm56, %v24, 0
  %v261 = vsel %vm56, %v25, 0
  %v264 = vsel %vm56, %v26, 0
  %v267 = vsel %vm56, %v27, 0
  %v270 = vsel %vm56, %v28, 0
  %v273 = vsel %vm56, %v29, 0
  %v276 = vsel %vm56, %v30, 0
  %v279 = vsel %vm56, %v31, 0
  %v282 = vsel %vm56, %v32, 0
  %v285 = vsel %vm56, %v33, 0
  %v288 = vsel %vm56, %v34, 0
  %v291 = vsel %vm56, %v35, 0
  %v294 = vsel %vm56, %v36, 0
  %v297 = vsel %vm56, %v37, 0
  %v300 = vsel %vm56, %v38, 0
  %v303 = vsel %vm105, %v14, 0
  %305 = vmatprep.subr.mxu0 0.0
  %306 = vmatpush1.msra.mxu0 %v303
  %307 = vmatprep.subr.mxu0 0.0
  %308 = vmatpush1.msra.mxu0 0.0
  %309 = vmatprep.subr.mxu0 0.0
  %310 = vmatpush1.msra.mxu0 0.0
  %311 = vmatprep.subr.mxu0 0.0
  %312 = vmatpush1.msra.mxu0 0.0
  %313 = vmatprep.subr.mxu0 0.0
  %314 = vmatpush1.msra.mxu0 0.0
  %315 = vmatprep.subr.mxu0 0.0
  %316 = vmatpush1.msra.mxu0 0.0
  %317 = vmatprep.subr.mxu0 0.0
  %318 = vmatpush1.msra.mxu0 0.0
  %319 = vmatprep.subr.mxu0 0.0
  %320 = vmatpush1.msra.mxu0 0.0
  %321 = vmatprep.subr.mxu0 0.0
  %322 = vmatpush1.msra.mxu0 0.0
  %323 = vmatprep.subr.mxu0 0.0
  %324 = vmatpush1.msra.mxu0 0.0
  %325 = vmatprep.subr.mxu0 0.0
  %326 = vmatpush1.msra.mxu0 0.0
  %327 = vmatprep.subr.mxu0 0.0
  %328 = vmatpush1.msra.mxu0 0.0
  %329 = vmatprep.subr.mxu0 0.0
  %330 = vmatpush1.msra.mxu0 0.0
  %331 = vmatprep.subr.mxu0 0.0
  %332 = vmatpush1.msra.mxu0 0.0
  %333 = vmatprep.subr.mxu0 0.0
  %334 = vmatpush1.msra.mxu0 0.0
  %335 = vmatprep.subr.mxu0 0.0
  %336 = vmatpush1.msra.mxu0 0.0
  %337 = vmatprep.subr.mxu0 0.0
  %338 = vmatpush1.msra.mxu0 0.0
  %339 = vmatprep.subr.mxu0 0.0
  %340 = vmatpush1.msra.mxu0 0.0
  %341 = vmatprep.subr.mxu0 0.0
  %342 = vmatpush1.msra.mxu0 0.0
  %343 = vmatprep.subr.mxu0 0.0
  %344 = vmatpush1.msra.mxu0 0.0
  %345 = vmatprep.subr.mxu0 0.0
  %346 = vmatpush1.msra.mxu0 0.0
  %347 = vmatprep.subr.mxu0 0.0
  %348 = vmatpush1.msra.mxu0 0.0
  %349 = vmatprep.subr.mxu0 0.0
  %350 = vmatpush1.msra.mxu0 0.0
  %351 = vmatprep.subr.mxu0 0.0
  %352 = vmatpush1.msra.mxu0 0.0
  %353 = vmatprep.subr.mxu0 0.0
  %354 = vmatpush1.msra.mxu0 0.0
  %355 = vmatprep.subr.mxu0 0.0
  %356 = vmatpush1.msra.mxu0 0.0
  %357 = vmatprep.subr.mxu0 0.0
  %358 = vmatpush1.msra.mxu0 0.0
  %359 = vmatprep.subr.mxu0 0.0
  %360 = vmatpush1.msra.mxu0 0.0
  %361 = vmatprep.subr.mxu0 0.0
  %362 = vmatpush1.msra.mxu0 0.0
  %363 = vmatprep.subr.mxu0 0.0
  %364 = vmatpush1.msra.mxu0 0.0
  %365 = vmatprep.subr.mxu0 0.0
  %366 = vmatpush1.msra.mxu0 0.0
  %367 = vmatprep.subr.mxu0 0.0
  %368 = vmatpush1.msra.mxu0 0.0
  %369 = vmatprep.mubr.f32.mxu0 0.0
  %370 = vmatmul.mubr.f32.gmra.mrb[0].mxu0 %v255
  %v371 = vpop.f32.mrb[0].mxu0
  %v372 = vadd.f32 %v176, %v371
  %v373 = vpop.f32.mrb[0].mxu0
  %374 = vmatprep.mubr.f32.mxu0 0.0
  %375 = vmatmul.mubr.f32.gmra.mrb[0].mxu0 %v258
  %v376 = vpop.f32.mrb[0].mxu0
  %v377 = vadd.f32 %v181, %v376
  %v378 = vpop.f32.mrb[0].mxu0
  %379 = vmatprep.mubr.f32.mxu0 0.0
  %380 = vmatmul.mubr.f32.gmra.mrb[0].mxu0 %v261
  %v381 = vpop.f32.mrb[0].mxu0
  %v382 = vadd.f32 %v186, %v381
  %v383 = vpop.f32.mrb[0].mxu0
  %384 = vmatprep.mubr.f32.mxu0 0.0
  %385 = vmatmul.mubr.f32.gmra.mrb[0].mxu0 %v264
  %v386 = vpop.f32.mrb[0].mxu0
  %v387 = vadd.f32 %v191, %v386
  %v388 = vpop.f32.mrb[0].mxu0
  %389 = vmatprep.mubr.f32.mxu0 0.0
  %390 = vmatmul.mubr.f32.gmra.mrb[0].mxu0 %v267
  %v391 = vpop.f32.mrb[0].mxu0
  %v392 = vadd.f32 %v196, %v391
  %v393 = vpop.f32.mrb[0].mxu0
  %394 = vmatprep.mubr.f32.mxu0 0.0
  %395 = vmatmul.mubr.f32.gmra.mrb[0].mxu0 %v270
  %v396 = vpop.f32.mrb[0].mxu0
  %v397 = vadd.f32 %v201, %v396
  %v398 = vpop.f32.mrb[0].mxu0
  %399 = vmatprep.mubr.f32.mxu0 0.0
  %400 = vmatmul.mubr.f32.gmra.mrb[0].mxu0 %v273
  %v401 = vpop.f32.mrb[0].mxu0
  %v402 = vadd.f32 %v206, %v401
  %v403 = vpop.f32.mrb[0].mxu0
  %404 = vmatprep.mubr.f32.mxu0 0.0
  %405 = vmatmul.mubr.f32.gmra.mrb[0].mxu0 %v276
  %v406 = vpop.f32.mrb[0].mxu0
  %v407 = vadd.f32 %v211, %v406
  %v408 = vpop.f32.mrb[0].mxu0
  %409 = vmatprep.mubr.f32.mxu0 0.0
  %410 = vmatmul.mubr.f32.gmra.mrb[0].mxu0 %v279
  %v411 = vpop.f32.mrb[0].mxu0
  %v412 = vadd.f32 %v216, %v411
  %v413 = vpop.f32.mrb[0].mxu0
  %414 = vmatprep.mubr.f32.mxu0 0.0
  %415 = vmatmul.mubr.f32.gmra.mrb[0].mxu0 %v282
  %v416 = vpop.f32.mrb[0].mxu0
  %v417 = vadd.f32 %v221, %v416
  %v418 = vpop.f32.mrb[0].mxu0
  %419 = vmatprep.mubr.f32.mxu0 0.0
  %420 = vmatmul.mubr.f32.gmra.mrb[0].mxu0 %v285
  %v421 = vpop.f32.mrb[0].mxu0
  %v422 = vadd.f32 %v226, %v421
  %v423 = vpop.f32.mrb[0].mxu0
  %424 = vmatprep.mubr.f32.mxu0 0.0
  %425 = vmatmul.mubr.f32.gmra.mrb[0].mxu0 %v288
  %v426 = vpop.f32.mrb[0].mxu0
  %v427 = vadd.f32 %v231, %v426
  %v428 = vpop.f32.mrb[0].mxu0
  %429 = vmatprep.mubr.f32.mxu0 0.0
  %430 = vmatmul.mubr.f32.gmra.mrb[0].mxu0 %v291
  %v431 = vpop.f32.mrb[0].mxu0
  %v432 = vadd.f32 %v236, %v431
  %v433 = vpop.f32.mrb[0].mxu0
  %434 = vmatprep.mubr.f32.mxu0 0.0
  %435 = vmatmul.mubr.f32.gmra.mrb[0].mxu0 %v294
  %v436 = vpop.f32.mrb[0].mxu0
  %v437 = vadd.f32 %v241, %v436
  %v438 = vpop.f32.mrb[0].mxu0
  %439 = vmatprep.mubr.f32.mxu0 0.0
  %440 = vmatmul.mubr.f32.gmra.mrb[0].mxu0 %v297
  %v441 = vpop.f32.mrb[0].mxu0
  %v442 = vadd.f32 %v246, %v441
  %v443 = vpop.f32.mrb[0].mxu0
  %444 = vmatprep.mubr.f32.mxu0 0.0
  %445 = vmatmul.mubr.f32.gmra.mrb[0].mxu0 %v300
  %v446 = vpop.f32.mrb[0].mxu0
  %v447 = vadd.f32 %v251, %v446
  %v448 = vpop.f32.mrb[0].mxu0
  %449 = vdwg.mxu0
  %v450 = vld [vmem:[%s0 + $0x1] sm:$0xff]
  %v451 = vld [vmem:[%s0 + $0x11] sm:$0xff]
  %v452 = vld [vmem:[%s0 + $0x21] sm:$0xff]
  %v453 = vld [vmem:[%s0 + $0x31] sm:$0xff]
  %v454 = vld [vmem:[%s0 + $0x41] sm:$0xff]
  %v455 = vld [vmem:[%s0 + $0x51] sm:$0xff]
  %v456 = vld [vmem:[%s0 + $0x61] sm:$0xff]
  %v457 = vld [vmem:[%s0 + $0x71] sm:$0xff]
  %v458 = vld [vmem:[%s0 + $0x91] sm:$0xff]
  %v459 = vld [vmem:[%s0 + $0xa1] sm:$0xff]
  %v460 = vld [vmem:[%s0 + $0xb1] sm:$0xff]
  %v461 = vld [vmem:[%s0 + $0xc1] sm:$0xff]
  %v462 = vld [vmem:[%s0 + $0xd1] sm:$0xff]
  %v463 = vld [vmem:[%s0 + $0xe1] sm:$0xff]
  %v464 = vld [vmem:[%s0 + $0xf1] sm:$0xff]
  %v465 = vld [vmem:[%s0 + $0x101] sm:$0xff]
  %v467 = vsel %vm56, %v450, 0
  %v470 = vsel %vm56, %v451, 0
  %v473 = vsel %vm56, %v452, 0
  %v476 = vsel %vm56, %v453, 0
  %v479 = vsel %vm56, %v454, 0
  %v482 = vsel %vm56, %v455, 0
  %v485 = vsel %vm56, %v456, 0
  %v488 = vsel %vm56, %v457, 0
  %v491 = vsel %vm56, %v458, 0
  %v494 = vsel %vm56, %v459, 0
  %v497 = vsel %vm56, %v460, 0
  %v500 = vsel %vm56, %v461, 0
  %v503 = vsel %vm56, %v462, 0
  %v506 = vsel %vm56, %v463, 0
  %v509 = vsel %vm56, %v464, 0
  %v512 = vsel %vm56, %v465, 0
  %v515 = vsel %vm105, %v16, 0
  %517 = vmatprep.subr.mxu0 0.0
  %518 = vmatpush1.msra.mxu0 %v515
  %519 = vmatprep.subr.mxu0 0.0
  %520 = vmatpush1.msra.mxu0 0.0
  %521 = vmatprep.subr.mxu0 0.0
  %522 = vmatpush1.msra.mxu0 0.0
  %523 = vmatprep.subr.mxu0 0.0
  %524 = vmatpush1.msra.mxu0 0.0
  %525 = vmatprep.subr.mxu0 0.0
  %526 = vmatpush1.msra.mxu0 0.0
  %527 = vmatprep.subr.mxu0 0.0
  %528 = vmatpush1.msra.mxu0 0.0
  %529 = vmatprep.subr.mxu0 0.0
  %530 = vmatpush1.msra.mxu0 0.0
  %531 = vmatprep.subr.mxu0 0.0
  %532 = vmatpush1.msra.mxu0 0.0
  %533 = vmatprep.subr.mxu0 0.0
  %534 = vmatpush1.msra.mxu0 0.0
  %535 = vmatprep.subr.mxu0 0.0
  %536 = vmatpush1.msra.mxu0 0.0
  %537 = vmatprep.subr.mxu0 0.0
  %538 = vmatpush1.msra.mxu0 0.0
  %539 = vmatprep.subr.mxu0 0.0
  %540 = vmatpush1.msra.mxu0 0.0
  %541 = vmatprep.subr.mxu0 0.0
  %542 = vmatpush1.msra.mxu0 0.0
  %543 = vmatprep.subr.mxu0 0.0
  %544 = vmatpush1.msra.mxu0 0.0
  %545 = vmatprep.subr.mxu0 0.0
  %546 = vmatpush1.msra.mxu0 0.0
  %547 = vmatprep.subr.mxu0 0.0
  %548 = vmatpush1.msra.mxu0 0.0
  %549 = vmatprep.subr.mxu0 0.0
  %550 = vmatpush1.msra.mxu0 0.0
  %551 = vmatprep.subr.mxu0 0.0
  %552 = vmatpush1.msra.mxu0 0.0
  %553 = vmatprep.subr.mxu0 0.0
  %554 = vmatpush1.msra.mxu0 0.0
  %555 = vmatprep.subr.mxu0 0.0
  %556 = vmatpush1.msra.mxu0 0.0
  %557 = vmatprep.subr.mxu0 0.0
  %558 = vmatpush1.msra.mxu0 0.0
  %559 = vmatprep.subr.mxu0 0.0
  %560 = vmatpush1.msra.mxu0 0.0
  %561 = vmatprep.subr.mxu0 0.0
  %562 = vmatpush1.msra.mxu0 0.0
  %563 = vmatprep.subr.mxu0 0.0
  %564 = vmatpush1.msra.mxu0 0.0
  %565 = vmatprep.subr.mxu0 0.0
  %566 = vmatpush1.msra.mxu0 0.0
  %567 = vmatprep.subr.mxu0 0.0
  %568 = vmatpush1.msra.mxu0 0.0
  %569 = vmatprep.subr.mxu0 0.0
  %570 = vmatpush1.msra.mxu0 0.0
  %571 = vmatprep.subr.mxu0 0.0
  %572 = vmatpush1.msra.mxu0 0.0
  %573 = vmatprep.subr.mxu0 0.0
  %574 = vmatpush1.msra.mxu0 0.0
  %575 = vmatprep.subr.mxu0 0.0
  %576 = vmatpush1.msra.mxu0 0.0
  %577 = vmatprep.subr.mxu0 0.0
  %578 = vmatpush1.msra.mxu0 0.0
  %579 = vmatprep.subr.mxu0 0.0
  %580 = vmatpush1.msra.mxu0 0.0
  %581 = vmatprep.mubr.f32.mxu0 0.0
  %582 = vmatmul.mubr.f32.gmra.mrb[0].mxu0 %v467
  %v583 = vpop.f32.mrb[0].mxu0
  %v584 = vadd.f32 0.0, %v583
  %v585 = vpop.f32.mrb[0].mxu0
  %586 = vmatprep.mubr.f32.mxu0 0.0
  %587 = vmatmul.mubr.f32.gmra.mrb[0].mxu0 %v470
  %v588 = vpop.f32.mrb[0].mxu0
  %v589 = vadd.f32 0.0, %v588
  %v590 = vpop.f32.mrb[0].mxu0
  %591 = vmatprep.mubr.f32.mxu0 0.0
  %592 = vmatmul.mubr.f32.gmra.mrb[0].mxu0 %v473
  %v593 = vpop.f32.mrb[0].mxu0
  %v594 = vadd.f32 0.0, %v593
  %v595 = vpop.f32.mrb[0].mxu0
  %596 = vmatprep.mubr.f32.mxu0 0.0
  %597 = vmatmul.mubr.f32.gmra.mrb[0].mxu0 %v476
  %v598 = vpop.f32.mrb[0].mxu0
  %v599 = vadd.f32 0.0, %v598
  %v600 = vpop.f32.mrb[0].mxu0
  %601 = vmatprep.mubr.f32.mxu0 0.0
  %602 = vmatmul.mubr.f32.gmra.mrb[0].mxu0 %v479
  %v603 = vpop.f32.mrb[0].mxu0
  %v604 = vadd.f32 0.0, %v603
  %v605 = vpop.f32.mrb[0].mxu0
  %606 = vmatprep.mubr.f32.mxu0 0.0
  %607 = vmatmul.mubr.f32.gmra.mrb[0].mxu0 %v482
  %v608 = vpop.f32.mrb[0].mxu0
  %v609 = vadd.f32 0.0, %v608
  %v610 = vpop.f32.mrb[0].mxu0
  %611 = vmatprep.mubr.f32.mxu0 0.0
  %612 = vmatmul.mubr.f32.gmra.mrb[0].mxu0 %v485
  %v613 = vpop.f32.mrb[0].mxu0
  %v614 = vadd.f32 0.0, %v613
  %v615 = vpop.f32.mrb[0].mxu0
  %616 = vmatprep.mubr.f32.mxu0 0.0
  %617 = vmatmul.mubr.f32.gmra.mrb[0].mxu0 %v488
  %v618 = vpop.f32.mrb[0].mxu0
  %v619 = vadd.f32 0.0, %v618
  %v620 = vpop.f32.mrb[0].mxu0
  %621 = vmatprep.mubr.f32.mxu0 0.0
  %622 = vmatmul.mubr.f32.gmra.mrb[0].mxu0 %v491
  %v623 = vpop.f32.mrb[0].mxu0
  %v624 = vadd.f32 0.0, %v623
  %v625 = vpop.f32.mrb[0].mxu0
  %626 = vmatprep.mubr.f32.mxu0 0.0
  %627 = vmatmul.mubr.f32.gmra.mrb[0].mxu0 %v494
  %v628 = vpop.f32.mrb[0].mxu0
  %v629 = vadd.f32 0.0, %v628
  %v630 = vpop.f32.mrb[0].mxu0
  %631 = vmatprep.mubr.f32.mxu0 0.0
  %632 = vmatmul.mubr.f32.gmra.mrb[0].mxu0 %v497
  %v633 = vpop.f32.mrb[0].mxu0
  %v634 = vadd.f32 0.0, %v633
  %v635 = vpop.f32.mrb[0].mxu0
  %636 = vmatprep.mubr.f32.mxu0 0.0
  %637 = vmatmul.mubr.f32.gmra.mrb[0].mxu0 %v500
  %v638 = vpop.f32.mrb[0].mxu0
  %v639 = vadd.f32 0.0, %v638
  %v640 = vpop.f32.mrb[0].mxu0
  %641 = vmatprep.mubr.f32.mxu0 0.0
  %642 = vmatmul.mubr.f32.gmra.mrb[0].mxu0 %v503
  %v643 = vpop.f32.mrb[0].mxu0
  %v644 = vadd.f32 0.0, %v643
  %v645 = vpop.f32.mrb[0].mxu0
  %646 = vmatprep.mubr.f32.mxu0 0.0
  %647 = vmatmul.mubr.f32.gmra.mrb[0].mxu0 %v506
  %v648 = vpop.f32.mrb[0].mxu0
  %v649 = vadd.f32 0.0, %v648
  %v650 = vpop.f32.mrb[0].mxu0
  %651 = vmatprep.mubr.f32.mxu0 0.0
  %652 = vmatmul.mubr.f32.gmra.mrb[0].mxu0 %v509
  %v653 = vpop.f32.mrb[0].mxu0
  %v654 = vadd.f32 0.0, %v653
  %v655 = vpop.f32.mrb[0].mxu0
  %656 = vmatprep.mubr.f32.mxu0 0.0
  %657 = vmatmul.mubr.f32.gmra.mrb[0].mxu0 %v512
  %v658 = vpop.f32.mrb[0].mxu0
  %v659 = vadd.f32 0.0, %v658
  %v660 = vpop.f32.mrb[0].mxu0
  %661 = vdwg.mxu0
  %v662 = vadd.f32 %v372, %v584
  %v663 = vadd.f32 %v377, %v589
  %v664 = vadd.f32 %v382, %v594
  %v665 = vadd.f32 %v387, %v599
  %v666 = vadd.f32 %v392, %v604
  %v667 = vadd.f32 %v397, %v609
  %v668 = vadd.f32 %v402, %v614
  %v669 = vadd.f32 %v407, %v619
  %v670 = vadd.f32 %v412, %v624
  %v671 = vadd.f32 %v417, %v629
  %v672 = vadd.f32 %v422, %v634
  %v673 = vadd.f32 %v427, %v639
  %v674 = vadd.f32 %v432, %v644
  %v675 = vadd.f32 %v437, %v649
  %v676 = vadd.f32 %v442, %v654
  %v677 = vadd.f32 %v447, %v659
  %s678 = scalar_lea.vmem %s0, 576
  %v679 = vld [vmem:[%s678] sm:$0xff]
  %v680 = vld [vmem:[%s678 + $0x10] sm:$0xff]
  %v681 = vld [vmem:[%s678 + $0x20] sm:$0xff]
  %v682 = vld [vmem:[%s678 + $0x30] sm:$0xff]
  %v683 = vld [vmem:[%s678 + $0x40] sm:$0xff]
  %v684 = vld [vmem:[%s678 + $0x50] sm:$0xff]
  %v685 = vld [vmem:[%s678 + $0x60] sm:$0xff]
  %v686 = vld [vmem:[%s678 + $0x70] sm:$0xff]
  %v687 = vld [vmem:[%s678 + $0x90] sm:$0xff]
  %v688 = vld [vmem:[%s678 + $0xa0] sm:$0xff]
  %v689 = vld [vmem:[%s678 + $0xb0] sm:$0xff]
  %v690 = vld [vmem:[%s678 + $0xc0] sm:$0xff]
  %v691 = vld [vmem:[%s678 + $0xd0] sm:$0xff]
  %v692 = vld [vmem:[%s678 + $0xe0] sm:$0xff]
  %v693 = vld [vmem:[%s678 + $0xf0] sm:$0xff]
  %v694 = vld [vmem:[%s678 + $0x100] sm:$0xff]
  %v696 = vsel %vm56, %v679, 0
  %v699 = vsel %vm56, %v680, 0
  %v702 = vsel %vm56, %v681, 0
  %v705 = vsel %vm56, %v682, 0
  %v708 = vsel %vm56, %v683, 0
  %v711 = vsel %vm56, %v684, 0
  %v714 = vsel %vm56, %v685, 0
  %v717 = vsel %vm56, %v686, 0
  %v720 = vsel %vm56, %v687, 0
  %v723 = vsel %vm56, %v688, 0
  %v726 = vsel %vm56, %v689, 0
  %v729 = vsel %vm56, %v690, 0
  %v732 = vsel %vm56, %v691, 0
  %v735 = vsel %vm56, %v692, 0
  %v738 = vsel %vm56, %v693, 0
  %v741 = vsel %vm56, %v694, 0
  %v744 = vsel %vm105, %v17, 0
  %746 = vmatprep.subr.mxu0 0.0
  %747 = vmatpush1.msra.mxu0 %v744
  %748 = vmatprep.subr.mxu0 0.0
  %749 = vmatpush1.msra.mxu0 0.0
  %750 = vmatprep.subr.mxu0 0.0
  %751 = vmatpush1.msra.mxu0 0.0
  %752 = vmatprep.subr.mxu0 0.0
  %753 = vmatpush1.msra.mxu0 0.0
  %754 = vmatprep.subr.mxu0 0.0
  %755 = vmatpush1.msra.mxu0 0.0
  %756 = vmatprep.subr.mxu0 0.0
  %757 = vmatpush1.msra.mxu0 0.0
  %758 = vmatprep.subr.mxu0 0.0
  %759 = vmatpush1.msra.mxu0 0.0
  %760 = vmatprep.subr.mxu0 0.0
  %761 = vmatpush1.msra.mxu0 0.0
  %762 = vmatprep.subr.mxu0 0.0
  %763 = vmatpush1.msra.mxu0 0.0
  %764 = vmatprep.subr.mxu0 0.0
  %765 = vmatpush1.msra.mxu0 0.0
  %766 = vmatprep.subr.mxu0 0.0
  %767 = vmatpush1.msra.mxu0 0.0
  %768 = vmatprep.subr.mxu0 0.0
  %769 = vmatpush1.msra.mxu0 0.0
  %770 = vmatprep.subr.mxu0 0.0
  %771 = vmatpush1.msra.mxu0 0.0
  %772 = vmatprep.subr.mxu0 0.0
  %773 = vmatpush1.msra.mxu0 0.0
  %774 = vmatprep.subr.mxu0 0.0
  %775 = vmatpush1.msra.mxu0 0.0
  %776 = vmatprep.subr.mxu0 0.0
  %777 = vmatpush1.msra.mxu0 0.0
  %778 = vmatprep.subr.mxu0 0.0
  %779 = vmatpush1.msra.mxu0 0.0
  %780 = vmatprep.subr.mxu0 0.0
  %781 = vmatpush1.msra.mxu0 0.0
  %782 = vmatprep.subr.mxu0 0.0
  %783 = vmatpush1.msra.mxu0 0.0
  %784 = vmatprep.subr.mxu0 0.0
  %785 = vmatpush1.msra.mxu0 0.0
  %786 = vmatprep.subr.mxu0 0.0
  %787 = vmatpush1.msra.mxu0 0.0
  %788 = vmatprep.subr.mxu0 0.0
  %789 = vmatpush1.msra.mxu0 0.0
  %790 = vmatprep.subr.mxu0 0.0
  %791 = vmatpush1.msra.mxu0 0.0
  %792 = vmatprep.subr.mxu0 0.0
  %793 = vmatpush1.msra.mxu0 0.0
  %794 = vmatprep.subr.mxu0 0.0
  %795 = vmatpush1.msra.mxu0 0.0
  %796 = vmatprep.subr.mxu0 0.0
  %797 = vmatpush1.msra.mxu0 0.0
  %798 = vmatprep.subr.mxu0 0.0
  %799 = vmatpush1.msra.mxu0 0.0
  %800 = vmatprep.subr.mxu0 0.0
  %801 = vmatpush1.msra.mxu0 0.0
  %802 = vmatprep.subr.mxu0 0.0
  %803 = vmatpush1.msra.mxu0 0.0
  %804 = vmatprep.subr.mxu0 0.0
  %805 = vmatpush1.msra.mxu0 0.0
  %806 = vmatprep.subr.mxu0 0.0
  %807 = vmatpush1.msra.mxu0 0.0
  %808 = vmatprep.subr.mxu0 0.0
  %809 = vmatpush1.msra.mxu0 0.0
  %810 = vmatprep.mubr.f32.mxu0 0.0
  %811 = vmatmul.mubr.f32.gmra.mrb[0].mxu0 %v696
  %v812 = vpop.f32.mrb[0].mxu0
  %v813 = vadd.f32 0.0, %v812
  %v814 = vpop.f32.mrb[0].mxu0
  %815 = vmatprep.mubr.f32.mxu0 0.0
  %816 = vmatmul.mubr.f32.gmra.mrb[0].mxu0 %v699
  %v817 = vpop.f32.mrb[0].mxu0
  %v818 = vadd.f32 0.0, %v817
  %v819 = vpop.f32.mrb[0].mxu0
  %820 = vmatprep.mubr.f32.mxu0 0.0
  %821 = vmatmul.mubr.f32.gmra.mrb[0].mxu0 %v702
  %v822 = vpop.f32.mrb[0].mxu0
  %v823 = vadd.f32 0.0, %v822
  %v824 = vpop.f32.mrb[0].mxu0
  %825 = vmatprep.mubr.f32.mxu0 0.0
  %826 = vmatmul.mubr.f32.gmra.mrb[0].mxu0 %v705
  %v827 = vpop.f32.mrb[0].mxu0
  %v828 = vadd.f32 0.0, %v827
  %v829 = vpop.f32.mrb[0].mxu0
  %830 = vmatprep.mubr.f32.mxu0 0.0
  %831 = vmatmul.mubr.f32.gmra.mrb[0].mxu0 %v708
  %v832 = vpop.f32.mrb[0].mxu0
  %v833 = vadd.f32 0.0, %v832
  %v834 = vpop.f32.mrb[0].mxu0
  %835 = vmatprep.mubr.f32.mxu0 0.0
  %836 = vmatmul.mubr.f32.gmra.mrb[0].mxu0 %v711
  %v837 = vpop.f32.mrb[0].mxu0
  %v838 = vadd.f32 0.0, %v837
  %v839 = vpop.f32.mrb[0].mxu0
  %840 = vmatprep.mubr.f32.mxu0 0.0
  %841 = vmatmul.mubr.f32.gmra.mrb[0].mxu0 %v714
  %v842 = vpop.f32.mrb[0].mxu0
  %v843 = vadd.f32 0.0, %v842
  %v844 = vpop.f32.mrb[0].mxu0
  %845 = vmatprep.mubr.f32.mxu0 0.0
  %846 = vmatmul.mubr.f32.gmra.mrb[0].mxu0 %v717
  %v847 = vpop.f32.mrb[0].mxu0
  %v848 = vadd.f32 0.0, %v847
  %v849 = vpop.f32.mrb[0].mxu0
  %850 = vmatprep.mubr.f32.mxu0 0.0
  %851 = vmatmul.mubr.f32.gmra.mrb[0].mxu0 %v720
  %v852 = vpop.f32.mrb[0].mxu0
  %v853 = vadd.f32 0.0, %v852
  %v854 = vpop.f32.mrb[0].mxu0
  %855 = vmatprep.mubr.f32.mxu0 0.0
  %856 = vmatmul.mubr.f32.gmra.mrb[0].mxu0 %v723
  %v857 = vpop.f32.mrb[0].mxu0
  %v858 = vadd.f32 0.0, %v857
  %v859 = vpop.f32.mrb[0].mxu0
  %860 = vmatprep.mubr.f32.mxu0 0.0
  %861 = vmatmul.mubr.f32.gmra.mrb[0].mxu0 %v726
  %v862 = vpop.f32.mrb[0].mxu0
  %v863 = vadd.f32 0.0, %v862
  %v864 = vpop.f32.mrb[0].mxu0
  %865 = vmatprep.mubr.f32.mxu0 0.0
  %866 = vmatmul.mubr.f32.gmra.mrb[0].mxu0 %v729
  %v867 = vpop.f32.mrb[0].mxu0
  %v868 = vadd.f32 0.0, %v867
  %v869 = vpop.f32.mrb[0].mxu0
  %870 = vmatprep.mubr.f32.mxu0 0.0
  %871 = vmatmul.mubr.f32.gmra.mrb[0].mxu0 %v732
  %v872 = vpop.f32.mrb[0].mxu0
  %v873 = vadd.f32 0.0, %v872
  %v874 = vpop.f32.mrb[0].mxu0
  %875 = vmatprep.mubr.f32.mxu0 0.0
  %876 = vmatmul.mubr.f32.gmra.mrb[0].mxu0 %v735
  %v877 = vpop.f32.mrb[0].mxu0
  %v878 = vadd.f32 0.0, %v877
  %v879 = vpop.f32.mrb[0].mxu0
  %880 = vmatprep.mubr.f32.mxu0 0.0
  %881 = vmatmul.mubr.f32.gmra.mrb[0].mxu0 %v738
  %v882 = vpop.f32.mrb[0].mxu0
  %v883 = vadd.f32 0.0, %v882
  %v884 = vpop.f32.mrb[0].mxu0
  %885 = vmatprep.mubr.f32.mxu0 0.0
  %886 = vmatmul.mubr.f32.gmra.mrb[0].mxu0 %v741
  %v887 = vpop.f32.mrb[0].mxu0
  %v888 = vadd.f32 0.0, %v887
  %v889 = vpop.f32.mrb[0].mxu0
  %890 = vdwg.mxu0
  %v891 = vadd.f32 %v662, %v813
  %v892 = vadd.f32 %v663, %v818
  %v893 = vadd.f32 %v664, %v823
  %v894 = vadd.f32 %v665, %v828
  %v895 = vadd.f32 %v666, %v833
  %v896 = vadd.f32 %v667, %v838
  %v897 = vadd.f32 %v668, %v843
  %v898 = vadd.f32 %v669, %v848
  %v899 = vadd.f32 %v670, %v853
  %v900 = vadd.f32 %v671, %v858
  %v901 = vadd.f32 %v672, %v863
  %v902 = vadd.f32 %v673, %v868
  %v903 = vadd.f32 %v674, %v873
  %v904 = vadd.f32 %v675, %v878
  %v905 = vadd.f32 %v676, %v883
  %v906 = vadd.f32 %v677, %v888
  %s907 = scalar_lea.vmem %s0, 864
  %v908 = vld [vmem:[%s907] sm:$0xff]
  %v909 = vld [vmem:[%s907 + $0x10] sm:$0xff]
  %v910 = vld [vmem:[%s907 + $0x20] sm:$0xff]
  %v911 = vld [vmem:[%s907 + $0x30] sm:$0xff]
  %v912 = vld [vmem:[%s907 + $0x40] sm:$0xff]
  %v913 = vld [vmem:[%s907 + $0x50] sm:$0xff]
  %v914 = vld [vmem:[%s907 + $0x60] sm:$0xff]
  %v915 = vld [vmem:[%s907 + $0x70] sm:$0xff]
  %v916 = vld [vmem:[%s907 + $0x90] sm:$0xff]
  %v917 = vld [vmem:[%s907 + $0xa0] sm:$0xff]
  %v918 = vld [vmem:[%s907 + $0xb0] sm:$0xff]
  %v919 = vld [vmem:[%s907 + $0xc0] sm:$0xff]
  %v920 = vld [vmem:[%s907 + $0xd0] sm:$0xff]
  %v921 = vld [vmem:[%s907 + $0xe0] sm:$0xff]
  %v922 = vld [vmem:[%s907 + $0xf0] sm:$0xff]
  %v923 = vld [vmem:[%s907 + $0x100] sm:$0xff]
  %v925 = vsel %vm56, %v908, 0
  %v928 = vsel %vm56, %v909, 0
  %v931 = vsel %vm56, %v910, 0
  %v934 = vsel %vm56, %v911, 0
  %v937 = vsel %vm56, %v912, 0
  %v940 = vsel %vm56, %v913, 0
  %v943 = vsel %vm56, %v914, 0
  %v946 = vsel %vm56, %v915, 0
  %v949 = vsel %vm56, %v916, 0
  %v952 = vsel %vm56, %v917, 0
  %v955 = vsel %vm56, %v918, 0
  %v958 = vsel %vm56, %v919, 0
  %v961 = vsel %vm56, %v920, 0
  %v964 = vsel %vm56, %v921, 0
  %v967 = vsel %vm56, %v922, 0
  %v970 = vsel %vm56, %v923, 0
  %v973 = vsel %vm105, %v18, 0
  %975 = vmatprep.subr.mxu0 0.0
  %976 = vmatpush1.msra.mxu0 %v973
  %977 = vmatprep.subr.mxu0 0.0
  %978 = vmatpush1.msra.mxu0 0.0
  %979 = vmatprep.subr.mxu0 0.0
  %980 = vmatpush1.msra.mxu0 0.0
  %981 = vmatprep.subr.mxu0 0.0
  %982 = vmatpush1.msra.mxu0 0.0
  %983 = vmatprep.subr.mxu0 0.0
  %984 = vmatpush1.msra.mxu0 0.0
  %985 = vmatprep.subr.mxu0 0.0
  %986 = vmatpush1.msra.mxu0 0.0
  %987 = vmatprep.subr.mxu0 0.0
  %988 = vmatpush1.msra.mxu0 0.0
  %989 = vmatprep.subr.mxu0 0.0
  %990 = vmatpush1.msra.mxu0 0.0
  %991 = vmatprep.subr.mxu0 0.0
  %992 = vmatpush1.msra.mxu0 0.0
  %993 = vmatprep.subr.mxu0 0.0
  %994 = vmatpush1.msra.mxu0 0.0
  %995 = vmatprep.subr.mxu0 0.0
  %996 = vmatpush1.msra.mxu0 0.0
  %997 = vmatprep.subr.mxu0 0.0
  %998 = vmatpush1.msra.mxu0 0.0
  %999 = vmatprep.subr.mxu0 0.0
  %1000 = vmatpush1.msra.mxu0 0.0
  %1001 = vmatprep.subr.mxu0 0.0
  %1002 = vmatpush1.msra.mxu0 0.0
  %1003 = vmatprep.subr.mxu0 0.0
  %1004 = vmatpush1.msra.mxu0 0.0
  %1005 = vmatprep.subr.mxu0 0.0
  %1006 = vmatpush1.msra.mxu0 0.0
  %1007 = vmatprep.subr.mxu0 0.0
  %1008 = vmatpush1.msra.mxu0 0.0
  %1009 = vmatprep.subr.mxu0 0.0
  %1010 = vmatpush1.msra.mxu0 0.0
  %1011 = vmatprep.subr.mxu0 0.0
  %1012 = vmatpush1.msra.mxu0 0.0
  %1013 = vmatprep.subr.mxu0 0.0
  %1014 = vmatpush1.msra.mxu0 0.0
  %1015 = vmatprep.subr.mxu0 0.0
  %1016 = vmatpush1.msra.mxu0 0.0
  %1017 = vmatprep.subr.mxu0 0.0
  %1018 = vmatpush1.msra.mxu0 0.0
  %1019 = vmatprep.subr.mxu0 0.0
  %1020 = vmatpush1.msra.mxu0 0.0
  %1021 = vmatprep.subr.mxu0 0.0
  %1022 = vmatpush1.msra.mxu0 0.0
  %1023 = vmatprep.subr.mxu0 0.0
  %1024 = vmatpush1.msra.mxu0 0.0
  %1025 = vmatprep.subr.mxu0 0.0
  %1026 = vmatpush1.msra.mxu0 0.0
  %1027 = vmatprep.subr.mxu0 0.0
  %1028 = vmatpush1.msra.mxu0 0.0
  %1029 = vmatprep.subr.mxu0 0.0
  %1030 = vmatpush1.msra.mxu0 0.0
  %1031 = vmatprep.subr.mxu0 0.0
  %1032 = vmatpush1.msra.mxu0 0.0
  %1033 = vmatprep.subr.mxu0 0.0
  %1034 = vmatpush1.msra.mxu0 0.0
  %1035 = vmatprep.subr.mxu0 0.0
  %1036 = vmatpush1.msra.mxu0 0.0
  %1037 = vmatprep.subr.mxu0 0.0
  %1038 = vmatpush1.msra.mxu0 0.0
  %1039 = vmatprep.mubr.f32.mxu0 0.0
  %1040 = vmatmul.mubr.f32.gmra.mrb[0].mxu0 %v925
  %v1041 = vpop.f32.mrb[0].mxu0
  %v1042 = vadd.f32 0.0, %v1041
  %v1043 = vpop.f32.mrb[0].mxu0
  %1044 = vmatprep.mubr.f32.mxu0 0.0
  %1045 = vmatmul.mubr.f32.gmra.mrb[0].mxu0 %v928
  %v1046 = vpop.f32.mrb[0].mxu0
  %v1047 = vadd.f32 0.0, %v1046
  %v1048 = vpop.f32.mrb[0].mxu0
  %1049 = vmatprep.mubr.f32.mxu0 0.0
  %1050 = vmatmul.mubr.f32.gmra.mrb[0].mxu0 %v931
  %v1051 = vpop.f32.mrb[0].mxu0
  %v1052 = vadd.f32 0.0, %v1051
  %v1053 = vpop.f32.mrb[0].mxu0
  %1054 = vmatprep.mubr.f32.mxu0 0.0
  %1055 = vmatmul.mubr.f32.gmra.mrb[0].mxu0 %v934
  %v1056 = vpop.f32.mrb[0].mxu0
  %v1057 = vadd.f32 0.0, %v1056
  %v1058 = vpop.f32.mrb[0].mxu0
  %1059 = vmatprep.mubr.f32.mxu0 0.0
  %1060 = vmatmul.mubr.f32.gmra.mrb[0].mxu0 %v937
  %v1061 = vpop.f32.mrb[0].mxu0
  %v1062 = vadd.f32 0.0, %v1061
  %v1063 = vpop.f32.mrb[0].mxu0
  %1064 = vmatprep.mubr.f32.mxu0 0.0
  %1065 = vmatmul.mubr.f32.gmra.mrb[0].mxu0 %v940
  %v1066 = vpop.f32.mrb[0].mxu0
  %v1067 = vadd.f32 0.0, %v1066
  %v1068 = vpop.f32.mrb[0].mxu0
  %1069 = vmatprep.mubr.f32.mxu0 0.0
  %1070 = vmatmul.mubr.f32.gmra.mrb[0].mxu0 %v943
  %v1071 = vpop.f32.mrb[0].mxu0
  %v1072 = vadd.f32 0.0, %v1071
  %v1073 = vpop.f32.mrb[0].mxu0
  %1074 = vmatprep.mubr.f32.mxu0 0.0
  %1075 = vmatmul.mubr.f32.gmra.mrb[0].mxu0 %v946
  %v1076 = vpop.f32.mrb[0].mxu0
  %v1077 = vadd.f32 0.0, %v1076
  %v1078 = vpop.f32.mrb[0].mxu0
  %1079 = vmatprep.mubr.f32.mxu0 0.0
  %1080 = vmatmul.mubr.f32.gmra.mrb[0].mxu0 %v949
  %v1081 = vpop.f32.mrb[0].mxu0
  %v1082 = vadd.f32 0.0, %v1081
  %v1083 = vpop.f32.mrb[0].mxu0
  %1084 = vmatprep.mubr.f32.mxu0 0.0
  %1085 = vmatmul.mubr.f32.gmra.mrb[0].mxu0 %v952
  %v1086 = vpop.f32.mrb[0].mxu0
  %v1087 = vadd.f32 0.0, %v1086
  %v1088 = vpop.f32.mrb[0].mxu0
  %1089 = vmatprep.mubr.f32.mxu0 0.0
  %1090 = vmatmul.mubr.f32.gmra.mrb[0].mxu0 %v955
  %v1091 = vpop.f32.mrb[0].mxu0
  %v1092 = vadd.f32 0.0, %v1091
  %v1093 = vpop.f32.mrb[0].mxu0
  %1094 = vmatprep.mubr.f32.mxu0 0.0
  %1095 = vmatmul.mubr.f32.gmra.mrb[0].mxu0 %v958
  %v1096 = vpop.f32.mrb[0].mxu0
  %v1097 = vadd.f32 0.0, %v1096
  %v1098 = vpop.f32.mrb[0].mxu0
  %1099 = vmatprep.mubr.f32.mxu0 0.0
  %1100 = vmatmul.mubr.f32.gmra.mrb[0].mxu0 %v961
  %v1101 = vpop.f32.mrb[0].mxu0
  %v1102 = vadd.f32 0.0, %v1101
  %v1103 = vpop.f32.mrb[0].mxu0
  %1104 = vmatprep.mubr.f32.mxu0 0.0
  %1105 = vmatmul.mubr.f32.gmra.mrb[0].mxu0 %v964
  %v1106 = vpop.f32.mrb[0].mxu0
  %v1107 = vadd.f32 0.0, %v1106
  %v1108 = vpop.f32.mrb[0].mxu0
  %1109 = vmatprep.mubr.f32.mxu0 0.0
  %1110 = vmatmul.mubr.f32.gmra.mrb[0].mxu0 %v967
  %v1111 = vpop.f32.mrb[0].mxu0
  %v1112 = vadd.f32 0.0, %v1111
  %v1113 = vpop.f32.mrb[0].mxu0
  %1114 = vmatprep.mubr.f32.mxu0 0.0
  %1115 = vmatmul.mubr.f32.gmra.mrb[0].mxu0 %v970
  %v1116 = vpop.f32.mrb[0].mxu0
  %v1117 = vadd.f32 0.0, %v1116
  %v1118 = vpop.f32.mrb[0].mxu0
  %1119 = vdwg.mxu0
  %v1120 = vadd.f32 %v891, %v1042
  %v1121 = vadd.f32 %v892, %v1047
  %v1122 = vadd.f32 %v893, %v1052
  %v1123 = vadd.f32 %v894, %v1057
  %v1124 = vadd.f32 %v895, %v1062
  %v1125 = vadd.f32 %v896, %v1067
  %v1126 = vadd.f32 %v897, %v1072
  %v1127 = vadd.f32 %v898, %v1077
  %v1128 = vadd.f32 %v899, %v1082
  %v1129 = vadd.f32 %v900, %v1087
  %v1130 = vadd.f32 %v901, %v1092
  %v1131 = vadd.f32 %v902, %v1097
  %v1132 = vadd.f32 %v903, %v1102
  %v1133 = vadd.f32 %v904, %v1107
  %v1134 = vadd.f32 %v905, %v1112
  %v1135 = vadd.f32 %v906, %v1117
  %v1136 = vld [vmem:[%s678 + $0x1] sm:$0xff]
  %v1137 = vld [vmem:[%s678 + $0x11] sm:$0xff]
  %v1138 = vld [vmem:[%s678 + $0x21] sm:$0xff]
  %v1139 = vld [vmem:[%s678 + $0x31] sm:$0xff]
  %v1140 = vld [vmem:[%s678 + $0x41] sm:$0xff]
  %v1141 = vld [vmem:[%s678 + $0x51] sm:$0xff]
  %v1142 = vld [vmem:[%s678 + $0x61] sm:$0xff]
  %v1143 = vld [vmem:[%s678 + $0x71] sm:$0xff]
  %v1144 = vld [vmem:[%s678 + $0x91] sm:$0xff]
  %v1145 = vld [vmem:[%s678 + $0xa1] sm:$0xff]
  %v1146 = vld [vmem:[%s678 + $0xb1] sm:$0xff]
  %v1147 = vld [vmem:[%s678 + $0xc1] sm:$0xff]
  %v1148 = vld [vmem:[%s678 + $0xd1] sm:$0xff]
  %v1149 = vld [vmem:[%s678 + $0xe1] sm:$0xff]
  %v1150 = vld [vmem:[%s678 + $0xf1] sm:$0xff]
  %v1151 = vld [vmem:[%s678 + $0x101] sm:$0xff]
  %v1153 = vsel %vm56, %v1136, 0
  %v1156 = vsel %vm56, %v1137, 0
  %v1159 = vsel %vm56, %v1138, 0
  %v1162 = vsel %vm56, %v1139, 0
  %v1165 = vsel %vm56, %v1140, 0
  %v1168 = vsel %vm56, %v1141, 0
  %v1171 = vsel %vm56, %v1142, 0
  %v1174 = vsel %vm56, %v1143, 0
  %v1177 = vsel %vm56, %v1144, 0
  %v1180 = vsel %vm56, %v1145, 0
  %v1183 = vsel %vm56, %v1146, 0
  %v1186 = vsel %vm56, %v1147, 0
  %v1189 = vsel %vm56, %v1148, 0
  %v1192 = vsel %vm56, %v1149, 0
  %v1195 = vsel %vm56, %v1150, 0
  %v1198 = vsel %vm56, %v1151, 0
  %v1201 = vsel %vm105, %v19, 0
  %1203 = vmatprep.subr.mxu0 0.0
  %1204 = vmatpush1.msra.mxu0 %v1201
  %1205 = vmatprep.subr.mxu0 0.0
  %1206 = vmatpush1.msra.mxu0 0.0
  %1207 = vmatprep.subr.mxu0 0.0
  %1208 = vmatpush1.msra.mxu0 0.0
  %1209 = vmatprep.subr.mxu0 0.0
  %1210 = vmatpush1.msra.mxu0 0.0
  %1211 = vmatprep.subr.mxu0 0.0
  %1212 = vmatpush1.msra.mxu0 0.0
  %1213 = vmatprep.subr.mxu0 0.0
  %1214 = vmatpush1.msra.mxu0 0.0
  %1215 = vmatprep.subr.mxu0 0.0
  %1216 = vmatpush1.msra.mxu0 0.0
  %1217 = vmatprep.subr.mxu0 0.0
  %1218 = vmatpush1.msra.mxu0 0.0
  %1219 = vmatprep.subr.mxu0 0.0
  %1220 = vmatpush1.msra.mxu0 0.0
  %1221 = vmatprep.subr.mxu0 0.0
  %1222 = vmatpush1.msra.mxu0 0.0
  %1223 = vmatprep.subr.mxu0 0.0
  %1224 = vmatpush1.msra.mxu0 0.0
  %1225 = vmatprep.subr.mxu0 0.0
  %1226 = vmatpush1.msra.mxu0 0.0
  %1227 = vmatprep.subr.mxu0 0.0
  %1228 = vmatpush1.msra.mxu0 0.0
  %1229 = vmatprep.subr.mxu0 0.0
  %1230 = vmatpush1.msra.mxu0 0.0
  %1231 = vmatprep.subr.mxu0 0.0
  %1232 = vmatpush1.msra.mxu0 0.0
  %1233 = vmatprep.subr.mxu0 0.0
  %1234 = vmatpush1.msra.mxu0 0.0
  %1235 = vmatprep.subr.mxu0 0.0
  %1236 = vmatpush1.msra.mxu0 0.0
  %1237 = vmatprep.subr.mxu0 0.0
  %1238 = vmatpush1.msra.mxu0 0.0
  %1239 = vmatprep.subr.mxu0 0.0
  %1240 = vmatpush1.msra.mxu0 0.0
  %1241 = vmatprep.subr.mxu0 0.0
  %1242 = vmatpush1.msra.mxu0 0.0
  %1243 = vmatprep.subr.mxu0 0.0
  %1244 = vmatpush1.msra.mxu0 0.0
  %1245 = vmatprep.subr.mxu0 0.0
  %1246 = vmatpush1.msra.mxu0 0.0
  %1247 = vmatprep.subr.mxu0 0.0
  %1248 = vmatpush1.msra.mxu0 0.0
  %1249 = vmatprep.subr.mxu0 0.0
  %1250 = vmatpush1.msra.mxu0 0.0
  %1251 = vmatprep.subr.mxu0 0.0
  %1252 = vmatpush1.msra.mxu0 0.0
  %1253 = vmatprep.subr.mxu0 0.0
  %1254 = vmatpush1.msra.mxu0 0.0
  %1255 = vmatprep.subr.mxu0 0.0
  %1256 = vmatpush1.msra.mxu0 0.0
  %1257 = vmatprep.subr.mxu0 0.0
  %1258 = vmatpush1.msra.mxu0 0.0
  %1259 = vmatprep.subr.mxu0 0.0
  %1260 = vmatpush1.msra.mxu0 0.0
  %1261 = vmatprep.subr.mxu0 0.0
  %1262 = vmatpush1.msra.mxu0 0.0
  %1263 = vmatprep.subr.mxu0 0.0
  %1264 = vmatpush1.msra.mxu0 0.0
  %1265 = vmatprep.subr.mxu0 0.0
  %1266 = vmatpush1.msra.mxu0 0.0
  %1267 = vmatprep.mubr.f32.mxu0 0.0
  %1268 = vmatmul.mubr.f32.gmra.mrb[0].mxu0 %v1153
  %v1269 = vpop.f32.mrb[0].mxu0
  %v1270 = vadd.f32 0.0, %v1269
  %v1271 = vpop.f32.mrb[0].mxu0
  %1272 = vmatprep.mubr.f32.mxu0 0.0
  %1273 = vmatmul.mubr.f32.gmra.mrb[0].mxu0 %v1156
  %v1274 = vpop.f32.mrb[0].mxu0
  %v1275 = vadd.f32 0.0, %v1274
  %v1276 = vpop.f32.mrb[0].mxu0
  %1277 = vmatprep.mubr.f32.mxu0 0.0
  %1278 = vmatmul.mubr.f32.gmra.mrb[0].mxu0 %v1159
  %v1279 = vpop.f32.mrb[0].mxu0
  %v1280 = vadd.f32 0.0, %v1279
  %v1281 = vpop.f32.mrb[0].mxu0
  %1282 = vmatprep.mubr.f32.mxu0 0.0
  %1283 = vmatmul.mubr.f32.gmra.mrb[0].mxu0 %v1162
  %v1284 = vpop.f32.mrb[0].mxu0
  %v1285 = vadd.f32 0.0, %v1284
  %v1286 = vpop.f32.mrb[0].mxu0
  %1287 = vmatprep.mubr.f32.mxu0 0.0
  %1288 = vmatmul.mubr.f32.gmra.mrb[0].mxu0 %v1165
  %v1289 = vpop.f32.mrb[0].mxu0
  %v1290 = vadd.f32 0.0, %v1289
  %v1291 = vpop.f32.mrb[0].mxu0
  %1292 = vmatprep.mubr.f32.mxu0 0.0
  %1293 = vmatmul.mubr.f32.gmra.mrb[0].mxu0 %v1168
  %v1294 = vpop.f32.mrb[0].mxu0
  %v1295 = vadd.f32 0.0, %v1294
  %v1296 = vpop.f32.mrb[0].mxu0
  %1297 = vmatprep.mubr.f32.mxu0 0.0
  %1298 = vmatmul.mubr.f32.gmra.mrb[0].mxu0 %v1171
  %v1299 = vpop.f32.mrb[0].mxu0
  %v1300 = vadd.f32 0.0, %v1299
  %v1301 = vpop.f32.mrb[0].mxu0
  %1302 = vmatprep.mubr.f32.mxu0 0.0
  %1303 = vmatmul.mubr.f32.gmra.mrb[0].mxu0 %v1174
  %v1304 = vpop.f32.mrb[0].mxu0
  %v1305 = vadd.f32 0.0, %v1304
  %v1306 = vpop.f32.mrb[0].mxu0
  %1307 = vmatprep.mubr.f32.mxu0 0.0
  %1308 = vmatmul.mubr.f32.gmra.mrb[0].mxu0 %v1177
  %v1309 = vpop.f32.mrb[0].mxu0
  %v1310 = vadd.f32 0.0, %v1309
  %v1311 = vpop.f32.mrb[0].mxu0
  %1312 = vmatprep.mubr.f32.mxu0 0.0
  %1313 = vmatmul.mubr.f32.gmra.mrb[0].mxu0 %v1180
  %v1314 = vpop.f32.mrb[0].mxu0
  %v1315 = vadd.f32 0.0, %v1314
  %v1316 = vpop.f32.mrb[0].mxu0
  %1317 = vmatprep.mubr.f32.mxu0 0.0
  %1318 = vmatmul.mubr.f32.gmra.mrb[0].mxu0 %v1183
  %v1319 = vpop.f32.mrb[0].mxu0
  %v1320 = vadd.f32 0.0, %v1319
  %v1321 = vpop.f32.mrb[0].mxu0
  %1322 = vmatprep.mubr.f32.mxu0 0.0
  %1323 = vmatmul.mubr.f32.gmra.mrb[0].mxu0 %v1186
  %v1324 = vpop.f32.mrb[0].mxu0
  %v1325 = vadd.f32 0.0, %v1324
  %v1326 = vpop.f32.mrb[0].mxu0
  %1327 = vmatprep.mubr.f32.mxu0 0.0
  %1328 = vmatmul.mubr.f32.gmra.mrb[0].mxu0 %v1189
  %v1329 = vpop.f32.mrb[0].mxu0
  %v1330 = vadd.f32 0.0, %v1329
  %v1331 = vpop.f32.mrb[0].mxu0
  %1332 = vmatprep.mubr.f32.mxu0 0.0
  %1333 = vmatmul.mubr.f32.gmra.mrb[0].mxu0 %v1192
  %v1334 = vpop.f32.mrb[0].mxu0
  %v1335 = vadd.f32 0.0, %v1334
  %v1336 = vpop.f32.mrb[0].mxu0
  %1337 = vmatprep.mubr.f32.mxu0 0.0
  %1338 = vmatmul.mubr.f32.gmra.mrb[0].mxu0 %v1195
  %v1339 = vpop.f32.mrb[0].mxu0
  %v1340 = vadd.f32 0.0, %v1339
  %v1341 = vpop.f32.mrb[0].mxu0
  %1342 = vmatprep.mubr.f32.mxu0 0.0
  %1343 = vmatmul.mubr.f32.gmra.mrb[0].mxu0 %v1198
  %v1344 = vpop.f32.mrb[0].mxu0
  %v1345 = vadd.f32 0.0, %v1344
  %v1346 = vpop.f32.mrb[0].mxu0
  %1347 = vdwg.mxu0
  %v1348 = vadd.f32 %v1120, %v1270
  %v1349 = vadd.f32 %v1121, %v1275
  %v1350 = vadd.f32 %v1122, %v1280
  %v1351 = vadd.f32 %v1123, %v1285
  %v1352 = vadd.f32 %v1124, %v1290
  %v1353 = vadd.f32 %v1125, %v1295
  %v1354 = vadd.f32 %v1126, %v1300
  %v1355 = vadd.f32 %v1127, %v1305
  %v1356 = vadd.f32 %v1128, %v1310
  %v1357 = vadd.f32 %v1129, %v1315
  %v1358 = vadd.f32 %v1130, %v1320
  %v1359 = vadd.f32 %v1131, %v1325
  %v1360 = vadd.f32 %v1132, %v1330
  %v1361 = vadd.f32 %v1133, %v1335
  %v1362 = vadd.f32 %v1134, %v1340
  %v1363 = vadd.f32 %v1135, %v1345
  %s1364 = scalar_lea.vmem %s0, 16
  %v1365 = vld [vmem:[%s1364] sm:$0xff]
  %v1366 = vld [vmem:[%s1364 + $0x10] sm:$0xff]
  %v1367 = vld [vmem:[%s1364 + $0x20] sm:$0xff]
  %v1368 = vld [vmem:[%s1364 + $0x30] sm:$0xff]
  %v1369 = vld [vmem:[%s1364 + $0x40] sm:$0xff]
  %v1370 = vld [vmem:[%s1364 + $0x50] sm:$0xff]
  %v1371 = vld [vmem:[%s1364 + $0x60] sm:$0xff]
  %v1372 = vld [vmem:[%s1364 + $0x70] sm:$0xff]
  %v1373 = vld [vmem:[%s1364 + $0x90] sm:$0xff]
  %v1374 = vld [vmem:[%s1364 + $0xa0] sm:$0xff]
  %v1375 = vld [vmem:[%s1364 + $0xb0] sm:$0xff]
  %v1376 = vld [vmem:[%s1364 + $0xc0] sm:$0xff]
  %v1377 = vld [vmem:[%s1364 + $0xd0] sm:$0xff]
  %v1378 = vld [vmem:[%s1364 + $0xe0] sm:$0xff]
  %v1379 = vld [vmem:[%s1364 + $0xf0] sm:$0xff]
  %v1380 = vld [vmem:[%s1364 + $0x100] sm:$0xff]
  %v1382 = vsel %vm56, %v1365, 0
  %v1385 = vsel %vm56, %v1366, 0
  %v1388 = vsel %vm56, %v1367, 0
  %v1391 = vsel %vm56, %v1368, 0
  %v1394 = vsel %vm56, %v1369, 0
  %v1397 = vsel %vm56, %v1370, 0
  %v1400 = vsel %vm56, %v1371, 0
  %v1403 = vsel %vm56, %v1372, 0
  %v1406 = vsel %vm56, %v1373, 0
  %v1409 = vsel %vm56, %v1374, 0
  %v1412 = vsel %vm56, %v1375, 0
  %v1415 = vsel %vm56, %v1376, 0
  %v1418 = vsel %vm56, %v1377, 0
  %v1421 = vsel %vm56, %v1378, 0
  %v1424 = vsel %vm56, %v1379, 0
  %v1427 = vsel %vm56, %v1380, 0
  %v1430 = vsel %vm105, %v20, 0
  %1432 = vmatprep.subr.mxu0 0.0
  %1433 = vmatpush1.msra.mxu0 %v1430
  %1434 = vmatprep.subr.mxu0 0.0
  %1435 = vmatpush1.msra.mxu0 0.0
  %1436 = vmatprep.subr.mxu0 0.0
  %1437 = vmatpush1.msra.mxu0 0.0
  %1438 = vmatprep.subr.mxu0 0.0
  %1439 = vmatpush1.msra.mxu0 0.0
  %1440 = vmatprep.subr.mxu0 0.0
  %1441 = vmatpush1.msra.mxu0 0.0
  %1442 = vmatprep.subr.mxu0 0.0
  %1443 = vmatpush1.msra.mxu0 0.0
  %1444 = vmatprep.subr.mxu0 0.0
  %1445 = vmatpush1.msra.mxu0 0.0
  %1446 = vmatprep.subr.mxu0 0.0
  %1447 = vmatpush1.msra.mxu0 0.0
  %1448 = vmatprep.subr.mxu0 0.0
  %1449 = vmatpush1.msra.mxu0 0.0
  %1450 = vmatprep.subr.mxu0 0.0
  %1451 = vmatpush1.msra.mxu0 0.0
  %1452 = vmatprep.subr.mxu0 0.0
  %1453 = vmatpush1.msra.mxu0 0.0
  %1454 = vmatprep.subr.mxu0 0.0
  %1455 = vmatpush1.msra.mxu0 0.0
  %1456 = vmatprep.subr.mxu0 0.0
  %1457 = vmatpush1.msra.mxu0 0.0
  %1458 = vmatprep.subr.mxu0 0.0
  %1459 = vmatpush1.msra.mxu0 0.0
  %1460 = vmatprep.subr.mxu0 0.0
  %1461 = vmatpush1.msra.mxu0 0.0
  %1462 = vmatprep.subr.mxu0 0.0
  %1463 = vmatpush1.msra.mxu0 0.0
  %1464 = vmatprep.subr.mxu0 0.0
  %1465 = vmatpush1.msra.mxu0 0.0
  %1466 = vmatprep.subr.mxu0 0.0
  %1467 = vmatpush1.msra.mxu0 0.0
  %1468 = vmatprep.subr.mxu0 0.0
  %1469 = vmatpush1.msra.mxu0 0.0
  %1470 = vmatprep.subr.mxu0 0.0
  %1471 = vmatpush1.msra.mxu0 0.0
  %1472 = vmatprep.subr.mxu0 0.0
  %1473 = vmatpush1.msra.mxu0 0.0
  %1474 = vmatprep.subr.mxu0 0.0
  %1475 = vmatpush1.msra.mxu0 0.0
  %1476 = vmatprep.subr.mxu0 0.0
  %1477 = vmatpush1.msra.mxu0 0.0
  %1478 = vmatprep.subr.mxu0 0.0
  %1479 = vmatpush1.msra.mxu0 0.0
  %1480 = vmatprep.subr.mxu0 0.0
  %1481 = vmatpush1.msra.mxu0 0.0
  %1482 = vmatprep.subr.mxu0 0.0
  %1483 = vmatpush1.msra.mxu0 0.0
  %1484 = vmatprep.subr.mxu0 0.0
  %1485 = vmatpush1.msra.mxu0 0.0
  %1486 = vmatprep.subr.mxu0 0.0
  %1487 = vmatpush1.msra.mxu0 0.0
  %1488 = vmatprep.subr.mxu0 0.0
  %1489 = vmatpush1.msra.mxu0 0.0
  %1490 = vmatprep.subr.mxu0 0.0
  %1491 = vmatpush1.msra.mxu0 0.0
  %1492 = vmatprep.subr.mxu0 0.0
  %1493 = vmatpush1.msra.mxu0 0.0
  %1494 = vmatprep.subr.mxu0 0.0
  %1495 = vmatpush1.msra.mxu0 0.0
  %1496 = vmatprep.mubr.f32.mxu0 0.0
  %1497 = vmatmul.mubr.f32.gmra.mrb[0].mxu0 %v1382
  %v1498 = vpop.f32.mrb[0].mxu0
  %v1499 = vadd.f32 0.0, %v1498
  %v1500 = vpop.f32.mrb[0].mxu0
  %1501 = vmatprep.mubr.f32.mxu0 0.0
  %1502 = vmatmul.mubr.f32.gmra.mrb[0].mxu0 %v1385
  %v1503 = vpop.f32.mrb[0].mxu0
  %v1504 = vadd.f32 0.0, %v1503
  %v1505 = vpop.f32.mrb[0].mxu0
  %1506 = vmatprep.mubr.f32.mxu0 0.0
  %1507 = vmatmul.mubr.f32.gmra.mrb[0].mxu0 %v1388
  %v1508 = vpop.f32.mrb[0].mxu0
  %v1509 = vadd.f32 0.0, %v1508
  %v1510 = vpop.f32.mrb[0].mxu0
  %1511 = vmatprep.mubr.f32.mxu0 0.0
  %1512 = vmatmul.mubr.f32.gmra.mrb[0].mxu0 %v1391
  %v1513 = vpop.f32.mrb[0].mxu0
  %v1514 = vadd.f32 0.0, %v1513
  %v1515 = vpop.f32.mrb[0].mxu0
  %1516 = vmatprep.mubr.f32.mxu0 0.0
  %1517 = vmatmul.mubr.f32.gmra.mrb[0].mxu0 %v1394
  %v1518 = vpop.f32.mrb[0].mxu0
  %v1519 = vadd.f32 0.0, %v1518
  %v1520 = vpop.f32.mrb[0].mxu0
  %1521 = vmatprep.mubr.f32.mxu0 0.0
  %1522 = vmatmul.mubr.f32.gmra.mrb[0].mxu0 %v1397
  %v1523 = vpop.f32.mrb[0].mxu0
  %v1524 = vadd.f32 0.0, %v1523
  %v1525 = vpop.f32.mrb[0].mxu0
  %1526 = vmatprep.mubr.f32.mxu0 0.0
  %1527 = vmatmul.mubr.f32.gmra.mrb[0].mxu0 %v1400
  %v1528 = vpop.f32.mrb[0].mxu0
  %v1529 = vadd.f32 0.0, %v1528
  %v1530 = vpop.f32.mrb[0].mxu0
  %1531 = vmatprep.mubr.f32.mxu0 0.0
  %1532 = vmatmul.mubr.f32.gmra.mrb[0].mxu0 %v1403
  %v1533 = vpop.f32.mrb[0].mxu0
  %v1534 = vadd.f32 0.0, %v1533
  %v1535 = vpop.f32.mrb[0].mxu0
  %1536 = vmatprep.mubr.f32.mxu0 0.0
  %1537 = vmatmul.mubr.f32.gmra.mrb[0].mxu0 %v1406
  %v1538 = vpop.f32.mrb[0].mxu0
  %v1539 = vadd.f32 0.0, %v1538
  %v1540 = vpop.f32.mrb[0].mxu0
  %1541 = vmatprep.mubr.f32.mxu0 0.0
  %1542 = vmatmul.mubr.f32.gmra.mrb[0].mxu0 %v1409
  %v1543 = vpop.f32.mrb[0].mxu0
  %v1544 = vadd.f32 0.0, %v1543
  %v1545 = vpop.f32.mrb[0].mxu0
  %1546 = vmatprep.mubr.f32.mxu0 0.0
  %1547 = vmatmul.mubr.f32.gmra.mrb[0].mxu0 %v1412
  %v1548 = vpop.f32.mrb[0].mxu0
  %v1549 = vadd.f32 0.0, %v1548
  %v1550 = vpop.f32.mrb[0].mxu0
  %1551 = vmatprep.mubr.f32.mxu0 0.0
  %1552 = vmatmul.mubr.f32.gmra.mrb[0].mxu0 %v1415
  %v1553 = vpop.f32.mrb[0].mxu0
  %v1554 = vadd.f32 0.0, %v1553
  %v1555 = vpop.f32.mrb[0].mxu0
  %1556 = vmatprep.mubr.f32.mxu0 0.0
  %1557 = vmatmul.mubr.f32.gmra.mrb[0].mxu0 %v1418
  %v1558 = vpop.f32.mrb[0].mxu0
  %v1559 = vadd.f32 0.0, %v1558
  %v1560 = vpop.f32.mrb[0].mxu0
  %1561 = vmatprep.mubr.f32.mxu0 0.0
  %1562 = vmatmul.mubr.f32.gmra.mrb[0].mxu0 %v1421
  %v1563 = vpop.f32.mrb[0].mxu0
  %v1564 = vadd.f32 0.0, %v1563
  %v1565 = vpop.f32.mrb[0].mxu0
  %1566 = vmatprep.mubr.f32.mxu0 0.0
  %1567 = vmatmul.mubr.f32.gmra.mrb[0].mxu0 %v1424
  %v1568 = vpop.f32.mrb[0].mxu0
  %v1569 = vadd.f32 0.0, %v1568
  %v1570 = vpop.f32.mrb[0].mxu0
  %1571 = vmatprep.mubr.f32.mxu0 0.0
  %1572 = vmatmul.mubr.f32.gmra.mrb[0].mxu0 %v1427
  %v1573 = vpop.f32.mrb[0].mxu0
  %v1574 = vadd.f32 0.0, %v1573
  %v1575 = vpop.f32.mrb[0].mxu0
  %1576 = vdwg.mxu0
  %v1577 = vadd.f32 %v1348, %v1499
  %v1578 = vadd.f32 %v1349, %v1504
  %v1579 = vadd.f32 %v1350, %v1509
  %v1580 = vadd.f32 %v1351, %v1514
  %v1581 = vadd.f32 %v1352, %v1519
  %v1582 = vadd.f32 %v1353, %v1524
  %v1583 = vadd.f32 %v1354, %v1529
  %v1584 = vadd.f32 %v1355, %v1534
  %v1585 = vadd.f32 %v1356, %v1539
  %v1586 = vadd.f32 %v1357, %v1544
  %v1587 = vadd.f32 %v1358, %v1549
  %v1588 = vadd.f32 %v1359, %v1554
  %v1589 = vadd.f32 %v1360, %v1559
  %v1590 = vadd.f32 %v1361, %v1564
  %v1591 = vadd.f32 %v1362, %v1569
  %v1592 = vadd.f32 %v1363, %v1574
  %s1593 = scalar_lea.vmem %s0, 304
  %v1594 = vld [vmem:[%s1593] sm:$0xff]
  %v1595 = vld [vmem:[%s1593 + $0x10] sm:$0xff]
  %v1596 = vld [vmem:[%s1593 + $0x20] sm:$0xff]
  %v1597 = vld [vmem:[%s1593 + $0x30] sm:$0xff]
  %v1598 = vld [vmem:[%s1593 + $0x40] sm:$0xff]
  %v1599 = vld [vmem:[%s1593 + $0x50] sm:$0xff]
  %v1600 = vld [vmem:[%s1593 + $0x60] sm:$0xff]
  %v1601 = vld [vmem:[%s1593 + $0x70] sm:$0xff]
  %v1602 = vld [vmem:[%s1593 + $0x90] sm:$0xff]
  %v1603 = vld [vmem:[%s1593 + $0xa0] sm:$0xff]
  %v1604 = vld [vmem:[%s1593 + $0xb0] sm:$0xff]
  %v1605 = vld [vmem:[%s1593 + $0xc0] sm:$0xff]
  %v1606 = vld [vmem:[%s1593 + $0xd0] sm:$0xff]
  %v1607 = vld [vmem:[%s1593 + $0xe0] sm:$0xff]
  %v1608 = vld [vmem:[%s1593 + $0xf0] sm:$0xff]
  %v1609 = vld [vmem:[%s1593 + $0x100] sm:$0xff]
  %v1611 = vsel %vm56, %v1594, 0
  %v1614 = vsel %vm56, %v1595, 0
  %v1617 = vsel %vm56, %v1596, 0
  %v1620 = vsel %vm56, %v1597, 0
  %v1623 = vsel %vm56, %v1598, 0
  %v1626 = vsel %vm56, %v1599, 0
  %v1629 = vsel %vm56, %v1600, 0
  %v1632 = vsel %vm56, %v1601, 0
  %v1635 = vsel %vm56, %v1602, 0
  %v1638 = vsel %vm56, %v1603, 0
  %v1641 = vsel %vm56, %v1604, 0
  %v1644 = vsel %vm56, %v1605, 0
  %v1647 = vsel %vm56, %v1606, 0
  %v1650 = vsel %vm56, %v1607, 0
  %v1653 = vsel %vm56, %v1608, 0
  %v1656 = vsel %vm56, %v1609, 0
  %v1659 = vsel %vm105, %v21, 0
  %1661 = vmatprep.subr.mxu0 0.0
  %1662 = vmatpush1.msra.mxu0 %v1659
  %1663 = vmatprep.subr.mxu0 0.0
  %1664 = vmatpush1.msra.mxu0 0.0
  %1665 = vmatprep.subr.mxu0 0.0
  %1666 = vmatpush1.msra.mxu0 0.0
  %1667 = vmatprep.subr.mxu0 0.0
  %1668 = vmatpush1.msra.mxu0 0.0
  %1669 = vmatprep.subr.mxu0 0.0
  %1670 = vmatpush1.msra.mxu0 0.0
  %1671 = vmatprep.subr.mxu0 0.0
  %1672 = vmatpush1.msra.mxu0 0.0
  %1673 = vmatprep.subr.mxu0 0.0
  %1674 = vmatpush1.msra.mxu0 0.0
  %1675 = vmatprep.subr.mxu0 0.0
  %1676 = vmatpush1.msra.mxu0 0.0
  %1677 = vmatprep.subr.mxu0 0.0
  %1678 = vmatpush1.msra.mxu0 0.0
  %1679 = vmatprep.subr.mxu0 0.0
  %1680 = vmatpush1.msra.mxu0 0.0
  %1681 = vmatprep.subr.mxu0 0.0
  %1682 = vmatpush1.msra.mxu0 0.0
  %1683 = vmatprep.subr.mxu0 0.0
  %1684 = vmatpush1.msra.mxu0 0.0
  %1685 = vmatprep.subr.mxu0 0.0
  %1686 = vmatpush1.msra.mxu0 0.0
  %1687 = vmatprep.subr.mxu0 0.0
  %1688 = vmatpush1.msra.mxu0 0.0
  %1689 = vmatprep.subr.mxu0 0.0
  %1690 = vmatpush1.msra.mxu0 0.0
  %1691 = vmatprep.subr.mxu0 0.0
  %1692 = vmatpush1.msra.mxu0 0.0
  %1693 = vmatprep.subr.mxu0 0.0
  %1694 = vmatpush1.msra.mxu0 0.0
  %1695 = vmatprep.subr.mxu0 0.0
  %1696 = vmatpush1.msra.mxu0 0.0
  %1697 = vmatprep.subr.mxu0 0.0
  %1698 = vmatpush1.msra.mxu0 0.0
  %1699 = vmatprep.subr.mxu0 0.0
  %1700 = vmatpush1.msra.mxu0 0.0
  %1701 = vmatprep.subr.mxu0 0.0
  %1702 = vmatpush1.msra.mxu0 0.0
  %1703 = vmatprep.subr.mxu0 0.0
  %1704 = vmatpush1.msra.mxu0 0.0
  %1705 = vmatprep.subr.mxu0 0.0
  %1706 = vmatpush1.msra.mxu0 0.0
  %1707 = vmatprep.subr.mxu0 0.0
  %1708 = vmatpush1.msra.mxu0 0.0
  %1709 = vmatprep.subr.mxu0 0.0
  %1710 = vmatpush1.msra.mxu0 0.0
  %1711 = vmatprep.subr.mxu0 0.0
  %1712 = vmatpush1.msra.mxu0 0.0
  %1713 = vmatprep.subr.mxu0 0.0
  %1714 = vmatpush1.msra.mxu0 0.0
  %1715 = vmatprep.subr.mxu0 0.0
  %1716 = vmatpush1.msra.mxu0 0.0
  %1717 = vmatprep.subr.mxu0 0.0
  %1718 = vmatpush1.msra.mxu0 0.0
  %1719 = vmatprep.subr.mxu0 0.0
  %1720 = vmatpush1.msra.mxu0 0.0
  %1721 = vmatprep.subr.mxu0 0.0
  %1722 = vmatpush1.msra.mxu0 0.0
  %1723 = vmatprep.subr.mxu0 0.0
  %1724 = vmatpush1.msra.mxu0 0.0
  %1725 = vmatprep.mubr.f32.mxu0 0.0
  %1726 = vmatmul.mubr.f32.gmra.mrb[0].mxu0 %v1611
  %v1727 = vpop.f32.mrb[0].mxu0
  %v1728 = vadd.f32 0.0, %v1727
  %v1729 = vpop.f32.mrb[0].mxu0
  %1730 = vmatprep.mubr.f32.mxu0 0.0
  %1731 = vmatmul.mubr.f32.gmra.mrb[0].mxu0 %v1614
  %v1732 = vpop.f32.mrb[0].mxu0
  %v1733 = vadd.f32 0.0, %v1732
  %v1734 = vpop.f32.mrb[0].mxu0
  %1735 = vmatprep.mubr.f32.mxu0 0.0
  %1736 = vmatmul.mubr.f32.gmra.mrb[0].mxu0 %v1617
  %v1737 = vpop.f32.mrb[0].mxu0
  %v1738 = vadd.f32 0.0, %v1737
  %v1739 = vpop.f32.mrb[0].mxu0
  %1740 = vmatprep.mubr.f32.mxu0 0.0
  %1741 = vmatmul.mubr.f32.gmra.mrb[0].mxu0 %v1620
  %v1742 = vpop.f32.mrb[0].mxu0
  %v1743 = vadd.f32 0.0, %v1742
  %v1744 = vpop.f32.mrb[0].mxu0
  %1745 = vmatprep.mubr.f32.mxu0 0.0
  %1746 = vmatmul.mubr.f32.gmra.mrb[0].mxu0 %v1623
  %v1747 = vpop.f32.mrb[0].mxu0
  %v1748 = vadd.f32 0.0, %v1747
  %v1749 = vpop.f32.mrb[0].mxu0
  %1750 = vmatprep.mubr.f32.mxu0 0.0
  %1751 = vmatmul.mubr.f32.gmra.mrb[0].mxu0 %v1626
  %v1752 = vpop.f32.mrb[0].mxu0
  %v1753 = vadd.f32 0.0, %v1752
  %v1754 = vpop.f32.mrb[0].mxu0
  %1755 = vmatprep.mubr.f32.mxu0 0.0
  %1756 = vmatmul.mubr.f32.gmra.mrb[0].mxu0 %v1629
  %v1757 = vpop.f32.mrb[0].mxu0
  %v1758 = vadd.f32 0.0, %v1757
  %v1759 = vpop.f32.mrb[0].mxu0
  %1760 = vmatprep.mubr.f32.mxu0 0.0
  %1761 = vmatmul.mubr.f32.gmra.mrb[0].mxu0 %v1632
  %v1762 = vpop.f32.mrb[0].mxu0
  %v1763 = vadd.f32 0.0, %v1762
  %v1764 = vpop.f32.mrb[0].mxu0
  %1765 = vmatprep.mubr.f32.mxu0 0.0
  %1766 = vmatmul.mubr.f32.gmra.mrb[0].mxu0 %v1635
  %v1767 = vpop.f32.mrb[0].mxu0
  %v1768 = vadd.f32 0.0, %v1767
  %v1769 = vpop.f32.mrb[0].mxu0
  %1770 = vmatprep.mubr.f32.mxu0 0.0
  %1771 = vmatmul.mubr.f32.gmra.mrb[0].mxu0 %v1638
  %v1772 = vpop.f32.mrb[0].mxu0
  %v1773 = vadd.f32 0.0, %v1772
  %v1774 = vpop.f32.mrb[0].mxu0
  %1775 = vmatprep.mubr.f32.mxu0 0.0
  %1776 = vmatmul.mubr.f32.gmra.mrb[0].mxu0 %v1641
  %v1777 = vpop.f32.mrb[0].mxu0
  %v1778 = vadd.f32 0.0, %v1777
  %v1779 = vpop.f32.mrb[0].mxu0
  %1780 = vmatprep.mubr.f32.mxu0 0.0
  %1781 = vmatmul.mubr.f32.gmra.mrb[0].mxu0 %v1644
  %v1782 = vpop.f32.mrb[0].mxu0
  %v1783 = vadd.f32 0.0, %v1782
  %v1784 = vpop.f32.mrb[0].mxu0
  %1785 = vmatprep.mubr.f32.mxu0 0.0
  %1786 = vmatmul.mubr.f32.gmra.mrb[0].mxu0 %v1647
  %v1787 = vpop.f32.mrb[0].mxu0
  %v1788 = vadd.f32 0.0, %v1787
  %v1789 = vpop.f32.mrb[0].mxu0
  %1790 = vmatprep.mubr.f32.mxu0 0.0
  %1791 = vmatmul.mubr.f32.gmra.mrb[0].mxu0 %v1650
  %v1792 = vpop.f32.mrb[0].mxu0
  %v1793 = vadd.f32 0.0, %v1792
  %v1794 = vpop.f32.mrb[0].mxu0
  %1795 = vmatprep.mubr.f32.mxu0 0.0
  %1796 = vmatmul.mubr.f32.gmra.mrb[0].mxu0 %v1653
  %v1797 = vpop.f32.mrb[0].mxu0
  %v1798 = vadd.f32 0.0, %v1797
  %v1799 = vpop.f32.mrb[0].mxu0
  %1800 = vmatprep.mubr.f32.mxu0 0.0
  %1801 = vmatmul.mubr.f32.gmra.mrb[0].mxu0 %v1656
  %v1802 = vpop.f32.mrb[0].mxu0
  %v1803 = vadd.f32 0.0, %v1802
  %v1804 = vpop.f32.mrb[0].mxu0
  %1805 = vdwg.mxu0
  %v1806 = vadd.f32 %v1577, %v1728
  %v1807 = vadd.f32 %v1578, %v1733
  %v1808 = vadd.f32 %v1579, %v1738
  %v1809 = vadd.f32 %v1580, %v1743
  %v1810 = vadd.f32 %v1581, %v1748
  %v1811 = vadd.f32 %v1582, %v1753
  %v1812 = vadd.f32 %v1583, %v1758
  %v1813 = vadd.f32 %v1584, %v1763
  %v1814 = vadd.f32 %v1585, %v1768
  %v1815 = vadd.f32 %v1586, %v1773
  %v1816 = vadd.f32 %v1587, %v1778
  %v1817 = vadd.f32 %v1588, %v1783
  %v1818 = vadd.f32 %v1589, %v1788
  %v1819 = vadd.f32 %v1590, %v1793
  %v1820 = vadd.f32 %v1591, %v1798
  %v1821 = vadd.f32 %v1592, %v1803
  %v1822 = vld [vmem:[%s1364 + $0x1] sm:$0xff]
  %v1823 = vld [vmem:[%s1364 + $0x11] sm:$0xff]
  %v1824 = vld [vmem:[%s1364 + $0x21] sm:$0xff]
  %v1825 = vld [vmem:[%s1364 + $0x31] sm:$0xff]
  %v1826 = vld [vmem:[%s1364 + $0x41] sm:$0xff]
  %v1827 = vld [vmem:[%s1364 + $0x51] sm:$0xff]
  %v1828 = vld [vmem:[%s1364 + $0x61] sm:$0xff]
  %v1829 = vld [vmem:[%s1364 + $0x71] sm:$0xff]
  %v1830 = vld [vmem:[%s1364 + $0x91] sm:$0xff]
  %v1831 = vld [vmem:[%s1364 + $0xa1] sm:$0xff]
  %v1832 = vld [vmem:[%s1364 + $0xb1] sm:$0xff]
  %v1833 = vld [vmem:[%s1364 + $0xc1] sm:$0xff]
  %v1834 = vld [vmem:[%s1364 + $0xd1] sm:$0xff]
  %v1835 = vld [vmem:[%s1364 + $0xe1] sm:$0xff]
  %v1836 = vld [vmem:[%s1364 + $0xf1] sm:$0xff]
  %v1837 = vld [vmem:[%s1364 + $0x101] sm:$0xff]
  %v1839 = vsel %vm56, %v1822, 0
  %v1842 = vsel %vm56, %v1823, 0
  %v1845 = vsel %vm56, %v1824, 0
  %v1848 = vsel %vm56, %v1825, 0
  %v1851 = vsel %vm56, %v1826, 0
  %v1854 = vsel %vm56, %v1827, 0
  %v1857 = vsel %vm56, %v1828, 0
  %v1860 = vsel %vm56, %v1829, 0
  %v1863 = vsel %vm56, %v1830, 0
  %v1866 = vsel %vm56, %v1831, 0
  %v1869 = vsel %vm56, %v1832, 0
  %v1872 = vsel %vm56, %v1833, 0
  %v1875 = vsel %vm56, %v1834, 0
  %v1878 = vsel %vm56, %v1835, 0
  %v1881 = vsel %vm56, %v1836, 0
  %v1884 = vsel %vm56, %v1837, 0
  %v1887 = vsel %vm105, %v22, 0
  %1889 = vmatprep.subr.mxu0 0.0
  %1890 = vmatpush1.msra.mxu0 %v1887
  %1891 = vmatprep.subr.mxu0 0.0
  %1892 = vmatpush1.msra.mxu0 0.0
  %1893 = vmatprep.subr.mxu0 0.0
  %1894 = vmatpush1.msra.mxu0 0.0
  %1895 = vmatprep.subr.mxu0 0.0
  %1896 = vmatpush1.msra.mxu0 0.0
  %1897 = vmatprep.subr.mxu0 0.0
  %1898 = vmatpush1.msra.mxu0 0.0
  %1899 = vmatprep.subr.mxu0 0.0
  %1900 = vmatpush1.msra.mxu0 0.0
  %1901 = vmatprep.subr.mxu0 0.0
  %1902 = vmatpush1.msra.mxu0 0.0
  %1903 = vmatprep.subr.mxu0 0.0
  %1904 = vmatpush1.msra.mxu0 0.0
  %1905 = vmatprep.subr.mxu0 0.0
  %1906 = vmatpush1.msra.mxu0 0.0
  %1907 = vmatprep.subr.mxu0 0.0
  %1908 = vmatpush1.msra.mxu0 0.0
  %1909 = vmatprep.subr.mxu0 0.0
  %1910 = vmatpush1.msra.mxu0 0.0
  %1911 = vmatprep.subr.mxu0 0.0
  %1912 = vmatpush1.msra.mxu0 0.0
  %1913 = vmatprep.subr.mxu0 0.0
  %1914 = vmatpush1.msra.mxu0 0.0
  %1915 = vmatprep.subr.mxu0 0.0
  %1916 = vmatpush1.msra.mxu0 0.0
  %1917 = vmatprep.subr.mxu0 0.0
  %1918 = vmatpush1.msra.mxu0 0.0
  %1919 = vmatprep.subr.mxu0 0.0
  %1920 = vmatpush1.msra.mxu0 0.0
  %1921 = vmatprep.subr.mxu0 0.0
  %1922 = vmatpush1.msra.mxu0 0.0
  %1923 = vmatprep.subr.mxu0 0.0
  %1924 = vmatpush1.msra.mxu0 0.0
  %1925 = vmatprep.subr.mxu0 0.0
  %1926 = vmatpush1.msra.mxu0 0.0
  %1927 = vmatprep.subr.mxu0 0.0
  %1928 = vmatpush1.msra.mxu0 0.0
  %1929 = vmatprep.subr.mxu0 0.0
  %1930 = vmatpush1.msra.mxu0 0.0
  %1931 = vmatprep.subr.mxu0 0.0
  %1932 = vmatpush1.msra.mxu0 0.0
  %1933 = vmatprep.subr.mxu0 0.0
  %1934 = vmatpush1.msra.mxu0 0.0
  %1935 = vmatprep.subr.mxu0 0.0
  %1936 = vmatpush1.msra.mxu0 0.0
  %1937 = vmatprep.subr.mxu0 0.0
  %1938 = vmatpush1.msra.mxu0 0.0
  %1939 = vmatprep.subr.mxu0 0.0
  %1940 = vmatpush1.msra.mxu0 0.0
  %1941 = vmatprep.subr.mxu0 0.0
  %1942 = vmatpush1.msra.mxu0 0.0
  %1943 = vmatprep.subr.mxu0 0.0
  %1944 = vmatpush1.msra.mxu0 0.0
  %1945 = vmatprep.subr.mxu0 0.0
  %1946 = vmatpush1.msra.mxu0 0.0
  %1947 = vmatprep.subr.mxu0 0.0
  %1948 = vmatpush1.msra.mxu0 0.0
  %1949 = vmatprep.subr.mxu0 0.0
  %1950 = vmatpush1.msra.mxu0 0.0
  %1951 = vmatprep.subr.mxu0 0.0
  %1952 = vmatpush1.msra.mxu0 0.0
  %1953 = vmatprep.mubr.f32.mxu0 0.0
  %1954 = vmatmul.mubr.f32.gmra.mrb[0].mxu0 %v1839
  %v1955 = vpop.f32.mrb[0].mxu0
  %v1956 = vadd.f32 0.0, %v1955
  %v1957 = vpop.f32.mrb[0].mxu0
  %1958 = vmatprep.mubr.f32.mxu0 0.0
  %1959 = vmatmul.mubr.f32.gmra.mrb[0].mxu0 %v1842
  %v1960 = vpop.f32.mrb[0].mxu0
  %v1961 = vadd.f32 0.0, %v1960
  %v1962 = vpop.f32.mrb[0].mxu0
  %1963 = vmatprep.mubr.f32.mxu0 0.0
  %1964 = vmatmul.mubr.f32.gmra.mrb[0].mxu0 %v1845
  %v1965 = vpop.f32.mrb[0].mxu0
  %v1966 = vadd.f32 0.0, %v1965
  %v1967 = vpop.f32.mrb[0].mxu0
  %1968 = vmatprep.mubr.f32.mxu0 0.0
  %1969 = vmatmul.mubr.f32.gmra.mrb[0].mxu0 %v1848
  %v1970 = vpop.f32.mrb[0].mxu0
  %v1971 = vadd.f32 0.0, %v1970
  %v1972 = vpop.f32.mrb[0].mxu0
  %1973 = vmatprep.mubr.f32.mxu0 0.0
  %1974 = vmatmul.mubr.f32.gmra.mrb[0].mxu0 %v1851
  %v1975 = vpop.f32.mrb[0].mxu0
  %v1976 = vadd.f32 0.0, %v1975
  %v1977 = vpop.f32.mrb[0].mxu0
  %1978 = vmatprep.mubr.f32.mxu0 0.0
  %1979 = vmatmul.mubr.f32.gmra.mrb[0].mxu0 %v1854
  %v1980 = vpop.f32.mrb[0].mxu0
  %v1981 = vadd.f32 0.0, %v1980
  %v1982 = vpop.f32.mrb[0].mxu0
  %1983 = vmatprep.mubr.f32.mxu0 0.0
  %1984 = vmatmul.mubr.f32.gmra.mrb[0].mxu0 %v1857
  %v1985 = vpop.f32.mrb[0].mxu0
  %v1986 = vadd.f32 0.0, %v1985
  %v1987 = vpop.f32.mrb[0].mxu0
  %1988 = vmatprep.mubr.f32.mxu0 0.0
  %1989 = vmatmul.mubr.f32.gmra.mrb[0].mxu0 %v1860
  %v1990 = vpop.f32.mrb[0].mxu0
  %v1991 = vadd.f32 0.0, %v1990
  %v1992 = vpop.f32.mrb[0].mxu0
  %1993 = vmatprep.mubr.f32.mxu0 0.0
  %1994 = vmatmul.mubr.f32.gmra.mrb[0].mxu0 %v1863
  %v1995 = vpop.f32.mrb[0].mxu0
  %v1996 = vadd.f32 0.0, %v1995
  %v1997 = vpop.f32.mrb[0].mxu0
  %1998 = vmatprep.mubr.f32.mxu0 0.0
  %1999 = vmatmul.mubr.f32.gmra.mrb[0].mxu0 %v1866
  %v2000 = vpop.f32.mrb[0].mxu0
  %v2001 = vadd.f32 0.0, %v2000
  %v2002 = vpop.f32.mrb[0].mxu0
  %2003 = vmatprep.mubr.f32.mxu0 0.0
  %2004 = vmatmul.mubr.f32.gmra.mrb[0].mxu0 %v1869
  %v2005 = vpop.f32.mrb[0].mxu0
  %v2006 = vadd.f32 0.0, %v2005
  %v2007 = vpop.f32.mrb[0].mxu0
  %2008 = vmatprep.mubr.f32.mxu0 0.0
  %2009 = vmatmul.mubr.f32.gmra.mrb[0].mxu0 %v1872
  %v2010 = vpop.f32.mrb[0].mxu0
  %v2011 = vadd.f32 0.0, %v2010
  %v2012 = vpop.f32.mrb[0].mxu0
  %2013 = vmatprep.mubr.f32.mxu0 0.0
  %2014 = vmatmul.mubr.f32.gmra.mrb[0].mxu0 %v1875
  %v2015 = vpop.f32.mrb[0].mxu0
  %v2016 = vadd.f32 0.0, %v2015
  %v2017 = vpop.f32.mrb[0].mxu0
  %2018 = vmatprep.mubr.f32.mxu0 0.0
  %2019 = vmatmul.mubr.f32.gmra.mrb[0].mxu0 %v1878
  %v2020 = vpop.f32.mrb[0].mxu0
  %v2021 = vadd.f32 0.0, %v2020
  %v2022 = vpop.f32.mrb[0].mxu0
  %2023 = vmatprep.mubr.f32.mxu0 0.0
  %2024 = vmatmul.mubr.f32.gmra.mrb[0].mxu0 %v1881
  %v2025 = vpop.f32.mrb[0].mxu0
  %v2026 = vadd.f32 0.0, %v2025
  %v2027 = vpop.f32.mrb[0].mxu0
  %2028 = vmatprep.mubr.f32.mxu0 0.0
  %2029 = vmatmul.mubr.f32.gmra.mrb[0].mxu0 %v1884
  %v2030 = vpop.f32.mrb[0].mxu0
  %v2031 = vadd.f32 0.0, %v2030
  %v2032 = vpop.f32.mrb[0].mxu0
  %2033 = vdwg.mxu0
  %v2034 = vadd.f32 %v1806, %v1956
  %v2035 = vadd.f32 %v1807, %v1961
  %v2036 = vadd.f32 %v1808, %v1966
  %v2037 = vadd.f32 %v1809, %v1971
  %v2038 = vadd.f32 %v1810, %v1976
  %v2039 = vadd.f32 %v1811, %v1981
  %v2040 = vadd.f32 %v1812, %v1986
  %v2041 = vadd.f32 %v1813, %v1991
  %v2042 = vadd.f32 %v1814, %v1996
  %v2043 = vadd.f32 %v1815, %v2001
  %v2044 = vadd.f32 %v1816, %v2006
  %v2045 = vadd.f32 %v1817, %v2011
  %v2046 = vadd.f32 %v1818, %v2016
  %v2047 = vadd.f32 %v1819, %v2021
  %v2048 = vadd.f32 %v1820, %v2026
  %v2049 = vadd.f32 %v1821, %v2031
  %v2050 = vld [vmem:[%s2] sm:$0x1]
  %v2052 = vlaneseq
  %v2053 = vshrl.u32 %v2052, 7
  %v2054 = vsub.s32 0, %v2053
  %v2055 = vrot.slane %v2050, %v2054
  %v2057 = vadd.f32 %v2034, %v2055
  %v2058 = vadd.f32 %v2035, %v2055
  %v2059 = vadd.f32 %v2036, %v2055
  %v2060 = vadd.f32 %v2037, %v2055
  %v2061 = vadd.f32 %v2038, %v2055
  %v2062 = vadd.f32 %v2039, %v2055
  %v2063 = vadd.f32 %v2040, %v2055
  %v2064 = vadd.f32 %v2041, %v2055
  %v2065 = vadd.f32 %v2042, %v2055
  %v2066 = vadd.f32 %v2043, %v2055
  %v2067 = vadd.f32 %v2044, %v2055
  %v2068 = vadd.f32 %v2045, %v2055
  %v2069 = vadd.f32 %v2046, %v2055
  %v2070 = vadd.f32 %v2047, %v2055
  %v2071 = vadd.f32 %v2048, %v2055
  %v2072 = vadd.f32 %v2049, %v2055
  %v2073 = vxor.u32 %v2057, 2147483648
  %v2074 = vxor.u32 %v2058, 2147483648
  %v2075 = vxor.u32 %v2059, 2147483648
  %v2076 = vxor.u32 %v2060, 2147483648
  %v2077 = vxor.u32 %v2061, 2147483648
  %v2078 = vxor.u32 %v2062, 2147483648
  %v2079 = vxor.u32 %v2063, 2147483648
  %v2080 = vxor.u32 %v2064, 2147483648
  %v2081 = vxor.u32 %v2065, 2147483648
  %v2082 = vxor.u32 %v2066, 2147483648
  %v2083 = vxor.u32 %v2067, 2147483648
  %v2084 = vxor.u32 %v2068, 2147483648
  %v2085 = vxor.u32 %v2069, 2147483648
  %v2086 = vxor.u32 %v2070, 2147483648
  %v2087 = vxor.u32 %v2071, 2147483648
  %v2088 = vxor.u32 %v2072, 2147483648
  %v2089 = vmul.f32 %v2073, 1.442695
  %v2090 = vpow.pop %v2089
  %v2091 = vmul.f32 %v2074, 1.442695
  %v2092 = vpow.pop %v2091
  %v2093 = vmul.f32 %v2075, 1.442695
  %v2094 = vpow.pop %v2093
  %v2095 = vmul.f32 %v2076, 1.442695
  %v2096 = vpow.pop %v2095
  %v2097 = vmul.f32 %v2077, 1.442695
  %v2098 = vpow.pop %v2097
  %v2099 = vmul.f32 %v2078, 1.442695
  %v2100 = vpow.pop %v2099
  %v2101 = vmul.f32 %v2079, 1.442695
  %v2102 = vpow.pop %v2101
  %v2103 = vmul.f32 %v2080, 1.442695
  %v2104 = vpow.pop %v2103
  %v2105 = vmul.f32 %v2081, 1.442695
  %v2106 = vpow.pop %v2105
  %v2107 = vmul.f32 %v2082, 1.442695
  %v2108 = vpow.pop %v2107
  %v2109 = vmul.f32 %v2083, 1.442695
  %v2110 = vpow.pop %v2109
  %v2111 = vmul.f32 %v2084, 1.442695
  %v2112 = vpow.pop %v2111
  %v2113 = vmul.f32 %v2085, 1.442695
  %v2114 = vpow.pop %v2113
  %v2115 = vmul.f32 %v2086, 1.442695
  %v2116 = vpow.pop %v2115
  %v2117 = vmul.f32 %v2087, 1.442695
  %v2118 = vpow.pop %v2117
  %v2119 = vmul.f32 %v2088, 1.442695
  %v2120 = vpow.pop %v2119
  %v2121 = vadd.f32 %v2090, 1.0
  %v2122 = vadd.f32 %v2092, 1.0
  %v2123 = vadd.f32 %v2094, 1.0
  %v2124 = vadd.f32 %v2096, 1.0
  %v2125 = vadd.f32 %v2098, 1.0
  %v2126 = vadd.f32 %v2100, 1.0
  %v2127 = vadd.f32 %v2102, 1.0
  %v2128 = vadd.f32 %v2104, 1.0
  %v2129 = vadd.f32 %v2106, 1.0
  %v2130 = vadd.f32 %v2108, 1.0
  %v2131 = vadd.f32 %v2110, 1.0
  %v2132 = vadd.f32 %v2112, 1.0
  %v2133 = vadd.f32 %v2114, 1.0
  %v2134 = vadd.f32 %v2116, 1.0
  %v2135 = vadd.f32 %v2118, 1.0
  %v2136 = vadd.f32 %v2120, 1.0
  %v2137 = vrcp.pop %v2121
  %v2138 = vmul.f32 1.0, %v2137
  %v2139 = vrcp.pop %v2122
  %v2140 = vmul.f32 1.0, %v2139
  %v2141 = vrcp.pop %v2123
  %v2142 = vmul.f32 1.0, %v2141
  %v2143 = vrcp.pop %v2124
  %v2144 = vmul.f32 1.0, %v2143
  %v2145 = vrcp.pop %v2125
  %v2146 = vmul.f32 1.0, %v2145
  %v2147 = vrcp.pop %v2126
  %v2148 = vmul.f32 1.0, %v2147
  %v2149 = vrcp.pop %v2127
  %v2150 = vmul.f32 1.0, %v2149
  %v2151 = vrcp.pop %v2128
  %v2152 = vmul.f32 1.0, %v2151
  %v2153 = vrcp.pop %v2129
  %v2154 = vmul.f32 1.0, %v2153
  %v2155 = vrcp.pop %v2130
  %v2156 = vmul.f32 1.0, %v2155
  %v2157 = vrcp.pop %v2131
  %v2158 = vmul.f32 1.0, %v2157
  %v2159 = vrcp.pop %v2132
  %v2160 = vmul.f32 1.0, %v2159
  %v2161 = vrcp.pop %v2133
  %v2162 = vmul.f32 1.0, %v2161
  %v2163 = vrcp.pop %v2134
  %v2164 = vmul.f32 1.0, %v2163
  %v2165 = vrcp.pop %v2135
  %v2166 = vmul.f32 1.0, %v2165
  %v2167 = vrcp.pop %v2136
  %v2168 = vmul.f32 1.0, %v2167
  %v2169 = vmul.f32 %v2057, %v2138
  %v2170 = vmul.f32 %v2058, %v2140
  %v2171 = vmul.f32 %v2059, %v2142
  %v2172 = vmul.f32 %v2060, %v2144
  %v2173 = vmul.f32 %v2061, %v2146
  %v2174 = vmul.f32 %v2062, %v2148
  %v2175 = vmul.f32 %v2063, %v2150
  %v2176 = vmul.f32 %v2064, %v2152
  %v2177 = vmul.f32 %v2065, %v2154
  %v2178 = vmul.f32 %v2066, %v2156
  %v2179 = vmul.f32 %v2067, %v2158
  %v2180 = vmul.f32 %v2068, %v2160
  %v2181 = vmul.f32 %v2069, %v2162
  %v2182 = vmul.f32 %v2070, %v2164
  %v2183 = vmul.f32 %v2071, %v2166
  %v2184 = vmul.f32 %v2072, %v2168
  %v2185 = vpack.c.bf16 %v2170, %v2169
  %v2186 = vpack.c.bf16 %v2172, %v2171
  %v2187 = vpack.c.bf16 %v2174, %v2173
  %v2188 = vpack.c.bf16 %v2176, %v2175
  %v2189 = vpack.c.bf16 %v2178, %v2177
  %v2190 = vpack.c.bf16 %v2180, %v2179
  %v2191 = vpack.c.bf16 %v2182, %v2181
  %v2192 = vpack.c.bf16 %v2184, %v2183
  %v2201 = vunpack.c.l.b16 %v2185
  %v2202 = vunpack.c.h.b16 %v2185
  %v2203 = vunpack.c.l.b16 %v2186
  %v2204 = vunpack.c.h.b16 %v2186
  %v2205 = vunpack.c.l.b16 %v2187
  %v2206 = vunpack.c.h.b16 %v2187
  %v2207 = vunpack.c.l.b16 %v2188
  %v2208 = vunpack.c.h.b16 %v2188
  %v2209 = vunpack.c.l.b16 %v2189
  %v2210 = vunpack.c.h.b16 %v2189
  %v2211 = vunpack.c.l.b16 %v2190
  %v2212 = vunpack.c.h.b16 %v2190
  %v2213 = vunpack.c.l.b16 %v2191
  %v2214 = vunpack.c.h.b16 %v2191
  %v2215 = vunpack.c.l.b16 %v2192
  %v2216 = vunpack.c.h.b16 %v2192
  %v2217 = vpack.c.b16 %v2201, %v2201
  %v2218 = vpack.c.b16 %v2202, %v2202
  %v2219 = vpack.c.b16 %v2203, %v2203
  %v2220 = vpack.c.b16 %v2204, %v2204
  %v2221 = vpack.c.b16 %v2205, %v2205
  %v2222 = vpack.c.b16 %v2206, %v2206
  %v2223 = vpack.c.b16 %v2207, %v2207
  %v2224 = vpack.c.b16 %v2208, %v2208
  %v2225 = vpack.c.b16 %v2209, %v2209
  %v2226 = vpack.c.b16 %v2210, %v2210
  %v2227 = vpack.c.b16 %v2211, %v2211
  %v2228 = vpack.c.b16 %v2212, %v2212
  %v2229 = vpack.c.b16 %v2213, %v2213
  %v2230 = vpack.c.b16 %v2214, %v2214
  %v2231 = vpack.c.b16 %v2215, %v2215
  %v2232 = vpack.c.b16 %v2216, %v2216
  %vm2249 = vcmask 125952
  %2250 = vst.msk [vmem:[%s3] sm:$0xf] %vm2249, %v2217
  %2251 = vst.msk [vmem:[%s3 + $0x4] sm:$0xf] %vm2249, %v2218
  %2252 = vst.msk [vmem:[%s3 + $0x8] sm:$0xf] %vm2249, %v2219
  %2253 = vst.msk [vmem:[%s3 + $0xc] sm:$0xf] %vm2249, %v2220
  %2254 = vst.msk [vmem:[%s3 + $0x10] sm:$0xf] %vm2249, %v2221
  %2255 = vst.msk [vmem:[%s3 + $0x14] sm:$0xf] %vm2249, %v2222
  %2256 = vst.msk [vmem:[%s3 + $0x18] sm:$0xf] %vm2249, %v2223
  %2257 = vst.msk [vmem:[%s3 + $0x1c] sm:$0xf] %vm2249, %v2224
  %2258 = vst.msk [vmem:[%s3 + $0x20] sm:$0xf] %vm2249, %v2225
  %2259 = vst.msk [vmem:[%s3 + $0x24] sm:$0xf] %vm2249, %v2226
  %2260 = vst.msk [vmem:[%s3 + $0x28] sm:$0xf] %vm2249, %v2227
  %2261 = vst.msk [vmem:[%s3 + $0x2c] sm:$0xf] %vm2249, %v2228
  %2262 = vst.msk [vmem:[%s3 + $0x30] sm:$0xf] %vm2249, %v2229
  %2263 = vst.msk [vmem:[%s3 + $0x34] sm:$0xf] %vm2249, %v2230
  %2264 = vst.msk [vmem:[%s3 + $0x38] sm:$0xf] %vm2249, %v2231
  %2265 = vst.msk [vmem:[%s3 + $0x3c] sm:$0xf] %vm2249, %v2232
  // Predicated region
  $region14: #{effnet_forward.3} parent=0 // pred_check
    _
  $region15: #{effnet_forward.3} parent=0 // pred_check_branch
    %2267 = sbr.rel (0) target = $region17
  $region16: #{effnet_forward.3} parent=0 // pred_region
    _
  $region17: #{effnet_forward.3} parent=0 // pred_fallthru
    _
  // Predicated region
  $region18: #{effnet_forward.3} parent=0 // pred_check
    _
  $region19: #{effnet_forward.3} parent=0 // pred_check_branch
    %2269 = sbr.rel (0) target = $region21
  $region20: #{effnet_forward.3} parent=0 // pred_region
    _
  $region21: #{effnet_forward.3} parent=0 // pred_fallthru
    _

// kernel: effnet_forward.4
$region0: #{effnet_forward.4}
  #allocation0 [shape = 'u32[]', space=smem, size = 0x4, offset = 0x4, fixed_abs, tag = 'smem constant byte address 0x4 - core index']
  #allocation1 [shape = 'u32[144,128]{1,0:T(1,128)}', space=vmem, size = 0x12000, scoped, tag = 'internal scratch']
  #allocation2 [shape = 'f32[2,10,10,64]{3,2,1,0:T(8,128)}', space=vmem, size = 0x28000, scoped, tag = 'scratch operand']
  %s0 = inlined_call_operand.vmem [shape: bf16[128,16], index: 0, kind: input, shape index: {}]
  %s1 = inlined_call_operand.vmem [shape: bf16[16,64], index: 1, kind: input, shape index: {}]
  %s2 = inlined_call_operand.vmem [shape: f32[1,64], index: 2, kind: input, shape index: {}]
  %s3 = inlined_call_operand.vmem [shape: f32[9,64], index: 3, kind: input, shape index: {}]
  %s4 = inlined_call_operand.vmem [shape: f32[1,64], index: 4, kind: input, shape index: {}]
  %s5 = inlined_call_operand.vmem [shape: bf16[64,4], index: 5, kind: input, shape index: {}]
  %s6 = inlined_call_operand.vmem [shape: f32[1,4], index: 6, kind: input, shape index: {}]
  %s7 = inlined_call_operand.vmem [shape: bf16[4,64], index: 7, kind: input, shape index: {}]
  %s8 = inlined_call_operand.vmem [shape: f32[1,64], index: 8, kind: input, shape index: {}]
  %s9 = inlined_call_operand.vmem [shape: bf16[64,16], index: 9, kind: input, shape index: {}]
  %s10 = inlined_call_operand.vmem [shape: f32[1,16], index: 10, kind: input, shape index: {}]
  %s11 = inlined_call_operand.vmem [shape: bf16[128,16], index: 11, kind: output, shape index: {}]
  %s12 = sld [smem:[#allocation0]]
  $region54: #{effnet_forward.4} parent=0
    _
  %s14 = ssub.s32 1, %s12
  %s15 = scalar_select 0, %s14, %s12
  // Predicated region
  $region2: #{effnet_forward.4} parent=0 // pred_check
    _
  $region3: #{effnet_forward.4} parent=0 // pred_check_branch
    %17 = sbr.rel (0) target = $region5
  $region4: #{effnet_forward.4} parent=0 // pred_region
    _
  $region5: #{effnet_forward.4} parent=0 // pred_fallthru
    _
  // Predicated region
  $region6: #{effnet_forward.4} parent=0 // pred_check
    _
  $region7: #{effnet_forward.4} parent=0 // pred_check_branch
    %19 = sbr.rel (0) target = $region9
  $region8: #{effnet_forward.4} parent=0 // pred_region
    _
  $region9: #{effnet_forward.4} parent=0 // pred_fallthru
    _
  // Predicated region
  $region10: #{effnet_forward.4} parent=0 // pred_check
    _
  $region11: #{effnet_forward.4} parent=0 // pred_check_branch
    %21 = sbr.rel (0) target = $region13
  $region12: #{effnet_forward.4} parent=0 // pred_region
    _
  $region13: #{effnet_forward.4} parent=0 // pred_fallthru
    _
  // Predicated region
  $region14: #{effnet_forward.4} parent=0 // pred_check
    _
  $region15: #{effnet_forward.4} parent=0 // pred_check_branch
    %23 = sbr.rel (0) target = $region17
  $region16: #{effnet_forward.4} parent=0 // pred_region
    _
  $region17: #{effnet_forward.4} parent=0 // pred_fallthru
    _
  // Predicated region
  $region18: #{effnet_forward.4} parent=0 // pred_check
    _
  $region19: #{effnet_forward.4} parent=0 // pred_check_branch
    %25 = sbr.rel (0) target = $region21
  $region20: #{effnet_forward.4} parent=0 // pred_region
    _
  $region21: #{effnet_forward.4} parent=0 // pred_fallthru
    _
  // Predicated region
  $region22: #{effnet_forward.4} parent=0 // pred_check
    _
  $region23: #{effnet_forward.4} parent=0 // pred_check_branch
    %27 = sbr.rel (0) target = $region25
  $region24: #{effnet_forward.4} parent=0 // pred_region
    _
  $region25: #{effnet_forward.4} parent=0 // pred_fallthru
    _
  // Predicated region
  $region26: #{effnet_forward.4} parent=0 // pred_check
    _
  $region27: #{effnet_forward.4} parent=0 // pred_check_branch
    %29 = sbr.rel (0) target = $region29
  $region28: #{effnet_forward.4} parent=0 // pred_region
    _
  $region29: #{effnet_forward.4} parent=0 // pred_fallthru
    _
  // Predicated region
  $region30: #{effnet_forward.4} parent=0 // pred_check
    _
  $region31: #{effnet_forward.4} parent=0 // pred_check_branch
    %31 = sbr.rel (0) target = $region33
  $region32: #{effnet_forward.4} parent=0 // pred_region
    _
  $region33: #{effnet_forward.4} parent=0 // pred_fallthru
    _
  // Predicated region
  $region34: #{effnet_forward.4} parent=0 // pred_check
    _
  $region35: #{effnet_forward.4} parent=0 // pred_check_branch
    %33 = sbr.rel (0) target = $region37
  $region36: #{effnet_forward.4} parent=0 // pred_region
    _
  $region37: #{effnet_forward.4} parent=0 // pred_fallthru
    _
  // Predicated region
  $region38: #{effnet_forward.4} parent=0 // pred_check
    _
  $region39: #{effnet_forward.4} parent=0 // pred_check_branch
    %35 = sbr.rel (0) target = $region41
  $region40: #{effnet_forward.4} parent=0 // pred_region
    _
  $region41: #{effnet_forward.4} parent=0 // pred_fallthru
    _
  // Predicated region
  $region42: #{effnet_forward.4} parent=0 // pred_check
    _
  $region43: #{effnet_forward.4} parent=0 // pred_check_branch
    %37 = sbr.rel (0) target = $region45
  $region44: #{effnet_forward.4} parent=0 // pred_region
    _
  $region45: #{effnet_forward.4} parent=0 // pred_fallthru
    _
  %v39 = vld [vmem:[%s0] sm:$0xf]
  %v40 = vld [vmem:[%s0 + $0x4] sm:$0xf]
  %v41 = vld [vmem:[%s0 + $0x8] sm:$0xf]
  %v42 = vld [vmem:[%s0 + $0xc] sm:$0xf]
  %v43 = vld [vmem:[%s0 + $0x10] sm:$0xf]
  %v44 = vld [vmem:[%s0 + $0x14] sm:$0xf]
  %v45 = vld [vmem:[%s0 + $0x18] sm:$0xf]
  %v46 = vld [vmem:[%s0 + $0x1c] sm:$0xf]
  %v47 = vld [vmem:[%s0 + $0x20] sm:$0xf]
  %v48 = vld [vmem:[%s0 + $0x24] sm:$0xf]
  %v49 = vld [vmem:[%s0 + $0x28] sm:$0xf]
  %v50 = vld [vmem:[%s0 + $0x2c] sm:$0xf]
  %v51 = vld [vmem:[%s0 + $0x30] sm:$0xf]
  %v52 = vld [vmem:[%s0 + $0x34] sm:$0xf]
  %v53 = vld [vmem:[%s0 + $0x38] sm:$0xf]
  %v54 = vld [vmem:[%s0 + $0x3c] sm:$0xf]
  %v55 = vld [vmem:[%s1] sm:$0xf]
  %v56 = vld [vmem:[%s1 + $0x4] sm:$0xf]
  %v57 = vld [vmem:[%s2] sm:$0x1]
  %v59 = vlaneseq
  %v60 = vshrl.u32 %v59, 7
  %v61 = vsub.s32 0, %v60
  %v62 = vrot.slane %v57, %v61
  %v80 = vunpack.c.l.b16 %v39
  %v81 = vunpack.c.l.b16 %v40
  %v82 = vunpack.c.l.b16 %v41
  %v83 = vunpack.c.l.b16 %v42
  %v84 = vunpack.c.l.b16 %v43
  %v85 = vunpack.c.l.b16 %v44
  %v86 = vunpack.c.l.b16 %v45
  %v87 = vunpack.c.l.b16 %v46
  %v88 = vunpack.c.l.b16 %v47
  %v89 = vunpack.c.l.b16 %v48
  %v90 = vunpack.c.l.b16 %v49
  %v91 = vunpack.c.l.b16 %v50
  %v92 = vunpack.c.l.b16 %v51
  %v93 = vunpack.c.l.b16 %v52
  %v94 = vunpack.c.l.b16 %v53
  %v95 = vunpack.c.l.b16 %v54
  %v96 = vpack.c.b16 %v81, %v80
  %v97 = vpack.c.b16 %v83, %v82
  %v98 = vpack.c.b16 %v85, %v84
  %v99 = vpack.c.b16 %v87, %v86
  %v100 = vpack.c.b16 %v89, %v88
  %v101 = vpack.c.b16 %v91, %v90
  %v102 = vpack.c.b16 %v93, %v92
  %v103 = vpack.c.b16 %v95, %v94
  %v106 = vunpack.c.l.b16 %v55
  %v107 = vunpack.c.l.b16 %v56
  %v108 = vpack.c.b16 %v107, %v106
  %vm110 = vcmask 130048
  %v112 = vsel %vm110, %v96, 0
  %v115 = vsel %vm110, %v97, 0
  %v118 = vsel %vm110, %v98, 0
  %v121 = vsel %vm110, %v99, 0
  %v124 = vsel %vm110, %v100, 0
  %v127 = vsel %vm110, %v101, 0
  %v130 = vsel %vm110, %v102, 0
  %v133 = vsel %vm110, %v103, 0
  %135 = vmatprep.subr.bf16.mxu0 0
  %136 = vmatpush1.bf16.msra.mxu0 %v108
  %137 = vmatprep.subr.bf16.mxu0 0
  %138 = vmatpush1.bf16.msra.mxu0 0
  %139 = vmatprep.subr.bf16.mxu0 0
  %140 = vmatpush1.bf16.msra.mxu0 0
  %141 = vmatprep.subr.bf16.mxu0 0
  %142 = vmatpush1.bf16.msra.mxu0 0
  %143 = vmatprep.subr.bf16.mxu0 0
  %144 = vmatpush1.bf16.msra.mxu0 0
  %145 = vmatprep.subr.bf16.mxu0 0
  %146 = vmatpush1.bf16.msra.mxu0 0
  %147 = vmatprep.subr.bf16.mxu0 0
  %148 = vmatpush1.bf16.msra.mxu0 0
  %149 = vmatprep.subr.bf16.mxu0 0
  %150 = vmatpush1.bf16.msra.mxu0 0
  %151 = vmatprep.subr.bf16.mxu0 0
  %152 = vmatpush1.bf16.msra.mxu0 0
  %153 = vmatprep.subr.bf16.mxu0 0
  %154 = vmatpush1.bf16.msra.mxu0 0
  %155 = vmatprep.subr.bf16.mxu0 0
  %156 = vmatpush1.bf16.msra.mxu0 0
  %157 = vmatprep.subr.bf16.mxu0 0
  %158 = vmatpush1.bf16.msra.mxu0 0
  %159 = vmatprep.subr.bf16.mxu0 0
  %160 = vmatpush1.bf16.msra.mxu0 0
  %161 = vmatprep.subr.bf16.mxu0 0
  %162 = vmatpush1.bf16.msra.mxu0 0
  %163 = vmatprep.subr.bf16.mxu0 0
  %164 = vmatpush1.bf16.msra.mxu0 0
  %165 = vmatprep.subr.bf16.mxu0 0
  %166 = vmatpush1.bf16.msra.mxu0 0
  %167 = vmatprep.mubr.bf16.mxu0 0
  %168 = vmatmul.mubr.bf16.gmra.mrb[0].mxu0 %v112
  %v169 = vpop.f32.mrb[0].mxu0
  %v170 = vadd.f32 %v62, %v169
  %v171 = vpop.f32.mrb[0].mxu0
  %v172 = vpop.f32.mrb[0].mxu0
  %v173 = vadd.f32 %v62, %v172
  %v174 = vpop.f32.mrb[0].mxu0
  %175 = vmatprep.mubr.bf16.mxu0 0
  %176 = vmatmul.mubr.bf16.gmra.mrb[0].mxu0 %v115
  %v177 = vpop.f32.mrb[0].mxu0
  %v178 = vadd.f32 %v62, %v177
  %v179 = vpop.f32.mrb[0].mxu0
  %v180 = vpop.f32.mrb[0].mxu0
  %v181 = vadd.f32 %v62, %v180
  %v182 = vpop.f32.mrb[0].mxu0
  %183 = vmatprep.mubr.bf16.mxu0 0
  %184 = vmatmul.mubr.bf16.gmra.mrb[0].mxu0 %v118
  %v185 = vpop.f32.mrb[0].mxu0
  %v186 = vadd.f32 %v62, %v185
  %v187 = vpop.f32.mrb[0].mxu0
  %v188 = vpop.f32.mrb[0].mxu0
  %v189 = vadd.f32 %v62, %v188
  %v190 = vpop.f32.mrb[0].mxu0
  %191 = vmatprep.mubr.bf16.mxu0 0
  %192 = vmatmul.mubr.bf16.gmra.mrb[0].mxu0 %v121
  %v193 = vpop.f32.mrb[0].mxu0
  %v194 = vadd.f32 %v62, %v193
  %v195 = vpop.f32.mrb[0].mxu0
  %v196 = vpop.f32.mrb[0].mxu0
  %v197 = vadd.f32 %v62, %v196
  %v198 = vpop.f32.mrb[0].mxu0
  %199 = vmatprep.mubr.bf16.mxu0 0
  %200 = vmatmul.mubr.bf16.gmra.mrb[0].mxu0 %v124
  %v201 = vpop.f32.mrb[0].mxu0
  %v202 = vadd.f32 %v62, %v201
  %v203 = vpop.f32.mrb[0].mxu0
  %v204 = vpop.f32.mrb[0].mxu0
  %v205 = vadd.f32 %v62, %v204
  %v206 = vpop.f32.mrb[0].mxu0
  %207 = vmatprep.mubr.bf16.mxu0 0
  %208 = vmatmul.mubr.bf16.gmra.mrb[0].mxu0 %v127
  %v209 = vpop.f32.mrb[0].mxu0
  %v210 = vadd.f32 %v62, %v209
  %v211 = vpop.f32.mrb[0].mxu0
  %v212 = vpop.f32.mrb[0].mxu0
  %v213 = vadd.f32 %v62, %v212
  %v214 = vpop.f32.mrb[0].mxu0
  %215 = vmatprep.mubr.bf16.mxu0 0
  %216 = vmatmul.mubr.bf16.gmra.mrb[0].mxu0 %v130
  %v217 = vpop.f32.mrb[0].mxu0
  %v218 = vadd.f32 %v62, %v217
  %v219 = vpop.f32.mrb[0].mxu0
  %v220 = vpop.f32.mrb[0].mxu0
  %v221 = vadd.f32 %v62, %v220
  %v222 = vpop.f32.mrb[0].mxu0
  %223 = vmatprep.mubr.bf16.mxu0 0
  %224 = vmatmul.mubr.bf16.gmra.mrb[0].mxu0 %v133
  %v225 = vpop.f32.mrb[0].mxu0
  %v226 = vadd.f32 %v62, %v225
  %v227 = vpop.f32.mrb[0].mxu0
  %v228 = vpop.f32.mrb[0].mxu0
  %v229 = vadd.f32 %v62, %v228
  %v230 = vpop.f32.mrb[0].mxu0
  %231 = vdwg.mxu0
  %v232 = vxor.u32 %v170, 2147483648
  %v233 = vxor.u32 %v173, 2147483648
  %v234 = vxor.u32 %v178, 2147483648
  %v235 = vxor.u32 %v181, 2147483648
  %v236 = vxor.u32 %v186, 2147483648
  %v237 = vxor.u32 %v189, 2147483648
  %v238 = vxor.u32 %v194, 2147483648
  %v239 = vxor.u32 %v197, 2147483648
  %v240 = vxor.u32 %v202, 2147483648
  %v241 = vxor.u32 %v205, 2147483648
  %v242 = vxor.u32 %v210, 2147483648
  %v243 = vxor.u32 %v213, 2147483648
  %v244 = vxor.u32 %v218, 2147483648
  %v245 = vxor.u32 %v221, 2147483648
  %v246 = vxor.u32 %v226, 2147483648
  %v247 = vxor.u32 %v229, 2147483648
  %v248 = vmul.f32 %v232, 1.442695
  %v249 = vpow.pop %v248
  %v250 = vmul.f32 %v233, 1.442695
  %v251 = vpow.pop %v250
  %v252 = vmul.f32 %v234, 1.442695
  %v253 = vpow.pop %v252
  %v254 = vmul.f32 %v235, 1.442695
  %v255 = vpow.pop %v254
  %v256 = vmul.f32 %v236, 1.442695
  %v257 = vpow.pop %v256
  %v258 = vmul.f32 %v237, 1.442695
  %v259 = vpow.pop %v258
  %v260 = vmul.f32 %v238, 1.442695
  %v261 = vpow.pop %v260
  %v262 = vmul.f32 %v239, 1.442695
  %v263 = vpow.pop %v262
  %v264 = vmul.f32 %v240, 1.442695
  %v265 = vpow.pop %v264
  %v266 = vmul.f32 %v241, 1.442695
  %v267 = vpow.pop %v266
  %v268 = vmul.f32 %v242, 1.442695
  %v269 = vpow.pop %v268
  %v270 = vmul.f32 %v243, 1.442695
  %v271 = vpow.pop %v270
  %v272 = vmul.f32 %v244, 1.442695
  %v273 = vpow.pop %v272
  %v274 = vmul.f32 %v245, 1.442695
  %v275 = vpow.pop %v274
  %v276 = vmul.f32 %v246, 1.442695
  %v277 = vpow.pop %v276
  %v278 = vmul.f32 %v247, 1.442695
  %v279 = vpow.pop %v278
  %v280 = vadd.f32 %v249, 1.0
  %v281 = vadd.f32 %v251, 1.0
  %v282 = vadd.f32 %v253, 1.0
  %v283 = vadd.f32 %v255, 1.0
  %v284 = vadd.f32 %v257, 1.0
  %v285 = vadd.f32 %v259, 1.0
  %v286 = vadd.f32 %v261, 1.0
  %v287 = vadd.f32 %v263, 1.0
  %v288 = vadd.f32 %v265, 1.0
  %v289 = vadd.f32 %v267, 1.0
  %v290 = vadd.f32 %v269, 1.0
  %v291 = vadd.f32 %v271, 1.0
  %v292 = vadd.f32 %v273, 1.0
  %v293 = vadd.f32 %v275, 1.0
  %v294 = vadd.f32 %v277, 1.0
  %v295 = vadd.f32 %v279, 1.0
  %v296 = vrcp.pop %v280
  %v297 = vmul.f32 1.0, %v296
  %v298 = vrcp.pop %v281
  %v299 = vmul.f32 1.0, %v298
  %v300 = vrcp.pop %v282
  %v301 = vmul.f32 1.0, %v300
  %v302 = vrcp.pop %v283
  %v303 = vmul.f32 1.0, %v302
  %v304 = vrcp.pop %v284
  %v305 = vmul.f32 1.0, %v304
  %v306 = vrcp.pop %v285
  %v307 = vmul.f32 1.0, %v306
  %v308 = vrcp.pop %v286
  %v309 = vmul.f32 1.0, %v308
  %v310 = vrcp.pop %v287
  %v311 = vmul.f32 1.0, %v310
  %v312 = vrcp.pop %v288
  %v313 = vmul.f32 1.0, %v312
  %v314 = vrcp.pop %v289
  %v315 = vmul.f32 1.0, %v314
  %v316 = vrcp.pop %v290
  %v317 = vmul.f32 1.0, %v316
  %v318 = vrcp.pop %v291
  %v319 = vmul.f32 1.0, %v318
  %v320 = vrcp.pop %v292
  %v321 = vmul.f32 1.0, %v320
  %v322 = vrcp.pop %v293
  %v323 = vmul.f32 1.0, %v322
  %v324 = vrcp.pop %v294
  %v325 = vmul.f32 1.0, %v324
  %v326 = vrcp.pop %v295
  %v327 = vmul.f32 1.0, %v326
  %v328 = vmul.f32 %v170, %v297
  %v329 = vmul.f32 %v173, %v299
  %v330 = vmul.f32 %v178, %v301
  %v331 = vmul.f32 %v181, %v303
  %v332 = vmul.f32 %v186, %v305
  %v333 = vmul.f32 %v189, %v307
  %v334 = vmul.f32 %v194, %v309
  %v335 = vmul.f32 %v197, %v311
  %v336 = vmul.f32 %v202, %v313
  %v337 = vmul.f32 %v205, %v315
  %v338 = vmul.f32 %v210, %v317
  %v339 = vmul.f32 %v213, %v319
  %v340 = vmul.f32 %v218, %v321
  %v341 = vmul.f32 %v221, %v323
  %v342 = vmul.f32 %v226, %v325
  %v343 = vmul.f32 %v229, %v327
  %vm344 = vcmask 523264
  %345 = vst.msk [vmem:[#allocation2] sm:$0xff] %vm344, 0.0
  %vm346 = vcmask 517120
  %347 = vst.msk [vmem:[#allocation2 + $0x8] sm:$0x3] %vm346, 0.0
  %348 = vst.msk [vmem:[#allocation2 + $0x10] sm:$0xff] %vm344, 0.0
  %349 = vst.msk [vmem:[#allocation2 + $0x18] sm:$0x3] %vm346, 0.0
  %350 = vst.msk [vmem:[#allocation2 + $0x20] sm:$0xff] %vm344, 0.0
  %351 = vst.msk [vmem:[#allocation2 + $0x28] sm:$0x3] %vm346, 0.0
  %352 = vst.msk [vmem:[#allocation2 + $0x30] sm:$0xff] %vm344, 0.0
  %353 = vst.msk [vmem:[#allocation2 + $0x38] sm:$0x3] %vm346, 0.0
  %354 = vst.msk [vmem:[#allocation2 + $0x40] sm:$0xff] %vm344, 0.0
  %355 = vst.msk [vmem:[#allocation2 + $0x48] sm:$0x3] %vm346, 0.0
  %356 = vst.msk [vmem:[#allocation2 + $0x50] sm:$0xff] %vm344, 0.0
  %357 = vst.msk [vmem:[#allocation2 + $0x58] sm:$0x3] %vm346, 0.0
  %358 = vst.msk [vmem:[#allocation2 + $0x60] sm:$0xff] %vm344, 0.0
  %359 = vst.msk [vmem:[#allocation2 + $0x68] sm:$0x3] %vm346, 0.0
  %360 = vst.msk [vmem:[#allocation2 + $0x70] sm:$0xff] %vm344, 0.0
  %361 = vst.msk [vmem:[#allocation2 + $0x78] sm:$0x3] %vm346, 0.0
  %362 = vst.msk [vmem:[#allocation2 + $0x80] sm:$0xff] %vm344, 0.0
  %363 = vst.msk [vmem:[#allocation2 + $0x88] sm:$0x3] %vm346, 0.0
  %364 = vst.msk [vmem:[#allocation2 + $0x90] sm:$0xff] %vm344, 0.0
  %365 = vst.msk [vmem:[#allocation2 + $0x98] sm:$0x3] %vm346, 0.0
  %366 = vst.msk [vmem:[#allocation2 + $0xa0] sm:$0xff] %vm344, 0.0
  %367 = vst.msk [vmem:[#allocation2 + $0xa8] sm:$0x3] %vm346, 0.0
  %368 = vst.msk [vmem:[#allocation2 + $0xb0] sm:$0xff] %vm344, 0.0
  %369 = vst.msk [vmem:[#allocation2 + $0xb8] sm:$0x3] %vm346, 0.0
  %370 = vst.msk [vmem:[#allocation2 + $0xc0] sm:$0xff] %vm344, 0.0
  %371 = vst.msk [vmem:[#allocation2 + $0xc8] sm:$0x3] %vm346, 0.0
  %372 = vst.msk [vmem:[#allocation2 + $0xd0] sm:$0xff] %vm344, 0.0
  %373 = vst.msk [vmem:[#allocation2 + $0xd8] sm:$0x3] %vm346, 0.0
  %374 = vst.msk [vmem:[#allocation2 + $0xe0] sm:$0xff] %vm344, 0.0
  %375 = vst.msk [vmem:[#allocation2 + $0xe8] sm:$0x3] %vm346, 0.0
  %376 = vst.msk [vmem:[#allocation2 + $0xf0] sm:$0xff] %vm344, 0.0
  %377 = vst.msk [vmem:[#allocation2 + $0xf8] sm:$0x3] %vm346, 0.0
  %378 = vst.msk [vmem:[#allocation2 + $0x100] sm:$0xff] %vm344, 0.0
  %379 = vst.msk [vmem:[#allocation2 + $0x108] sm:$0x3] %vm346, 0.0
  %380 = vst.msk [vmem:[#allocation2 + $0x110] sm:$0xff] %vm344, 0.0
  %381 = vst.msk [vmem:[#allocation2 + $0x118] sm:$0x3] %vm346, 0.0
  %382 = vst.msk [vmem:[#allocation2 + $0x120] sm:$0xff] %vm344, 0.0
  %383 = vst.msk [vmem:[#allocation2 + $0x128] sm:$0x3] %vm346, 0.0
  %384 = vst.msk [vmem:[#allocation2 + $0x130] sm:$0xff] %vm344, 0.0
  %385 = vst.msk [vmem:[#allocation2 + $0x138] sm:$0x3] %vm346, 0.0
  %s386 = scalar_lea.vmem [#allocation2], 16
  %387 = vst.msk [vmem:[%s386 + $0x1] sm:$0xff] %vm344, %v328
  %388 = vst.msk [vmem:[%s386 + $0x11] sm:$0xff] %vm344, %v329
  %389 = vst.msk [vmem:[%s386 + $0x21] sm:$0xff] %vm344, %v330
  %390 = vst.msk [vmem:[%s386 + $0x31] sm:$0xff] %vm344, %v331
  %391 = vst.msk [vmem:[%s386 + $0x41] sm:$0xff] %vm344, %v332
  %392 = vst.msk [vmem:[%s386 + $0x51] sm:$0xff] %vm344, %v333
  %393 = vst.msk [vmem:[%s386 + $0x61] sm:$0xff] %vm344, %v334
  %394 = vst.msk [vmem:[%s386 + $0x71] sm:$0xff] %vm344, %v335
  %395 = vst.msk [vmem:[%s386 + $0xa1] sm:$0xff] %vm344, %v336
  %396 = vst.msk [vmem:[%s386 + $0xb1] sm:$0xff] %vm344, %v337
  %397 = vst.msk [vmem:[%s386 + $0xc1] sm:$0xff] %vm344, %v338
  %398 = vst.msk [vmem:[%s386 + $0xd1] sm:$0xff] %vm344, %v339
  %399 = vst.msk [vmem:[%s386 + $0xe1] sm:$0xff] %vm344, %v340
  %400 = vst.msk [vmem:[%s386 + $0xf1] sm:$0xff] %vm344, %v341
  %401 = vst.msk [vmem:[%s386 + $0x101] sm:$0xff] %vm344, %v342
  %402 = vst.msk [vmem:[%s386 + $0x111] sm:$0xff] %vm344, %v343
  %v403 = vld [vmem:[%s3] sm:$0xff]
  %v404 = vld [vmem:[%s3 + $0x8] sm:$0x1]
  %v405 = vld [vmem:[%s4] sm:$0x1]
  %v406 = vld [vmem:[#allocation2] sm:$0xff]
  %v407 = vld [vmem:[#allocation2 + $0x10] sm:$0xff]
  %v408 = vld [vmem:[#allocation2 + $0x20] sm:$0xff]
  %v409 = vld [vmem:[#allocation2 + $0x30] sm:$0xff]
  %v410 = vld [vmem:[#allocation2 + $0x40] sm:$0xff]
  %v411 = vld [vmem:[#allocation2 + $0x50] sm:$0xff]
  %v412 = vld [vmem:[#allocation2 + $0x60] sm:$0xff]
  %v413 = vld [vmem:[#allocation2 + $0x70] sm:$0xff]
  %v414 = vld [vmem:[#allocation2 + $0xa0] sm:$0xff]
  %v415 = vld [vmem:[#allocation2 + $0xb0] sm:$0xff]
  %v416 = vld [vmem:[#allocation2 + $0xc0] sm:$0xff]
  %v417 = vld [vmem:[#allocation2 + $0xd0] sm:$0xff]
  %v418 = vld [vmem:[#allocation2 + $0xe0] sm:$0xff]
  %v419 = vld [vmem:[#allocation2 + $0xf0] sm:$0xff]
  %v420 = vld [vmem:[#allocation2 + $0x100] sm:$0xff]
  %v421 = vld [vmem:[#allocation2 + $0x110] sm:$0xff]
  %v422 = vlaneseq
  %v423 = vshrl.u32 %v422, 7
  %v424 = vsub.s32 0, %v423
  %v425 = vrot.slane %v403, %v424
  %v426 = vmul.f32 %v406, %v425
  %v427 = vmul.f32 %v407, %v425
  %v428 = vmul.f32 %v408, %v425
  %v429 = vmul.f32 %v409, %v425
  %v430 = vmul.f32 %v410, %v425
  %v431 = vmul.f32 %v411, %v425
  %v432 = vmul.f32 %v412, %v425
  %v433 = vmul.f32 %v413, %v425
  %v434 = vmul.f32 %v414, %v425
  %v435 = vmul.f32 %v415, %v425
  %v436 = vmul.f32 %v416, %v425
  %v437 = vmul.f32 %v417, %v425
  %v438 = vmul.f32 %v418, %v425
  %v439 = vmul.f32 %v419, %v425
  %v440 = vmul.f32 %v420, %v425
  %v441 = vmul.f32 %v421, %v425
  %v442 = vadd.f32 %v426, 0.0
  %v443 = vadd.f32 %v427, 0.0
  %v444 = vadd.f32 %v428, 0.0
  %v445 = vadd.f32 %v429, 0.0
  %v446 = vadd.f32 %v430, 0.0
  %v447 = vadd.f32 %v431, 0.0
  %v448 = vadd.f32 %v432, 0.0
  %v449 = vadd.f32 %v433, 0.0
  %v450 = vadd.f32 %v434, 0.0
  %v451 = vadd.f32 %v435, 0.0
  %v452 = vadd.f32 %v436, 0.0
  %v453 = vadd.f32 %v437, 0.0
  %v454 = vadd.f32 %v438, 0.0
  %v455 = vadd.f32 %v439, 0.0
  %v456 = vadd.f32 %v440, 0.0
  %v457 = vadd.f32 %v441, 0.0
  %v458 = vld [vmem:[#allocation2 + $0x1] sm:$0xff]
  %v459 = vld [vmem:[#allocation2 + $0x11] sm:$0xff]
  %v460 = vld [vmem:[#allocation2 + $0x21] sm:$0xff]
  %v461 = vld [vmem:[#allocation2 + $0x31] sm:$0xff]
  %v462 = vld [vmem:[#allocation2 + $0x41] sm:$0xff]
  %v463 = vld [vmem:[#allocation2 + $0x51] sm:$0xff]
  %v464 = vld [vmem:[#allocation2 + $0x61] sm:$0xff]
  %v465 = vld [vmem:[#allocation2 + $0x71] sm:$0xff]
  %v466 = vld [vmem:[#allocation2 + $0xa1] sm:$0xff]
  %v467 = vld [vmem:[#allocation2 + $0xb1] sm:$0xff]
  %v468 = vld [vmem:[#allocation2 + $0xc1] sm:$0xff]
  %v469 = vld [vmem:[#allocation2 + $0xd1] sm:$0xff]
  %v470 = vld [vmem:[#allocation2 + $0xe1] sm:$0xff]
  %v471 = vld [vmem:[#allocation2 + $0xf1] sm:$0xff]
  %v472 = vld [vmem:[#allocation2 + $0x101] sm:$0xff]
  %v473 = vld [vmem:[#allocation2 + $0x111] sm:$0xff]
  %v474 = vlaneseq
  %v475 = vshrl.u32 %v474, 7
  %v476 = vsub.s32 1, %v475
  %v477 = vrot.slane %v403, %v476
  %v478 = vmul.f32 %v458, %v477
  %v479 = vmul.f32 %v459, %v477
  %v480 = vmul.f32 %v460, %v477
  %v481 = vmul.f32 %v461, %v477
  %v482 = vmul.f32 %v462, %v477
  %v483 = vmul.f32 %v463, %v477
  %v484 = vmul.f32 %v464, %v477
  %v485 = vmul.f32 %v465, %v477
  %v486 = vmul.f32 %v466, %v477
  %v487 = vmul.f32 %v467, %v477
  %v488 = vmul.f32 %v468, %v477
  %v489 = vmul.f32 %v469, %v477
  %v490 = vmul.f32 %v470, %v477
  %v491 = vmul.f32 %v471, %v477
  %v492 = vmul.f32 %v472, %v477
  %v493 = vmul.f32 %v473, %v477
  %v494 = vadd.f32 %v442, %v478
  %v495 = vadd.f32 %v443, %v479
  %v496 = vadd.f32 %v444, %v480
  %v497 = vadd.f32 %v445, %v481
  %v498 = vadd.f32 %v446, %v482
  %v499 = vadd.f32 %v447, %v483
  %v500 = vadd.f32 %v448, %v484
  %v501 = vadd.f32 %v449, %v485
  %v502 = vadd.f32 %v450, %v486
  %v503 = vadd.f32 %v451, %v487
  %v504 = vadd.f32 %v452, %v488
  %v505 = vadd.f32 %v453, %v489
  %v506 = vadd.f32 %v454, %v490
  %v507 = vadd.f32 %v455, %v491
  %v508 = vadd.f32 %v456, %v492
  %v509 = vadd.f32 %v457, %v493
  %v510 = vld [vmem:[#allocation2 + $0x2] sm:$0xff]
  %v511 = vld [vmem:[#allocation2 + $0x12] sm:$0xff]
  %v512 = vld [vmem:[#allocation2 + $0x22] sm:$0xff]
  %v513 = vld [vmem:[#allocation2 + $0x32] sm:$0xff]
  %v514 = vld [vmem:[#allocation2 + $0x42] sm:$0xff]
  %v515 = vld [vmem:[#allocation2 + $0x52] sm:$0xff]
  %v516 = vld [vmem:[#allocation2 + $0x62] sm:$0xff]
  %v517 = vld [vmem:[#allocation2 + $0x72] sm:$0xff]
  %v518 = vld [vmem:[#allocation2 + $0xa2] sm:$0xff]
  %v519 = vld [vmem:[#allocation2 + $0xb2] sm:$0xff]
  %v520 = vld [vmem:[#allocation2 + $0xc2] sm:$0xff]
  %v521 = vld [vmem:[#allocation2 + $0xd2] sm:$0xff]
  %v522 = vld [vmem:[#allocation2 + $0xe2] sm:$0xff]
  %v523 = vld [vmem:[#allocation2 + $0xf2] sm:$0xff]
  %v524 = vld [vmem:[#allocation2 + $0x102] sm:$0xff]
  %v525 = vld [vmem:[#allocation2 + $0x112] sm:$0xff]
  %v526 = vlaneseq
  %v527 = vshrl.u32 %v526, 7
  %v528 = vsub.s32 2, %v527
  %v529 = vrot.slane %v403, %v528
  %v530 = vmul.f32 %v510, %v529
  %v531 = vmul.f32 %v511, %v529
  %v532 = vmul.f32 %v512, %v529
  %v533 = vmul.f32 %v513, %v529
  %v534 = vmul.f32 %v514, %v529
  %v535 = vmul.f32 %v515, %v529
  %v536 = vmul.f32 %v516, %v529
  %v537 = vmul.f32 %v517, %v529
  %v538 = vmul.f32 %v518, %v529
  %v539 = vmul.f32 %v519, %v529
  %v540 = vmul.f32 %v520, %v529
  %v541 = vmul.f32 %v521, %v529
  %v542 = vmul.f32 %v522, %v529
  %v543 = vmul.f32 %v523, %v529
  %v544 = vmul.f32 %v524, %v529
  %v545 = vmul.f32 %v525, %v529
  %v546 = vadd.f32 %v494, %v530
  %v547 = vadd.f32 %v495, %v531
  %v548 = vadd.f32 %v496, %v532
  %v549 = vadd.f32 %v497, %v533
  %v550 = vadd.f32 %v498, %v534
  %v551 = vadd.f32 %v499, %v535
  %v552 = vadd.f32 %v500, %v536
  %v553 = vadd.f32 %v501, %v537
  %v554 = vadd.f32 %v502, %v538
  %v555 = vadd.f32 %v503, %v539
  %v556 = vadd.f32 %v504, %v540
  %v557 = vadd.f32 %v505, %v541
  %v558 = vadd.f32 %v506, %v542
  %v559 = vadd.f32 %v507, %v543
  %v560 = vadd.f32 %v508, %v544
  %v561 = vadd.f32 %v509, %v545
  %v562 = vld [vmem:[%s386] sm:$0xff]
  %v563 = vld [vmem:[%s386 + $0x10] sm:$0xff]
  %v564 = vld [vmem:[%s386 + $0x20] sm:$0xff]
  %v565 = vld [vmem:[%s386 + $0x30] sm:$0xff]
  %v566 = vld [vmem:[%s386 + $0x40] sm:$0xff]
  %v567 = vld [vmem:[%s386 + $0x50] sm:$0xff]
  %v568 = vld [vmem:[%s386 + $0x60] sm:$0xff]
  %v569 = vld [vmem:[%s386 + $0x70] sm:$0xff]
  %v570 = vld [vmem:[%s386 + $0xa0] sm:$0xff]
  %v571 = vld [vmem:[%s386 + $0xb0] sm:$0xff]
  %v572 = vld [vmem:[%s386 + $0xc0] sm:$0xff]
  %v573 = vld [vmem:[%s386 + $0xd0] sm:$0xff]
  %v574 = vld [vmem:[%s386 + $0xe0] sm:$0xff]
  %v575 = vld [vmem:[%s386 + $0xf0] sm:$0xff]
  %v576 = vld [vmem:[%s386 + $0x100] sm:$0xff]
  %v577 = vld [vmem:[%s386 + $0x110] sm:$0xff]
  %v578 = vlaneseq
  %v579 = vshrl.u32 %v578, 7
  %v580 = vsub.s32 3, %v579
  %v581 = vrot.slane %v403, %v580
  %v582 = vmul.f32 %v562, %v581
  %v583 = vmul.f32 %v563, %v581
  %v584 = vmul.f32 %v564, %v581
  %v585 = vmul.f32 %v565, %v581
  %v586 = vmul.f32 %v566, %v581
  %v587 = vmul.f32 %v567, %v581
  %v588 = vmul.f32 %v568, %v581
  %v589 = vmul.f32 %v569, %v581
  %v590 = vmul.f32 %v570, %v581
  %v591 = vmul.f32 %v571, %v581
  %v592 = vmul.f32 %v572, %v581
  %v593 = vmul.f32 %v573, %v581
  %v594 = vmul.f32 %v574, %v581
  %v595 = vmul.f32 %v575, %v581
  %v596 = vmul.f32 %v576, %v581
  %v597 = vmul.f32 %v577, %v581
  %v598 = vadd.f32 %v546, %v582
  %v599 = vadd.f32 %v547, %v583
  %v600 = vadd.f32 %v548, %v584
  %v601 = vadd.f32 %v549, %v585
  %v602 = vadd.f32 %v550, %v586
  %v603 = vadd.f32 %v551, %v587
  %v604 = vadd.f32 %v552, %v588
  %v605 = vadd.f32 %v553, %v589
  %v606 = vadd.f32 %v554, %v590
  %v607 = vadd.f32 %v555, %v591
  %v608 = vadd.f32 %v556, %v592
  %v609 = vadd.f32 %v557, %v593
  %v610 = vadd.f32 %v558, %v594
  %v611 = vadd.f32 %v559, %v595
  %v612 = vadd.f32 %v560, %v596
  %v613 = vadd.f32 %v561, %v597
  %v614 = vld [vmem:[%s386 + $0x1] sm:$0xff]
  %v615 = vld [vmem:[%s386 + $0x11] sm:$0xff]
  %v616 = vld [vmem:[%s386 + $0x21] sm:$0xff]
  %v617 = vld [vmem:[%s386 + $0x31] sm:$0xff]
  %v618 = vld [vmem:[%s386 + $0x41] sm:$0xff]
  %v619 = vld [vmem:[%s386 + $0x51] sm:$0xff]
  %v620 = vld [vmem:[%s386 + $0x61] sm:$0xff]
  %v621 = vld [vmem:[%s386 + $0x71] sm:$0xff]
  %v622 = vld [vmem:[%s386 + $0xa1] sm:$0xff]
  %v623 = vld [vmem:[%s386 + $0xb1] sm:$0xff]
  %v624 = vld [vmem:[%s386 + $0xc1] sm:$0xff]
  %v625 = vld [vmem:[%s386 + $0xd1] sm:$0xff]
  %v626 = vld [vmem:[%s386 + $0xe1] sm:$0xff]
  %v627 = vld [vmem:[%s386 + $0xf1] sm:$0xff]
  %v628 = vld [vmem:[%s386 + $0x101] sm:$0xff]
  %v629 = vld [vmem:[%s386 + $0x111] sm:$0xff]
  %v630 = vlaneseq
  %v631 = vshrl.u32 %v630, 7
  %v632 = vsub.s32 4, %v631
  %v633 = vrot.slane %v403, %v632
  %v634 = vmul.f32 %v614, %v633
  %v635 = vmul.f32 %v615, %v633
  %v636 = vmul.f32 %v616, %v633
  %v637 = vmul.f32 %v617, %v633
  %v638 = vmul.f32 %v618, %v633
  %v639 = vmul.f32 %v619, %v633
  %v640 = vmul.f32 %v620, %v633
  %v641 = vmul.f32 %v621, %v633
  %v642 = vmul.f32 %v622, %v633
  %v643 = vmul.f32 %v623, %v633
  %v644 = vmul.f32 %v624, %v633
  %v645 = vmul.f32 %v625, %v633
  %v646 = vmul.f32 %v626, %v633
  %v647 = vmul.f32 %v627, %v633
  %v648 = vmul.f32 %v628, %v633
  %v649 = vmul.f32 %v629, %v633
  %v650 = vadd.f32 %v598, %v634
  %v651 = vadd.f32 %v599, %v635
  %v652 = vadd.f32 %v600, %v636
  %v653 = vadd.f32 %v601, %v637
  %v654 = vadd.f32 %v602, %v638
  %v655 = vadd.f32 %v603, %v639
  %v656 = vadd.f32 %v604, %v640
  %v657 = vadd.f32 %v605, %v641
  %v658 = vadd.f32 %v606, %v642
  %v659 = vadd.f32 %v607, %v643
  %v660 = vadd.f32 %v608, %v644
  %v661 = vadd.f32 %v609, %v645
  %v662 = vadd.f32 %v610, %v646
  %v663 = vadd.f32 %v611, %v647
  %v664 = vadd.f32 %v612, %v648
  %v665 = vadd.f32 %v613, %v649
  %v666 = vld [vmem:[%s386 + $0x2] sm:$0xff]
  %v667 = vld [vmem:[%s386 + $0x12] sm:$0xff]
  %v668 = vld [vmem:[%s386 + $0x22] sm:$0xff]
  %v669 = vld [vmem:[%s386 + $0x32] sm:$0xff]
  %v670 = vld [vmem:[%s386 + $0x42] sm:$0xff]
  %v671 = vld [vmem:[%s386 + $0x52] sm:$0xff]
  %v672 = vld [vmem:[%s386 + $0x62] sm:$0xff]
  %v673 = vld [vmem:[%s386 + $0x72] sm:$0xff]
  %v674 = vld [vmem:[%s386 + $0xa2] sm:$0xff]
  %v675 = vld [vmem:[%s386 + $0xb2] sm:$0xff]
  %v676 = vld [vmem:[%s386 + $0xc2] sm:$0xff]
  %v677 = vld [vmem:[%s386 + $0xd2] sm:$0xff]
  %v678 = vld [vmem:[%s386 + $0xe2] sm:$0xff]
  %v679 = vld [vmem:[%s386 + $0xf2] sm:$0xff]
  %v680 = vld [vmem:[%s386 + $0x102] sm:$0xff]
  %v681 = vld [vmem:[%s386 + $0x112] sm:$0xff]
  %v682 = vlaneseq
  %v683 = vshrl.u32 %v682, 7
  %v684 = vsub.s32 5, %v683
  %v685 = vrot.slane %v403, %v684
  %v686 = vmul.f32 %v666, %v685
  %v687 = vmul.f32 %v667, %v685
  %v688 = vmul.f32 %v668, %v685
  %v689 = vmul.f32 %v669, %v685
  %v690 = vmul.f32 %v670, %v685
  %v691 = vmul.f32 %v671, %v685
  %v692 = vmul.f32 %v672, %v685
  %v693 = vmul.f32 %v673, %v685
  %v694 = vmul.f32 %v674, %v685
  %v695 = vmul.f32 %v675, %v685
  %v696 = vmul.f32 %v676, %v685
  %v697 = vmul.f32 %v677, %v685
  %v698 = vmul.f32 %v678, %v685
  %v699 = vmul.f32 %v679, %v685
  %v700 = vmul.f32 %v680, %v685
  %v701 = vmul.f32 %v681, %v685
  %v702 = vadd.f32 %v650, %v686
  %v703 = vadd.f32 %v651, %v687
  %v704 = vadd.f32 %v652, %v688
  %v705 = vadd.f32 %v653, %v689
  %v706 = vadd.f32 %v654, %v690
  %v707 = vadd.f32 %v655, %v691
  %v708 = vadd.f32 %v656, %v692
  %v709 = vadd.f32 %v657, %v693
  %v710 = vadd.f32 %v658, %v694
  %v711 = vadd.f32 %v659, %v695
  %v712 = vadd.f32 %v660, %v696
  %v713 = vadd.f32 %v661, %v697
  %v714 = vadd.f32 %v662, %v698
  %v715 = vadd.f32 %v663, %v699
  %v716 = vadd.f32 %v664, %v700
  %v717 = vadd.f32 %v665, %v701
  %s718 = scalar_lea.vmem [#allocation2], 32
  %v719 = vld [vmem:[%s718] sm:$0xff]
  %v720 = vld [vmem:[%s718 + $0x10] sm:$0xff]
  %v721 = vld [vmem:[%s718 + $0x20] sm:$0xff]
  %v722 = vld [vmem:[%s718 + $0x30] sm:$0xff]
  %v723 = vld [vmem:[%s718 + $0x40] sm:$0xff]
  %v724 = vld [vmem:[%s718 + $0x50] sm:$0xff]
  %v725 = vld [vmem:[%s718 + $0x60] sm:$0xff]
  %v726 = vld [vmem:[%s718 + $0x70] sm:$0xff]
  %v727 = vld [vmem:[%s718 + $0xa0] sm:$0xff]
  %v728 = vld [vmem:[%s718 + $0xb0] sm:$0xff]
  %v729 = vld [vmem:[%s718 + $0xc0] sm:$0xff]
  %v730 = vld [vmem:[%s718 + $0xd0] sm:$0xff]
  %v731 = vld [vmem:[%s718 + $0xe0] sm:$0xff]
  %v732 = vld [vmem:[%s718 + $0xf0] sm:$0xff]
  %v733 = vld [vmem:[%s718 + $0x100] sm:$0xff]
  %v734 = vld [vmem:[%s718 + $0x110] sm:$0xff]
  %v735 = vlaneseq
  %v736 = vshrl.u32 %v735, 7
  %v737 = vsub.s32 6, %v736
  %v738 = vrot.slane %v403, %v737
  %v739 = vmul.f32 %v719, %v738
  %v740 = vmul.f32 %v720, %v738
  %v741 = vmul.f32 %v721, %v738
  %v742 = vmul.f32 %v722, %v738
  %v743 = vmul.f32 %v723, %v738
  %v744 = vmul.f32 %v724, %v738
  %v745 = vmul.f32 %v725, %v738
  %v746 = vmul.f32 %v726, %v738
  %v747 = vmul.f32 %v727, %v738
  %v748 = vmul.f32 %v728, %v738
  %v749 = vmul.f32 %v729, %v738
  %v750 = vmul.f32 %v730, %v738
  %v751 = vmul.f32 %v731, %v738
  %v752 = vmul.f32 %v732, %v738
  %v753 = vmul.f32 %v733, %v738
  %v754 = vmul.f32 %v734, %v738
  %v755 = vadd.f32 %v702, %v739
  %v756 = vadd.f32 %v703, %v740
  %v757 = vadd.f32 %v704, %v741
  %v758 = vadd.f32 %v705, %v742
  %v759 = vadd.f32 %v706, %v743
  %v760 = vadd.f32 %v707, %v744
  %v761 = vadd.f32 %v708, %v745
  %v762 = vadd.f32 %v709, %v746
  %v763 = vadd.f32 %v710, %v747
  %v764 = vadd.f32 %v711, %v748
  %v765 = vadd.f32 %v712, %v749
  %v766 = vadd.f32 %v713, %v750
  %v767 = vadd.f32 %v714, %v751
  %v768 = vadd.f32 %v715, %v752
  %v769 = vadd.f32 %v716, %v753
  %v770 = vadd.f32 %v717, %v754
  %v771 = vld [vmem:[%s718 + $0x1] sm:$0xff]
  %v772 = vld [vmem:[%s718 + $0x11] sm:$0xff]
  %v773 = vld [vmem:[%s718 + $0x21] sm:$0xff]
  %v774 = vld [vmem:[%s718 + $0x31] sm:$0xff]
  %v775 = vld [vmem:[%s718 + $0x41] sm:$0xff]
  %v776 = vld [vmem:[%s718 + $0x51] sm:$0xff]
  %v777 = vld [vmem:[%s718 + $0x61] sm:$0xff]
  %v778 = vld [vmem:[%s718 + $0x71] sm:$0xff]
  %v779 = vld [vmem:[%s718 + $0xa1] sm:$0xff]
  %v780 = vld [vmem:[%s718 + $0xb1] sm:$0xff]
  %v781 = vld [vmem:[%s718 + $0xc1] sm:$0xff]
  %v782 = vld [vmem:[%s718 + $0xd1] sm:$0xff]
  %v783 = vld [vmem:[%s718 + $0xe1] sm:$0xff]
  %v784 = vld [vmem:[%s718 + $0xf1] sm:$0xff]
  %v785 = vld [vmem:[%s718 + $0x101] sm:$0xff]
  %v786 = vld [vmem:[%s718 + $0x111] sm:$0xff]
  %v787 = vlaneseq
  %v788 = vshrl.u32 %v787, 7
  %v789 = vsub.s32 7, %v788
  %v790 = vrot.slane %v403, %v789
  %v791 = vmul.f32 %v771, %v790
  %v792 = vmul.f32 %v772, %v790
  %v793 = vmul.f32 %v773, %v790
  %v794 = vmul.f32 %v774, %v790
  %v795 = vmul.f32 %v775, %v790
  %v796 = vmul.f32 %v776, %v790
  %v797 = vmul.f32 %v777, %v790
  %v798 = vmul.f32 %v778, %v790
  %v799 = vmul.f32 %v779, %v790
  %v800 = vmul.f32 %v780, %v790
  %v801 = vmul.f32 %v781, %v790
  %v802 = vmul.f32 %v782, %v790
  %v803 = vmul.f32 %v783, %v790
  %v804 = vmul.f32 %v784, %v790
  %v805 = vmul.f32 %v785, %v790
  %v806 = vmul.f32 %v786, %v790
  %v807 = vadd.f32 %v755, %v791
  %v808 = vadd.f32 %v756, %v792
  %v809 = vadd.f32 %v757, %v793
  %v810 = vadd.f32 %v758, %v794
  %v811 = vadd.f32 %v759, %v795
  %v812 = vadd.f32 %v760, %v796
  %v813 = vadd.f32 %v761, %v797
  %v814 = vadd.f32 %v762, %v798
  %v815 = vadd.f32 %v763, %v799
  %v816 = vadd.f32 %v764, %v800
  %v817 = vadd.f32 %v765, %v801
  %v818 = vadd.f32 %v766, %v802
  %v819 = vadd.f32 %v767, %v803
  %v820 = vadd.f32 %v768, %v804
  %v821 = vadd.f32 %v769, %v805
  %v822 = vadd.f32 %v770, %v806
  %v823 = vld [vmem:[%s718 + $0x2] sm:$0xff]
  %v824 = vld [vmem:[%s718 + $0x12] sm:$0xff]
  %v825 = vld [vmem:[%s718 + $0x22] sm:$0xff]
  %v826 = vld [vmem:[%s718 + $0x32] sm:$0xff]
  %v827 = vld [vmem:[%s718 + $0x42] sm:$0xff]
  %v828 = vld [vmem:[%s718 + $0x52] sm:$0xff]
  %v829 = vld [vmem:[%s718 + $0x62] sm:$0xff]
  %v830 = vld [vmem:[%s718 + $0x72] sm:$0xff]
  %v831 = vld [vmem:[%s718 + $0xa2] sm:$0xff]
  %v832 = vld [vmem:[%s718 + $0xb2] sm:$0xff]
  %v833 = vld [vmem:[%s718 + $0xc2] sm:$0xff]
  %v834 = vld [vmem:[%s718 + $0xd2] sm:$0xff]
  %v835 = vld [vmem:[%s718 + $0xe2] sm:$0xff]
  %v836 = vld [vmem:[%s718 + $0xf2] sm:$0xff]
  %v837 = vld [vmem:[%s718 + $0x102] sm:$0xff]
  %v838 = vld [vmem:[%s718 + $0x112] sm:$0xff]
  %v839 = vlaneseq
  %v840 = vshrl.u32 %v839, 7
  %v841 = vsub.s32 0, %v840
  %v842 = vrot.slane %v404, %v841
  %v843 = vmul.f32 %v823, %v842
  %v844 = vmul.f32 %v824, %v842
  %v845 = vmul.f32 %v825, %v842
  %v846 = vmul.f32 %v826, %v842
  %v847 = vmul.f32 %v827, %v842
  %v848 = vmul.f32 %v828, %v842
  %v849 = vmul.f32 %v829, %v842
  %v850 = vmul.f32 %v830, %v842
  %v851 = vmul.f32 %v831, %v842
  %v852 = vmul.f32 %v832, %v842
  %v853 = vmul.f32 %v833, %v842
  %v854 = vmul.f32 %v834, %v842
  %v855 = vmul.f32 %v835, %v842
  %v856 = vmul.f32 %v836, %v842
  %v857 = vmul.f32 %v837, %v842
  %v858 = vmul.f32 %v838, %v842
  %v859 = vadd.f32 %v807, %v843
  %v860 = vadd.f32 %v808, %v844
  %v861 = vadd.f32 %v809, %v845
  %v862 = vadd.f32 %v810, %v846
  %v863 = vadd.f32 %v811, %v847
  %v864 = vadd.f32 %v812, %v848
  %v865 = vadd.f32 %v813, %v849
  %v866 = vadd.f32 %v814, %v850
  %v867 = vadd.f32 %v815, %v851
  %v868 = vadd.f32 %v816, %v852
  %v869 = vadd.f32 %v817, %v853
  %v870 = vadd.f32 %v818, %v854
  %v871 = vadd.f32 %v819, %v855
  %v872 = vadd.f32 %v820, %v856
  %v873 = vadd.f32 %v821, %v857
  %v874 = vadd.f32 %v822, %v858
  %v876 = vlaneseq
  %v877 = vshrl.u32 %v876, 7
  %v878 = vsub.s32 0, %v877
  %v879 = vrot.slane %v405, %v878
  %v881 = vadd.f32 %v859, %v879
  %v882 = vadd.f32 %v860, %v879
  %v883 = vadd.f32 %v861, %v879
  %v884 = vadd.f32 %v862, %v879
  %v885 = vadd.f32 %v863, %v879
  %v886 = vadd.f32 %v864, %v879
  %v887 = vadd.f32 %v865, %v879
  %v888 = vadd.f32 %v866, %v879
  %v889 = vadd.f32 %v867, %v879
  %v890 = vadd.f32 %v868, %v879
  %v891 = vadd.f32 %v869, %v879
  %v892 = vadd.f32 %v870, %v879
  %v893 = vadd.f32 %v871, %v879
  %v894 = vadd.f32 %v872, %v879
  %v895 = vadd.f32 %v873, %v879
  %v896 = vadd.f32 %v874, %v879
  %v897 = vxor.u32 %v881, 2147483648
  %v898 = vxor.u32 %v882, 2147483648
  %v899 = vxor.u32 %v883, 2147483648
  %v900 = vxor.u32 %v884, 2147483648
  %v901 = vxor.u32 %v885, 2147483648
  %v902 = vxor.u32 %v886, 2147483648
  %v903 = vxor.u32 %v887, 2147483648
  %v904 = vxor.u32 %v888, 2147483648
  %v905 = vxor.u32 %v889, 2147483648
  %v906 = vxor.u32 %v890, 2147483648
  %v907 = vxor.u32 %v891, 2147483648
  %v908 = vxor.u32 %v892, 2147483648
  %v909 = vxor.u32 %v893, 2147483648
  %v910 = vxor.u32 %v894, 2147483648
  %v911 = vxor.u32 %v895, 2147483648
  %v912 = vxor.u32 %v896, 2147483648
  %v913 = vmul.f32 %v897, 1.442695
  %v914 = vpow.pop %v913
  %v915 = vmul.f32 %v898, 1.442695
  %v916 = vpow.pop %v915
  %v917 = vmul.f32 %v899, 1.442695
  %v918 = vpow.pop %v917
  %v919 = vmul.f32 %v900, 1.442695
  %v920 = vpow.pop %v919
  %v921 = vmul.f32 %v901, 1.442695
  %v922 = vpow.pop %v921
  %v923 = vmul.f32 %v902, 1.442695
  %v924 = vpow.pop %v923
  %v925 = vmul.f32 %v903, 1.442695
  %v926 = vpow.pop %v925
  %v927 = vmul.f32 %v904, 1.442695
  %v928 = vpow.pop %v927
  %v929 = vmul.f32 %v905, 1.442695
  %v930 = vpow.pop %v929
  %v931 = vmul.f32 %v906, 1.442695
  %v932 = vpow.pop %v931
  %v933 = vmul.f32 %v907, 1.442695
  %v934 = vpow.pop %v933
  %v935 = vmul.f32 %v908, 1.442695
  %v936 = vpow.pop %v935
  %v937 = vmul.f32 %v909, 1.442695
  %v938 = vpow.pop %v937
  %v939 = vmul.f32 %v910, 1.442695
  %v940 = vpow.pop %v939
  %v941 = vmul.f32 %v911, 1.442695
  %v942 = vpow.pop %v941
  %v943 = vmul.f32 %v912, 1.442695
  %v944 = vpow.pop %v943
  %v945 = vadd.f32 %v914, 1.0
  %v946 = vadd.f32 %v916, 1.0
  %v947 = vadd.f32 %v918, 1.0
  %v948 = vadd.f32 %v920, 1.0
  %v949 = vadd.f32 %v922, 1.0
  %v950 = vadd.f32 %v924, 1.0
  %v951 = vadd.f32 %v926, 1.0
  %v952 = vadd.f32 %v928, 1.0
  %v953 = vadd.f32 %v930, 1.0
  %v954 = vadd.f32 %v932, 1.0
  %v955 = vadd.f32 %v934, 1.0
  %v956 = vadd.f32 %v936, 1.0
  %v957 = vadd.f32 %v938, 1.0
  %v958 = vadd.f32 %v940, 1.0
  %v959 = vadd.f32 %v942, 1.0
  %v960 = vadd.f32 %v944, 1.0
  %v961 = vrcp.pop %v945
  %v962 = vmul.f32 1.0, %v961
  %v963 = vrcp.pop %v946
  %v964 = vmul.f32 1.0, %v963
  %v965 = vrcp.pop %v947
  %v966 = vmul.f32 1.0, %v965
  %v967 = vrcp.pop %v948
  %v968 = vmul.f32 1.0, %v967
  %v969 = vrcp.pop %v949
  %v970 = vmul.f32 1.0, %v969
  %v971 = vrcp.pop %v950
  %v972 = vmul.f32 1.0, %v971
  %v973 = vrcp.pop %v951
  %v974 = vmul.f32 1.0, %v973
  %v975 = vrcp.pop %v952
  %v976 = vmul.f32 1.0, %v975
  %v977 = vrcp.pop %v953
  %v978 = vmul.f32 1.0, %v977
  %v979 = vrcp.pop %v954
  %v980 = vmul.f32 1.0, %v979
  %v981 = vrcp.pop %v955
  %v982 = vmul.f32 1.0, %v981
  %v983 = vrcp.pop %v956
  %v984 = vmul.f32 1.0, %v983
  %v985 = vrcp.pop %v957
  %v986 = vmul.f32 1.0, %v985
  %v987 = vrcp.pop %v958
  %v988 = vmul.f32 1.0, %v987
  %v989 = vrcp.pop %v959
  %v990 = vmul.f32 1.0, %v989
  %v991 = vrcp.pop %v960
  %v992 = vmul.f32 1.0, %v991
  %v993 = vmul.f32 %v881, %v962
  %v994 = vmul.f32 %v882, %v964
  %v995 = vmul.f32 %v883, %v966
  %v996 = vmul.f32 %v884, %v968
  %v997 = vmul.f32 %v885, %v970
  %v998 = vmul.f32 %v886, %v972
  %v999 = vmul.f32 %v887, %v974
  %v1000 = vmul.f32 %v888, %v976
  %v1001 = vmul.f32 %v889, %v978
  %v1002 = vmul.f32 %v890, %v980
  %v1003 = vmul.f32 %v891, %v982
  %v1004 = vmul.f32 %v892, %v984
  %v1005 = vmul.f32 %v893, %v986
  %v1006 = vmul.f32 %v894, %v988
  %v1007 = vmul.f32 %v895, %v990
  %v1008 = vmul.f32 %v896, %v992
  %v1009 = vsel %vm344, %v993, 0.0
  %v1010 = vsel %vm344, %v994, 0.0
  %v1011 = vadd.f32 %v1009, %v1010
  %v1012 = vsel %vm344, %v995, 0.0
  %v1013 = vadd.f32 %v1011, %v1012
  %v1014 = vsel %vm344, %v996, 0.0
  %v1015 = vadd.f32 %v1013, %v1014
  %v1016 = vsel %vm344, %v997, 0.0
  %v1017 = vadd.f32 %v1015, %v1016
  %v1018 = vsel %vm344, %v998, 0.0
  %v1019 = vadd.f32 %v1017, %v1018
  %v1020 = vsel %vm344, %v999, 0.0
  %v1021 = vadd.f32 %v1019, %v1020
  %v1022 = vsel %vm344, %v1000, 0.0
  %v1023 = vadd.f32 %v1021, %v1022
  %v1024 = vrot.slane %v1023, 4
  %v1025 = vadd.f32 %v1023, %v1024
  %v1026 = vrot.slane %v1025, 2
  %v1027 = vadd.f32 %v1025, %v1026
  %v1028 = vrot.slane %v1027, 1
  %v1029 = vadd.f32 %v1027, %v1028
  %v1030 = vsel %vm344, %v1001, 0.0
  %v1031 = vsel %vm344, %v1002, 0.0
  %v1032 = vadd.f32 %v1030, %v1031
  %v1033 = vsel %vm344, %v1003, 0.0
  %v1034 = vadd.f32 %v1032, %v1033
  %v1035 = vsel %vm344, %v1004, 0.0
  %v1036 = vadd.f32 %v1034, %v1035
  %v1037 = vsel %vm344, %v1005, 0.0
  %v1038 = vadd.f32 %v1036, %v1037
  %v1039 = vsel %vm344, %v1006, 0.0
  %v1040 = vadd.f32 %v1038, %v1039
  %v1041 = vsel %vm344, %v1007, 0.0
  %v1042 = vadd.f32 %v1040, %v1041
  %v1043 = vsel %vm344, %v1008, 0.0
  %v1044 = vadd.f32 %v1042, %v1043
  %v1045 = vrot.slane %v1044, 4
  %v1046 = vadd.f32 %v1044, %v1045
  %v1047 = vrot.slane %v1046, 2
  %v1048 = vadd.f32 %v1046, %v1047
  %v1049 = vrot.slane %v1048, 1
  %v1050 = vadd.f32 %v1048, %v1049
  %v1051 = vrcp.pop 64.0
  %v1052 = vmul.f32 %v1029, %v1051
  %v1053 = vmul.f32 %v1050, %v1051
  %v1054 = vpack.c.bf16 %v1052, %v1052
  %v1055 = vpack.c.bf16 %v1053, %v1053
  %v1056 = vld [vmem:[%s5] sm:$0xf]
  %v1057 = vld [vmem:[%s5 + $0x4] sm:$0xf]
  %v1058 = vld [vmem:[%s5 + $0x8] sm:$0xf]
  %v1059 = vld [vmem:[%s5 + $0xc] sm:$0xf]
  %v1060 = vld [vmem:[%s5 + $0x10] sm:$0xf]
  %v1061 = vld [vmem:[%s5 + $0x14] sm:$0xf]
  %v1062 = vld [vmem:[%s5 + $0x18] sm:$0xf]
  %v1063 = vld [vmem:[%s5 + $0x1c] sm:$0xf]
  %v1064 = vld [vmem:[%s6] sm:$0x1]
  %v1066 = vlaneseq
  %v1067 = vshrl.u32 %v1066, 7
  %v1068 = vsub.s32 0, %v1067
  %v1069 = vrot.slane %v1064, %v1068
  %v1073 = vunpack.c.l.b16 %v1054
  %v1074 = vunpack.c.l.b16 %v1055
  %vm1075 = vcmask 1041409
  %v1076 = vsel %vm1075, %v1074, %v1073
  %v1077 = vpack.c.b16 %v1076, %v1076
  %v1086 = vunpack.c.l.b16 %v1056
  %v1087 = vunpack.c.l.b16 %v1057
  %v1088 = vunpack.c.l.b16 %v1058
  %v1089 = vunpack.c.l.b16 %v1059
  %v1090 = vunpack.c.l.b16 %v1060
  %v1091 = vunpack.c.l.b16 %v1061
  %v1092 = vunpack.c.l.b16 %v1062
  %v1093 = vunpack.c.l.b16 %v1063
  %v1094 = vpack.c.b16 %v1087, %v1086
  %v1095 = vpack.c.b16 %v1089, %v1088
  %v1096 = vpack.c.b16 %v1091, %v1090
  %v1097 = vpack.c.b16 %v1093, %v1092
  %v1103 = vsel %vm344, %v1077, 0
  %1105 = vmatprep.subr.bf16.mxu0 0
  %1106 = vmatpush1.bf16.msra.mxu0 %v1094
  %1107 = vmatprep.subr.bf16.mxu0 0
  %1108 = vmatpush1.bf16.msra.mxu0 %v1095
  %1109 = vmatprep.subr.bf16.mxu0 0
  %1110 = vmatpush1.bf16.msra.mxu0 %v1096
  %1111 = vmatprep.subr.bf16.mxu0 0
  %1112 = vmatpush1.bf16.msra.mxu0 %v1097
  %1113 = vmatprep.subr.bf16.mxu0 0
  %1114 = vmatpush1.bf16.msra.mxu0 0
  %1115 = vmatprep.subr.bf16.mxu0 0
  %1116 = vmatpush1.bf16.msra.mxu0 0
  %1117 = vmatprep.subr.bf16.mxu0 0
  %1118 = vmatpush1.bf16.msra.mxu0 0
  %1119 = vmatprep.subr.bf16.mxu0 0
  %1120 = vmatpush1.bf16.msra.mxu0 0
  %1121 = vmatprep.subr.bf16.mxu0 0
  %1122 = vmatpush1.bf16.msra.mxu0 0
  %1123 = vmatprep.subr.bf16.mxu0 0
  %1124 = vmatpush1.bf16.msra.mxu0 0
  %1125 = vmatprep.subr.bf16.mxu0 0
  %1126 = vmatpush1.bf16.msra.mxu0 0
  %1127 = vmatprep.subr.bf16.mxu0 0
  %1128 = vmatpush1.bf16.msra.mxu0 0
  %1129 = vmatprep.subr.bf16.mxu0 0
  %1130 = vmatpush1.bf16.msra.mxu0 0
  %1131 = vmatprep.subr.bf16.mxu0 0
  %1132 = vmatpush1.bf16.msra.mxu0 0
  %1133 = vmatprep.subr.bf16.mxu0 0
  %1134 = vmatpush1.bf16.msra.mxu0 0
  %1135 = vmatprep.subr.bf16.mxu0 0
  %1136 = vmatpush1.bf16.msra.mxu0 0
  %1137 = vmatprep.mubr.bf16.mxu0 0
  %1138 = vmatmul.mubr.bf16.gmra.mrb[0].mxu0 %v1103
  %v1139 = vpop.f32.mrb[0].mxu0
  %v1140 = vadd.f32 %v1069, %v1139
  %v1141 = vpop.f32.mrb[0].mxu0
  %v1142 = vpop.f32.mrb[0].mxu0
  %v1143 = vpop.f32.mrb[0].mxu0
  %1144 = vdwg.mxu0
  %v1145 = vxor.u32 %v1140, 2147483648
  %v1146 = vmul.f32 %v1145, 1.442695
  %v1147 = vpow.pop %v1146
  %v1148 = vadd.f32 %v1147, 1.0
  %v1149 = vrcp.pop %v1148
  %v1150 = vmul.f32 1.0, %v1149
  %v1151 = vmul.f32 %v1140, %v1150
  %v1152 = vpack.c.bf16 %v1151, %v1151
  %v1153 = vld [vmem:[%s7] sm:$0x3]
  %v1154 = vld [vmem:[%s8] sm:$0x1]
  %v1156 = vlaneseq
  %v1157 = vshrl.u32 %v1156, 7
  %v1158 = vsub.s32 0, %v1157
  %v1159 = vrot.slane %v1154, %v1158
  %vm1161 = vcmask 31744
  %v1163 = vsel %vm1161, %v1152, 0
  %vm1165 = vcmask 1041408
  %v1167 = vsel %vm1165, %v1153, 0
  %1169 = vmatprep.subr.bf16.mxu0 0
  %1170 = vmatpush1.bf16.msra.mxu0 %v1167
  %1171 = vmatprep.subr.bf16.mxu0 0
  %1172 = vmatpush1.bf16.msra.mxu0 0
  %1173 = vmatprep.subr.bf16.mxu0 0
  %1174 = vmatpush1.bf16.msra.mxu0 0
  %1175 = vmatprep.subr.bf16.mxu0 0
  %1176 = vmatpush1.bf16.msra.mxu0 0
  %1177 = vmatprep.subr.bf16.mxu0 0
  %1178 = vmatpush1.bf16.msra.mxu0 0
  %1179 = vmatprep.subr.bf16.mxu0 0
  %1180 = vmatpush1.bf16.msra.mxu0 0
  %1181 = vmatprep.subr.bf16.mxu0 0
  %1182 = vmatpush1.bf16.msra.mxu0 0
  %1183 = vmatprep.subr.bf16.mxu0 0
  %1184 = vmatpush1.bf16.msra.mxu0 0
  %1185 = vmatprep.subr.bf16.mxu0 0
  %1186 = vmatpush1.bf16.msra.mxu0 0
  %1187 = vmatprep.subr.bf16.mxu0 0
  %1188 = vmatpush1.bf16.msra.mxu0 0
  %1189 = vmatprep.subr.bf16.mxu0 0
  %1190 = vmatpush1.bf16.msra.mxu0 0
  %1191 = vmatprep.subr.bf16.mxu0 0
  %1192 = vmatpush1.bf16.msra.mxu0 0
  %1193 = vmatprep.subr.bf16.mxu0 0
  %1194 = vmatpush1.bf16.msra.mxu0 0
  %1195 = vmatprep.subr.bf16.mxu0 0
  %1196 = vmatpush1.bf16.msra.mxu0 0
  %1197 = vmatprep.subr.bf16.mxu0 0
  %1198 = vmatpush1.bf16.msra.mxu0 0
  %1199 = vmatprep.subr.bf16.mxu0 0
  %1200 = vmatpush1.bf16.msra.mxu0 0
  %1201 = vmatprep.mubr.bf16.mxu0 0
  %1202 = vmatmul.mubr.bf16.gmra.mrb[0].mxu0 %v1163
  %v1203 = vpop.f32.mrb[0].mxu0
  %v1204 = vadd.f32 %v1159, %v1203
  %v1205 = vpop.f32.mrb[0].mxu0
  %v1206 = vpop.f32.mrb[0].mxu0
  %v1207 = vpop.f32.mrb[0].mxu0
  %1208 = vdwg.mxu0
  %v1209 = vxor.u32 %v1204, 2147483648
  %v1210 = vmul.f32 %v1209, 1.442695
  %v1211 = vpow.pop %v1210
  %v1212 = vadd.f32 %v1211, 1.0
  %v1213 = vrcp.pop %v1212
  %v1214 = vmul.f32 1.0, %v1213
  %v1217 = vunpack.c.l.s4 1966171168
  %v1218 = vunpack.c.0.s8 %v1217
  %v1219 = vlaneseq
  %v1220 = vshrl.u32 %v1219, 7
  %v1221 = vsub.s32 %v1218, %v1220
  %v1222 = vrot.slane %v1214, %v1221
  %v1223 = vcombine.high %v1222, %v1222
  %v1225 = vunpack.c.l.s4 1966171168
  %v1226 = vunpack.c.0.s8 %v1225
  %v1227 = vlaneseq
  %v1228 = vshrl.u32 %v1227, 7
  %v1229 = vsub.s32 %v1226, %v1228
  %v1230 = vrot.slane %v1222, %v1229
  %v1232 = vunpack.c.l.s4 1966171168
  %v1233 = vunpack.c.0.s8 %v1232
  %v1234 = vlaneseq
  %v1235 = vshrl.u32 %v1234, 7
  %v1236 = vsub.s32 %v1233, %v1235
  %v1237 = vrot.slane %v1223, %v1236
  %v1238 = vlaneseq
  %v1239 = vshrl.u32 %v1238, 7
  %v1240 = vsub.s32 0, %v1239
  %v1241 = vrot.slane %v1230, %v1240
  %v1242 = vlaneseq
  %v1243 = vshrl.u32 %v1242, 7
  %v1244 = vsub.s32 0, %v1243
  %v1245 = vrot.slane %v1237, %v1244
  %v1248 = vmul.f32 %v993, %v1241
  %v1249 = vmul.f32 %v994, %v1241
  %v1250 = vmul.f32 %v995, %v1241
  %v1251 = vmul.f32 %v996, %v1241
  %v1252 = vmul.f32 %v997, %v1241
  %v1253 = vmul.f32 %v998, %v1241
  %v1254 = vmul.f32 %v999, %v1241
  %v1255 = vmul.f32 %v1000, %v1241
  %v1256 = vmul.f32 %v1001, %v1245
  %v1257 = vmul.f32 %v1002, %v1245
  %v1258 = vmul.f32 %v1003, %v1245
  %v1259 = vmul.f32 %v1004, %v1245
  %v1260 = vmul.f32 %v1005, %v1245
  %v1261 = vmul.f32 %v1006, %v1245
  %v1262 = vmul.f32 %v1007, %v1245
  %v1263 = vmul.f32 %v1008, %v1245
  %v1264 = vpack.c.bf16 %v1249, %v1248
  %v1265 = vpack.c.bf16 %v1251, %v1250
  %v1266 = vpack.c.bf16 %v1253, %v1252
  %v1267 = vpack.c.bf16 %v1255, %v1254
  %v1268 = vpack.c.bf16 %v1257, %v1256
  %v1269 = vpack.c.bf16 %v1259, %v1258
  %v1270 = vpack.c.bf16 %v1261, %v1260
  %v1271 = vpack.c.bf16 %v1263, %v1262
  %v1272 = vld [vmem:[%s9] sm:$0xf]
  %v1273 = vld [vmem:[%s9 + $0x4] sm:$0xf]
  %v1274 = vld [vmem:[%s9 + $0x8] sm:$0xf]
  %v1275 = vld [vmem:[%s9 + $0xc] sm:$0xf]
  %v1276 = vld [vmem:[%s9 + $0x10] sm:$0xf]
  %v1277 = vld [vmem:[%s9 + $0x14] sm:$0xf]
  %v1278 = vld [vmem:[%s9 + $0x18] sm:$0xf]
  %v1279 = vld [vmem:[%s9 + $0x1c] sm:$0xf]
  %v1280 = vld [vmem:[%s10] sm:$0x1]
  %v1282 = vlaneseq
  %v1283 = vshrl.u32 %v1282, 7
  %v1284 = vsub.s32 0, %v1283
  %v1285 = vrot.slane %v1280, %v1284
  %v1295 = vunpack.c.l.b16 %v1272
  %v1296 = vunpack.c.l.b16 %v1273
  %v1297 = vunpack.c.l.b16 %v1274
  %v1298 = vunpack.c.l.b16 %v1275
  %v1299 = vunpack.c.l.b16 %v1276
  %v1300 = vunpack.c.l.b16 %v1277
  %v1301 = vunpack.c.l.b16 %v1278
  %v1302 = vunpack.c.l.b16 %v1279
  %v1303 = vpack.c.b16 %v1296, %v1295
  %v1304 = vpack.c.b16 %v1298, %v1297
  %v1305 = vpack.c.b16 %v1300, %v1299
  %v1306 = vpack.c.b16 %v1302, %v1301
  %v1312 = vsel %vm344, %v1264, 0
  %v1315 = vsel %vm344, %v1265, 0
  %v1318 = vsel %vm344, %v1266, 0
  %v1321 = vsel %vm344, %v1267, 0
  %v1324 = vsel %vm344, %v1268, 0
  %v1327 = vsel %vm344, %v1269, 0
  %v1330 = vsel %vm344, %v1270, 0
  %v1333 = vsel %vm344, %v1271, 0
  %1335 = vmatprep.subr.bf16.mxu0 0
  %1336 = vmatpush1.bf16.msra.mxu0 %v1303
  %1337 = vmatprep.subr.bf16.mxu0 0
  %1338 = vmatpush1.bf16.msra.mxu0 %v1304
  %1339 = vmatprep.subr.bf16.mxu0 0
  %1340 = vmatpush1.bf16.msra.mxu0 %v1305
  %1341 = vmatprep.subr.bf16.mxu0 0
  %1342 = vmatpush1.bf16.msra.mxu0 %v1306
  %1343 = vmatprep.subr.bf16.mxu0 0
  %1344 = vmatpush1.bf16.msra.mxu0 0
  %1345 = vmatprep.subr.bf16.mxu0 0
  %1346 = vmatpush1.bf16.msra.mxu0 0
  %1347 = vmatprep.subr.bf16.mxu0 0
  %1348 = vmatpush1.bf16.msra.mxu0 0
  %1349 = vmatprep.subr.bf16.mxu0 0
  %1350 = vmatpush1.bf16.msra.mxu0 0
  %1351 = vmatprep.subr.bf16.mxu0 0
  %1352 = vmatpush1.bf16.msra.mxu0 0
  %1353 = vmatprep.subr.bf16.mxu0 0
  %1354 = vmatpush1.bf16.msra.mxu0 0
  %1355 = vmatprep.subr.bf16.mxu0 0
  %1356 = vmatpush1.bf16.msra.mxu0 0
  %1357 = vmatprep.subr.bf16.mxu0 0
  %1358 = vmatpush1.bf16.msra.mxu0 0
  %1359 = vmatprep.subr.bf16.mxu0 0
  %1360 = vmatpush1.bf16.msra.mxu0 0
  %1361 = vmatprep.subr.bf16.mxu0 0
  %1362 = vmatpush1.bf16.msra.mxu0 0
  %1363 = vmatprep.subr.bf16.mxu0 0
  %1364 = vmatpush1.bf16.msra.mxu0 0
  %1365 = vmatprep.subr.bf16.mxu0 0
  %1366 = vmatpush1.bf16.msra.mxu0 0
  %1367 = vmatprep.mubr.bf16.mxu0 0
  %1368 = vmatmul.mubr.bf16.gmra.mrb[0].mxu0 %v1312
  %v1369 = vpop.f32.mrb[0].mxu0
  %v1370 = vadd.f32 %v1285, %v1369
  %v1371 = vpop.f32.mrb[0].mxu0
  %v1372 = vpop.f32.mrb[0].mxu0
  %v1373 = vadd.f32 %v1285, %v1372
  %v1374 = vpop.f32.mrb[0].mxu0
  %1375 = vmatprep.mubr.bf16.mxu0 0
  %1376 = vmatmul.mubr.bf16.gmra.mrb[0].mxu0 %v1315
  %v1377 = vpop.f32.mrb[0].mxu0
  %v1378 = vadd.f32 %v1285, %v1377
  %v1379 = vpop.f32.mrb[0].mxu0
  %v1380 = vpop.f32.mrb[0].mxu0
  %v1381 = vadd.f32 %v1285, %v1380
  %v1382 = vpop.f32.mrb[0].mxu0
  %1383 = vmatprep.mubr.bf16.mxu0 0
  %1384 = vmatmul.mubr.bf16.gmra.mrb[0].mxu0 %v1318
  %v1385 = vpop.f32.mrb[0].mxu0
  %v1386 = vadd.f32 %v1285, %v1385
  %v1387 = vpop.f32.mrb[0].mxu0
  %v1388 = vpop.f32.mrb[0].mxu0
  %v1389 = vadd.f32 %v1285, %v1388
  %v1390 = vpop.f32.mrb[0].mxu0
  %1391 = vmatprep.mubr.bf16.mxu0 0
  %1392 = vmatmul.mubr.bf16.gmra.mrb[0].mxu0 %v1321
  %v1393 = vpop.f32.mrb[0].mxu0
  %v1394 = vadd.f32 %v1285, %v1393
  %v1395 = vpop.f32.mrb[0].mxu0
  %v1396 = vpop.f32.mrb[0].mxu0
  %v1397 = vadd.f32 %v1285, %v1396
  %v1398 = vpop.f32.mrb[0].mxu0
  %1399 = vmatprep.mubr.bf16.mxu0 0
  %1400 = vmatmul.mubr.bf16.gmra.mrb[0].mxu0 %v1324
  %v1401 = vpop.f32.mrb[0].mxu0
  %v1402 = vadd.f32 %v1285, %v1401
  %v1403 = vpop.f32.mrb[0].mxu0
  %v1404 = vpop.f32.mrb[0].mxu0
  %v1405 = vadd.f32 %v1285, %v1404
  %v1406 = vpop.f32.mrb[0].mxu0
  %1407 = vmatprep.mubr.bf16.mxu0 0
  %1408 = vmatmul.mubr.bf16.gmra.mrb[0].mxu0 %v1327
  %v1409 = vpop.f32.mrb[0].mxu0
  %v1410 = vadd.f32 %v1285, %v1409
  %v1411 = vpop.f32.mrb[0].mxu0
  %v1412 = vpop.f32.mrb[0].mxu0
  %v1413 = vadd.f32 %v1285, %v1412
  %v1414 = vpop.f32.mrb[0].mxu0
  %1415 = vmatprep.mubr.bf16.mxu0 0
  %1416 = vmatmul.mubr.bf16.gmra.mrb[0].mxu0 %v1330
  %v1417 = vpop.f32.mrb[0].mxu0
  %v1418 = vadd.f32 %v1285, %v1417
  %v1419 = vpop.f32.mrb[0].mxu0
  %v1420 = vpop.f32.mrb[0].mxu0
  %v1421 = vadd.f32 %v1285, %v1420
  %v1422 = vpop.f32.mrb[0].mxu0
  %1423 = vmatprep.mubr.bf16.mxu0 0
  %1424 = vmatmul.mubr.bf16.gmra.mrb[0].mxu0 %v1333
  %v1425 = vpop.f32.mrb[0].mxu0
  %v1426 = vadd.f32 %v1285, %v1425
  %v1427 = vpop.f32.mrb[0].mxu0
  %v1428 = vpop.f32.mrb[0].mxu0
  %v1429 = vadd.f32 %v1285, %v1428
  %v1430 = vpop.f32.mrb[0].mxu0
  %1431 = vdwg.mxu0
  %v1432 = vunpack.c.l.bf16 %v39
  %v1433 = vunpack.c.l.bf16 %v40
  %v1434 = vunpack.c.l.bf16 %v41
  %v1435 = vunpack.c.l.bf16 %v42
  %v1436 = vunpack.c.l.bf16 %v43
  %v1437 = vunpack.c.l.bf16 %v44
  %v1438 = vunpack.c.l.bf16 %v45
  %v1439 = vunpack.c.l.bf16 %v46
  %v1440 = vunpack.c.l.bf16 %v47
  %v1441 = vunpack.c.l.bf16 %v48
  %v1442 = vunpack.c.l.bf16 %v49
  %v1443 = vunpack.c.l.bf16 %v50
  %v1444 = vunpack.c.l.bf16 %v51
  %v1445 = vunpack.c.l.bf16 %v52
  %v1446 = vunpack.c.l.bf16 %v53
  %v1447 = vunpack.c.l.bf16 %v54
  %v1448 = vadd.f32 %v1370, %v1432
  %v1449 = vadd.f32 %v1373, %v1433
  %v1450 = vadd.f32 %v1378, %v1434
  %v1451 = vadd.f32 %v1381, %v1435
  %v1452 = vadd.f32 %v1386, %v1436
  %v1453 = vadd.f32 %v1389, %v1437
  %v1454 = vadd.f32 %v1394, %v1438
  %v1455 = vadd.f32 %v1397, %v1439
  %v1456 = vadd.f32 %v1402, %v1440
  %v1457 = vadd.f32 %v1405, %v1441
  %v1458 = vadd.f32 %v1410, %v1442
  %v1459 = vadd.f32 %v1413, %v1443
  %v1460 = vadd.f32 %v1418, %v1444
  %v1461 = vadd.f32 %v1421, %v1445
  %v1462 = vadd.f32 %v1426, %v1446
  %v1463 = vadd.f32 %v1429, %v1447
  %v1464 = vpack.c.bf16 %v1449, %v1448
  %v1465 = vpack.c.bf16 %v1451, %v1450
  %v1466 = vpack.c.bf16 %v1453, %v1452
  %v1467 = vpack.c.bf16 %v1455, %v1454
  %v1468 = vpack.c.bf16 %v1457, %v1456
  %v1469 = vpack.c.bf16 %v1459, %v1458
  %v1470 = vpack.c.bf16 %v1461, %v1460
  %v1471 = vpack.c.bf16 %v1463, %v1462
  %v1480 = vunpack.c.l.b16 %v1464
  %v1481 = vunpack.c.h.b16 %v1464
  %v1482 = vunpack.c.l.b16 %v1465
  %v1483 = vunpack.c.h.b16 %v1465
  %v1484 = vunpack.c.l.b16 %v1466
  %v1485 = vunpack.c.h.b16 %v1466
  %v1486 = vunpack.c.l.b16 %v1467
  %v1487 = vunpack.c.h.b16 %v1467
  %v1488 = vunpack.c.l.b16 %v1468
  %v1489 = vunpack.c.h.b16 %v1468
  %v1490 = vunpack.c.l.b16 %v1469
  %v1491 = vunpack.c.h.b16 %v1469
  %v1492 = vunpack.c.l.b16 %v1470
  %v1493 = vunpack.c.h.b16 %v1470
  %v1494 = vunpack.c.l.b16 %v1471
  %v1495 = vunpack.c.h.b16 %v1471
  %v1496 = vpack.c.b16 %v1480, %v1480
  %v1497 = vpack.c.b16 %v1481, %v1481
  %v1498 = vpack.c.b16 %v1482, %v1482
  %v1499 = vpack.c.b16 %v1483, %v1483
  %v1500 = vpack.c.b16 %v1484, %v1484
  %v1501 = vpack.c.b16 %v1485, %v1485
  %v1502 = vpack.c.b16 %v1486, %v1486
  %v1503 = vpack.c.b16 %v1487, %v1487
  %v1504 = vpack.c.b16 %v1488, %v1488
  %v1505 = vpack.c.b16 %v1489, %v1489
  %v1506 = vpack.c.b16 %v1490, %v1490
  %v1507 = vpack.c.b16 %v1491, %v1491
  %v1508 = vpack.c.b16 %v1492, %v1492
  %v1509 = vpack.c.b16 %v1493, %v1493
  %v1510 = vpack.c.b16 %v1494, %v1494
  %v1511 = vpack.c.b16 %v1495, %v1495
  %vm1528 = vcmask 125952
  %1529 = vst.msk [vmem:[%s11] sm:$0xf] %vm1528, %v1496
  %1530 = vst.msk [vmem:[%s11 + $0x4] sm:$0xf] %vm1528, %v1497
  %1531 = vst.msk [vmem:[%s11 + $0x8] sm:$0xf] %vm1528, %v1498
  %1532 = vst.msk [vmem:[%s11 + $0xc] sm:$0xf] %vm1528, %v1499
  %1533 = vst.msk [vmem:[%s11 + $0x10] sm:$0xf] %vm1528, %v1500
  %1534 = vst.msk [vmem:[%s11 + $0x14] sm:$0xf] %vm1528, %v1501
  %1535 = vst.msk [vmem:[%s11 + $0x18] sm:$0xf] %vm1528, %v1502
  %1536 = vst.msk [vmem:[%s11 + $0x1c] sm:$0xf] %vm1528, %v1503
  %1537 = vst.msk [vmem:[%s11 + $0x20] sm:$0xf] %vm1528, %v1504
  %1538 = vst.msk [vmem:[%s11 + $0x24] sm:$0xf] %vm1528, %v1505
  %1539 = vst.msk [vmem:[%s11 + $0x28] sm:$0xf] %vm1528, %v1506
  %1540 = vst.msk [vmem:[%s11 + $0x2c] sm:$0xf] %vm1528, %v1507
  %1541 = vst.msk [vmem:[%s11 + $0x30] sm:$0xf] %vm1528, %v1508
  %1542 = vst.msk [vmem:[%s11 + $0x34] sm:$0xf] %vm1528, %v1509
  %1543 = vst.msk [vmem:[%s11 + $0x38] sm:$0xf] %vm1528, %v1510
  %1544 = vst.msk [vmem:[%s11 + $0x3c] sm:$0xf] %vm1528, %v1511
  // Predicated region
  $region46: #{effnet_forward.4} parent=0 // pred_check
    _
  $region47: #{effnet_forward.4} parent=0 // pred_check_branch
    %1546 = sbr.rel (0) target = $region49
  $region48: #{effnet_forward.4} parent=0 // pred_region
    _
  $region49: #{effnet_forward.4} parent=0 // pred_fallthru
    _
  // Predicated region
  $region50: #{effnet_forward.4} parent=0 // pred_check
    _
  $region51: #{effnet_forward.4} parent=0 // pred_check_branch
    %1548 = sbr.rel (0) target = $region53
  $region52: #{effnet_forward.4} parent=0 // pred_region
    _
  $region53: #{effnet_forward.4} parent=0 // pred_fallthru
    _

</llo_original>
